<compile_context>
chip_gen: v7x
topology: tpu7x:2x2x1
jax: 0.10.0
libtpu: 0.0.40
codegen_flags: <defaults>
</compile_context>

<pallas_src>
import functools

import jax
import jax.numpy as jnp
import numpy as np
from jax import lax
from jax.experimental import pallas as pl
from jax.experimental.pallas import tpu as pltpu


# --------------------------------------------------------------------------- #
# Pallas kernel: fused mpa_nms (+ final renorm + temperature softmax)
# --------------------------------------------------------------------------- #
def _mpa_nms_kernel(xy_ref, sc_ref, th_ref, out_ref, *, k_pred, use_ade,
                    temperature):
    # xy_ref : (2, n_step_blk, k, TB)  channel 0 = x, channel 1 = y (batch on lanes)
    #          n_step_blk == n_step for ADE, == 1 (last step only) for FDE.
    # sc_ref : (k, TB)   normalized probs
    # th_ref : (1, TB)   pre-folded threshold (thresh*n_step for ADE, thresh^2 for FDE)
    # out_ref: (k, TB)
    th = th_ref[...]                      # (1, TB)
    sc = sc_ref[...]                      # (k, TB)
    tb = sc.shape[-1]
    n_step_blk = xy_ref.shape[1]

    # ---- pairwise "within distance" mask: (k, k, TB) bool -------------------
    if use_ade:
        # Per-step accumulation: only the (k,k,TB) accumulator plus two (k,TB)
        # step slices and one (k,k,TB) temporary are live at a time.  The loop
        # is statically unrolled (identical trace to fori_loop(..., unroll=True)).
        dist_sum = jnp.zeros((k_pred, k_pred, tb), jnp.float32)
        for s in range(n_step_blk):
            x_s = xy_ref[0, s]                             # (k, TB) one-step load
            y_s = xy_ref[1, s]
            dx = x_s[:, None, :] - x_s[None, :, :]         # (k, k, TB)
            d2 = dx * dx
            dy = y_s[:, None, :] - y_s[None, :, :]
            d2 = d2 + dy * dy
            dist_sum = dist_sum + jnp.sqrt(d2)             # EUP sqrt, VALU add
        # Threshold pre-scaled by n_step in the wrapper -> no mean / no big mul.
        within_b = dist_sum < th[None, :, :]               # (k, k, TB) bool
    else:
        # FDE path: block carries only the last step; threshold pre-squared.
        x_l = xy_ref[0, 0]                                 # (k, TB)
        y_l = xy_ref[1, 0]
        dx = x_l[:, None, :] - x_l[None, :, :]             # (k, k, TB)
        dy = y_l[:, None, :] - y_l[None, :, :]
        within_b = (dx * dx + dy * dy) < th[None, :, :]

    # ---- precompute visitation order (rank of each mode by ORIGINAL score) --
    # rank[i] = #{ j : sc[j] > sc[i]  or  (sc[j] == sc[i] and j < i) }
    # (stable tie-break by index, matching np.argsort(-scores)).
    i_idx = lax.broadcasted_iota(jnp.int32, (k_pred, k_pred, tb), 1)
    j_idx = lax.broadcasted_iota(jnp.int32, (k_pred, k_pred, tb), 0)
    sc_i = sc[None, :, :]                                  # (1, k, TB)
    sc_j = sc[:, None, :]                                  # (k, 1, TB)
    before = (sc_j > sc_i) | ((sc_j == sc_i) & (j_idx < i_idx))   # (k, k, TB)
    rank = jnp.sum(before.astype(jnp.int32), axis=0)       # (k, TB), leading-axis sum

    # ---- sequential suppression, fully unrolled, boolean domain -------------
    for r in range(k_pred):
        onehot = rank == r                                 # (k, TB) bool, one per lane
        # score of the mode currently visited (leading-axis masked sum)
        sc_kk = jnp.sum(jnp.where(onehot, sc, 0.0), axis=0, keepdims=True)   # (1, TB)
        # row kk of the symmetric within matrix via a mask-OR chain over planes
        masked = within_b & onehot[:, None, :]             # (k, k, TB) bool
        row_kk = masked[0]
        for a in range(1, k_pred):
            row_kk = row_kk | masked[a]                    # (k, TB) bool
        hit = row_kk & (sc > sc_kk)                        # (k, TB) bool
        # tiny sublane reduction; f32 max (known-good lowering) on a (k,TB) tile
        suppress = jnp.max(hit.astype(jnp.float32), axis=0, keepdims=True) > 0.5
        sc = jnp.where(onehot & suppress, jnp.float32(0.001), sc)

    # ---- renormalize + temperature softmax (exact divides on the output) ----
    sc = sc / jnp.sum(sc, axis=0, keepdims=True)

    if temperature > 0.0:
        logits = jnp.log(sc) * jnp.float32(1.0 / temperature)
        logits = logits - jnp.max(logits, axis=0, keepdims=True)
        e = jnp.exp(logits)
        sc = e / jnp.sum(e, axis=0, keepdims=True)

    out_ref[...] = sc                                      # lane-dense store


def mpa_nms_pallas(xy, scores, thresh, *, use_ade, temperature, tb=None):
    """xy: [B, k, n_step, 2], scores: [B, k], thresh: [B] -> [B, k] scores."""
    B, k, n_step, _ = xy.shape
    if tb is None:
        # Grow the lane tile to amortize the ~0.35us/grid-step overhead, but:
        #  * cap at 512 so the (k,k,TB) accumulator + within mask stay inside
        #    the 64-vreg file (TB=1024 would spill again),
        #  * keep >= 2 grid steps whenever B allows so v7x's 2 TensorCores both
        #    get work on the "parallel" grid axis.
        tb = 128
        while tb < 512 and B > 2 * tb:
            tb *= 2
    b_pad = pl.cdiv(B, tb) * tb
    pad = b_pad - B

    if use_ade:
        xy_in = xy
        # Fold the step-mean into the threshold: sum(dist) < thresh * n_step.
        th_val = thresh.astype(jnp.float32) * jnp.float32(n_step)
    else:
        # Only the last step is needed -> slice before the transpose so only
        # (2, 1, k, B) is materialized and DMA'd.
        xy_in = xy[:, :, n_step - 1:n_step, :]
        # Fold the sqrt into the threshold: dist^2 < thresh^2.
        th_val = thresh.astype(jnp.float32) * thresh.astype(jnp.float32)
    n_step_blk = xy_in.shape[2]

    # Single lane-dense input: [2, n_step_blk, k, B]; batch on the lane axis.
    xy_t = jnp.transpose(xy_in.astype(jnp.float32), (3, 2, 1, 0))
    sc_t = jnp.transpose(scores.astype(jnp.float32), (1, 0))    # (k, B)
    th_t = th_val.reshape(1, B)
    if pad:
        # Padded lanes get uniform probs and thresh=0 -> finite, no NaN, dropped later.
        xy_t = jnp.pad(xy_t, ((0, 0), (0, 0), (0, 0), (0, pad)))
        sc_t = jnp.pad(sc_t, ((0, 0), (0, pad)), constant_values=1.0 / k)
        th_t = jnp.pad(th_t, ((0, 0), (0, pad)))

    kernel = functools.partial(_mpa_nms_kernel, k_pred=k, use_ade=use_ade,
                               temperature=float(temperature))
    out = pl.pallas_call(
        kernel,
        out_shape=jax.ShapeDtypeStruct((k, b_pad), jnp.float32),
        grid_spec=pltpu.PrefetchScalarGridSpec(
            num_scalar_prefetch=0,
            grid=(b_pad // tb,),
            in_specs=[
                pl.BlockSpec((2, n_step_blk, k, tb), lambda b: (0, 0, 0, b)),
                pl.BlockSpec((k, tb), lambda b: (0, b)),
                pl.BlockSpec((1, tb), lambda b: (0, b)),
            ],
            out_specs=pl.BlockSpec((k, tb), lambda b: (0, b)),
        ),
        compiler_params=pltpu.CompilerParams(
            dimension_semantics=("parallel",)),
    )(xy_t, sc_t, th_t)
    return jnp.transpose(out[:, :B], (1, 0))               # back to (B, k)


# --------------------------------------------------------------------------- #
# Module wrapper (JAX glue around the Pallas kernel)
# --------------------------------------------------------------------------- #
class WOMDPostProcessingPallas:
    def __init__(self, k_pred, score_temperature, mpa_nms_thresh, mtr_nms_thresh,
                 aggr_thresh, n_iter_em, use_ade, step_gt, step_current):
        self.k_pred = k_pred
        self.score_temperature = score_temperature
        self.mpa_nms_thresh = list(mpa_nms_thresh)
        self.mtr_nms_thresh = list(mtr_nms_thresh)
        self.aggr_thresh = list(aggr_thresh)
        self.n_iter_em = n_iter_em
        self.use_ade = use_ade
        self.track_future_samples = step_gt - step_current

    @staticmethod
    def _traj_topk(trajs, scores, k_pred):
        vals, idx = jax.lax.top_k(scores, k_pred)                 # [n_sc, n_ag, k]
        trajs_k = jnp.take_along_axis(trajs, idx[:, :, :, None, None], axis=2)
        scores_k = vals / jnp.sum(vals, axis=-1, keepdims=True)
        return trajs_k, scores_k

    def __call__(self, ag_type, trajs, scores=None):
        trajs = jnp.swapaxes(trajs, 1, 2)     # [n_sc, n_ag, n_jf, n_step, 3]
        n_sc, n_ag, n_jf, n_step, _ = trajs.shape
        if scores is None:
            scores = jnp.zeros_like(trajs[:, :, :, 0, 0])
        else:
            scores = jnp.swapaxes(scores, 1, 2)
        scores = jax.nn.softmax(scores, axis=-1)

        if n_jf > self.k_pred:
            if len(self.aggr_thresh) > 0:
                # TODO(synk): traj_aggr EM with dynamic empty-cluster splitting
                # is data-dependent control flow; not implemented here.
                raise NotImplementedError("traj_aggr not implemented")
            elif len(self.mtr_nms_thresh) > 0:
                # TODO(synk): mtr_nms branch not exercised by this config.
                raise NotImplementedError("mtr_nms not implemented")
            else:
                trajs, scores = self._traj_topk(trajs, scores, self.k_pred)

        if len(self.mpa_nms_thresh) > 0:
            k = trajs.shape[2]
            thresh = jnp.zeros((n_sc, n_ag), dtype=jnp.float32)
            for i, t in enumerate(self.mpa_nms_thresh):
                thresh = thresh + ag_type[:, :, i] * t
            xy = trajs[..., :2].reshape(n_sc * n_ag, k, n_step, 2)
            sc_flat = scores.reshape(n_sc * n_ag, k)
            th_flat = thresh.reshape(n_sc * n_ag)
            temp = self.score_temperature if self.score_temperature > 0 else 0.0
            scores = mpa_nms_pallas(xy, sc_flat, th_flat,
                                    use_ade=self.use_ade,
                                    temperature=temp).reshape(n_sc, n_ag, k)
        elif self.score_temperature > 0:
            scores = jax.nn.softmax(jnp.log(scores) / self.score_temperature,
                                    axis=-1)

        return {"trajs": trajs[:, :, :, 4:self.track_future_samples:5],
                "scores": scores}


# --------------------------------------------------------------------------- #
# Pure numpy reference (mirrors the PyTorch module for this config)
# --------------------------------------------------------------------------- #
def reference_forward(cfg, ag_type, trajs, scores):
    ag_type = np.asarray(ag_type, np.float32)
    trajs = np.swapaxes(np.asarray(trajs, np.float32), 1, 2)
    scores = np.swapaxes(np.asarray(scores, np.float32), 1, 2)
    e = np.exp(scores - scores.max(-1, keepdims=True))
    scores = e / e.sum(-1, keepdims=True)
    n_sc, n_ag, n_jf, n_step, _ = trajs.shape
    k_pred = cfg["k_pred"]
    if n_jf > k_pred:
        idx = np.argsort(-scores, axis=-1)[..., :k_pred]
        trajs = np.take_along_axis(trajs, idx[..., None, None], axis=2)
        scores = np.take_along_axis(scores, idx, axis=2)
        scores = scores / scores.sum(-1, keepdims=True)
    tt = cfg["mpa_nms_thresh"]
    thresh = sum(ag_type[:, :, i] * tt[i] for i in range(len(tt)))
    xy = trajs[..., :2]
    if cfg["use_ade"]:
        d = np.linalg.norm(xy[:, :, None] - xy[:, :, :, None], axis=-1).mean(-1)
    else:
        d = np.linalg.norm(xy[:, :, None, :, -1] - xy[:, :, :, None, -1], axis=-1)
    within = d < thresh[:, :, None, None]
    scores = scores.copy()
    for i in range(n_sc):
        for j in range(n_ag):
            for k in np.argsort(-scores[i, j]):
                mask = within[i, j, k] & (scores[i, j] > scores[i, j, k])
                if mask.any():
                    scores[i, j, k] = 0.001
    scores = scores / scores.sum(-1, keepdims=True)
    T = cfg["score_temperature"]
    if T > 0:
        logit = np.log(scores) / T
        logit -= logit.max(-1, keepdims=True)
        scores = np.exp(logit) / np.exp(logit).sum(-1, keepdims=True)
    tf = cfg["step_gt"] - cfg["step_current"]
    return trajs[:, :, :, 4:tf:5], scores


# --------------------------------------------------------------------------- #
if __name__ == "__main__":
    key = jax.random.PRNGKey(0)
    n_sc, n_ag, n_jf, n_step = 2, 3, 8, 16
    cfg = dict(k_pred=6, score_temperature=0.5,
               mpa_nms_thresh=[2.0, 1.0, 1.5], mtr_nms_thresh=[],
               aggr_thresh=[], n_iter_em=0, use_ade=True,
               step_gt=21, step_current=5)

    k1, k2, k3 = jax.random.split(key, 3)
    # Inputs in the pre-transpose layout the module expects:
    trajs = jax.random.normal(k1, (n_sc, n_jf, n_ag, n_step, 3), jnp.float32) * 2.0
    scores = jax.random.normal(k2, (n_sc, n_jf, n_ag), jnp.float32)
    type_idx = jax.random.randint(k3, (n_sc, n_ag), 0, 3)
    ag_type = jax.nn.one_hot(type_idx, 3, dtype=jnp.float32)

    model = WOMDPostProcessingPallas(**cfg)
    out = model(ag_type, trajs, scores)
    jax.block_until_ready(out)

    ref_trajs, ref_scores = reference_forward(cfg, ag_type, trajs, scores)
    assert np.allclose(np.asarray(out["trajs"]), ref_trajs, atol=1e-4, rtol=1e-4)
    assert np.allclose(np.asarray(out["scores"]), ref_scores, atol=2e-3, rtol=2e-3)

    print("KERNEL_OK")
</pallas_src>

<mosaic_0001>
module attributes {stable_mosaic.version = 11 : i64} {
  func.func @_mpa_nms_kernel(%arg0: i32, %arg1: memref<2x16x6x128xf32, #tpu.memory_space<vmem>>, %arg2: memref<6x128xf32, #tpu.memory_space<vmem>>, %arg3: memref<1x128xf32, #tpu.memory_space<vmem>>, %arg4: memref<6x128xf32, #tpu.memory_space<vmem>>) attributes {dimension_semantics = [#tpu.dimension_semantics<parallel>], iteration_bounds = array<i64: 1>, scalar_prefetch = 0 : i64, scratch_operands = 0 : i64, tpu.core_type = #tpu.core_type<tc>, window_params = [{transform_indices = @transform_0, window_bounds = array<i64: 2, 16, 6, 128>}, {transform_indices = @transform_1, window_bounds = array<i64: 6, 128>}, {transform_indices = @transform_2, window_bounds = array<i64: 1, 128>}, {transform_indices = @transform_3, window_bounds = array<i64: 6, 128>}]} {
    %c0 = arith.constant 0 : index
    %c0_0 = arith.constant 0 : index
    %0 = vector.load %arg3[%c0, %c0_0] : memref<1x128xf32, #tpu.memory_space<vmem>>, vector<1x128xf32>
    %c0_1 = arith.constant 0 : index
    %c0_2 = arith.constant 0 : index
    %1 = vector.load %arg2[%c0_1, %c0_2] : memref<6x128xf32, #tpu.memory_space<vmem>>, vector<6x128xf32>
    %cst = arith.constant 0.000000e+00 : f32
    %2 = vector.broadcast %cst : f32 to vector<6x6x128xf32>
    %c0_3 = arith.constant 0 : index
    %c0_4 = arith.constant 0 : index
    %c0_5 = arith.constant 0 : index
    %c0_6 = arith.constant 0 : index
    %3 = vector.load %arg1[%c0_3, %c0_4, %c0_5, %c0_6] : memref<2x16x6x128xf32, #tpu.memory_space<vmem>>, vector<1x1x6x128xf32>
    %4 = vector.shape_cast %3 : vector<1x1x6x128xf32> to vector<6x128xf32>
    %c1 = arith.constant 1 : index
    %c0_7 = arith.constant 0 : index
    %c0_8 = arith.constant 0 : index
    %c0_9 = arith.constant 0 : index
    %5 = vector.load %arg1[%c1, %c0_7, %c0_8, %c0_9] : memref<2x16x6x128xf32, #tpu.memory_space<vmem>>, vector<1x1x6x128xf32>
    %6 = vector.shape_cast %5 : vector<1x1x6x128xf32> to vector<6x128xf32>
    %7 = vector.shape_cast %4 : vector<6x128xf32> to vector<6x1x128xf32>
    %8 = vector.shape_cast %4 : vector<6x128xf32> to vector<1x6x128xf32>
    %9 = vector.broadcast %7 : vector<6x1x128xf32> to vector<6x6x128xf32>
    %10 = vector.broadcast %8 : vector<1x6x128xf32> to vector<6x6x128xf32>
    %11 = arith.subf %9, %10 : vector<6x6x128xf32>
    %12 = arith.mulf %11, %11 : vector<6x6x128xf32>
    %13 = vector.shape_cast %6 : vector<6x128xf32> to vector<6x1x128xf32>
    %14 = vector.shape_cast %6 : vector<6x128xf32> to vector<1x6x128xf32>
    %15 = vector.broadcast %13 : vector<6x1x128xf32> to vector<6x6x128xf32>
    %16 = vector.broadcast %14 : vector<1x6x128xf32> to vector<6x6x128xf32>
    %17 = arith.subf %15, %16 : vector<6x6x128xf32>
    %18 = arith.mulf %17, %17 : vector<6x6x128xf32>
    %19 = arith.addf %12, %18 : vector<6x6x128xf32>
    %20 = math.sqrt %19 : vector<6x6x128xf32>
    %21 = arith.addf %2, %20 : vector<6x6x128xf32>
    %c0_10 = arith.constant 0 : index
    %c1_11 = arith.constant 1 : index
    %c0_12 = arith.constant 0 : index
    %c0_13 = arith.constant 0 : index
    %22 = vector.load %arg1[%c0_10, %c1_11, %c0_12, %c0_13] : memref<2x16x6x128xf32, #tpu.memory_space<vmem>>, vector<1x1x6x128xf32>
    %23 = vector.shape_cast %22 : vector<1x1x6x128xf32> to vector<6x128xf32>
    %c1_14 = arith.constant 1 : index
    %c1_15 = arith.constant 1 : index
    %c0_16 = arith.constant 0 : index
    %c0_17 = arith.constant 0 : index
    %24 = vector.load %arg1[%c1_14, %c1_15, %c0_16, %c0_17] : memref<2x16x6x128xf32, #tpu.memory_space<vmem>>, vector<1x1x6x128xf32>
    %25 = vector.shape_cast %24 : vector<1x1x6x128xf32> to vector<6x128xf32>
    %26 = vector.shape_cast %23 : vector<6x128xf32> to vector<6x1x128xf32>
    %27 = vector.shape_cast %23 : vector<6x128xf32> to vector<1x6x128xf32>
    %28 = vector.broadcast %26 : vector<6x1x128xf32> to vector<6x6x128xf32>
    %29 = vector.broadcast %27 : vector<1x6x128xf32> to vector<6x6x128xf32>
    %30 = arith.subf %28, %29 : vector<6x6x128xf32>
    %31 = arith.mulf %30, %30 : vector<6x6x128xf32>
    %32 = vector.shape_cast %25 : vector<6x128xf32> to vector<6x1x128xf32>
    %33 = vector.shape_cast %25 : vector<6x128xf32> to vector<1x6x128xf32>
    %34 = vector.broadcast %32 : vector<6x1x128xf32> to vector<6x6x128xf32>
    %35 = vector.broadcast %33 : vector<1x6x128xf32> to vector<6x6x128xf32>
    %36 = arith.subf %34, %35 : vector<6x6x128xf32>
    %37 = arith.mulf %36, %36 : vector<6x6x128xf32>
    %38 = arith.addf %31, %37 : vector<6x6x128xf32>
    %39 = math.sqrt %38 : vector<6x6x128xf32>
    %40 = arith.addf %21, %39 : vector<6x6x128xf32>
    %c0_18 = arith.constant 0 : index
    %c2 = arith.constant 2 : index
    %c0_19 = arith.constant 0 : index
    %c0_20 = arith.constant 0 : index
    %41 = vector.load %arg1[%c0_18, %c2, %c0_19, %c0_20] : memref<2x16x6x128xf32, #tpu.memory_space<vmem>>, vector<1x1x6x128xf32>
    %42 = vector.shape_cast %41 : vector<1x1x6x128xf32> to vector<6x128xf32>
    %c1_21 = arith.constant 1 : index
    %c2_22 = arith.constant 2 : index
    %c0_23 = arith.constant 0 : index
    %c0_24 = arith.constant 0 : index
    %43 = vector.load %arg1[%c1_21, %c2_22, %c0_23, %c0_24] : memref<2x16x6x128xf32, #tpu.memory_space<vmem>>, vector<1x1x6x128xf32>
    %44 = vector.shape_cast %43 : vector<1x1x6x128xf32> to vector<6x128xf32>
    %45 = vector.shape_cast %42 : vector<6x128xf32> to vector<6x1x128xf32>
    %46 = vector.shape_cast %42 : vector<6x128xf32> to vector<1x6x128xf32>
    %47 = vector.broadcast %45 : vector<6x1x128xf32> to vector<6x6x128xf32>
    %48 = vector.broadcast %46 : vector<1x6x128xf32> to vector<6x6x128xf32>
    %49 = arith.subf %47, %48 : vector<6x6x128xf32>
    %50 = arith.mulf %49, %49 : vector<6x6x128xf32>
    %51 = vector.shape_cast %44 : vector<6x128xf32> to vector<6x1x128xf32>
    %52 = vector.shape_cast %44 : vector<6x128xf32> to vector<1x6x128xf32>
    %53 = vector.broadcast %51 : vector<6x1x128xf32> to vector<6x6x128xf32>
    %54 = vector.broadcast %52 : vector<1x6x128xf32> to vector<6x6x128xf32>
    %55 = arith.subf %53, %54 : vector<6x6x128xf32>
    %56 = arith.mulf %55, %55 : vector<6x6x128xf32>
    %57 = arith.addf %50, %56 : vector<6x6x128xf32>
    %58 = math.sqrt %57 : vector<6x6x128xf32>
    %59 = arith.addf %40, %58 : vector<6x6x128xf32>
    %c0_25 = arith.constant 0 : index
    %c3 = arith.constant 3 : index
    %c0_26 = arith.constant 0 : index
    %c0_27 = arith.constant 0 : index
    %60 = vector.load %arg1[%c0_25, %c3, %c0_26, %c0_27] : memref<2x16x6x128xf32, #tpu.memory_space<vmem>>, vector<1x1x6x128xf32>
    %61 = vector.shape_cast %60 : vector<1x1x6x128xf32> to vector<6x128xf32>
    %c1_28 = arith.constant 1 : index
    %c3_29 = arith.constant 3 : index
    %c0_30 = arith.constant 0 : index
    %c0_31 = arith.constant 0 : index
    %62 = vector.load %arg1[%c1_28, %c3_29, %c0_30, %c0_31] : memref<2x16x6x128xf32, #tpu.memory_space<vmem>>, vector<1x1x6x128xf32>
    %63 = vector.shape_cast %62 : vector<1x1x6x128xf32> to vector<6x128xf32>
    %64 = vector.shape_cast %61 : vector<6x128xf32> to vector<6x1x128xf32>
    %65 = vector.shape_cast %61 : vector<6x128xf32> to vector<1x6x128xf32>
    %66 = vector.broadcast %64 : vector<6x1x128xf32> to vector<6x6x128xf32>
    %67 = vector.broadcast %65 : vector<1x6x128xf32> to vector<6x6x128xf32>
    %68 = arith.subf %66, %67 : vector<6x6x128xf32>
    %69 = arith.mulf %68, %68 : vector<6x6x128xf32>
    %70 = vector.shape_cast %63 : vector<6x128xf32> to vector<6x1x128xf32>
    %71 = vector.shape_cast %63 : vector<6x128xf32> to vector<1x6x128xf32>
    %72 = vector.broadcast %70 : vector<6x1x128xf32> to vector<6x6x128xf32>
    %73 = vector.broadcast %71 : vector<1x6x128xf32> to vector<6x6x128xf32>
    %74 = arith.subf %72, %73 : vector<6x6x128xf32>
    %75 = arith.mulf %74, %74 : vector<6x6x128xf32>
    %76 = arith.addf %69, %75 : vector<6x6x128xf32>
    %77 = math.sqrt %76 : vector<6x6x128xf32>
    %78 = arith.addf %59, %77 : vector<6x6x128xf32>
    %c0_32 = arith.constant 0 : index
    %c4 = arith.constant 4 : index
    %c0_33 = arith.constant 0 : index
    %c0_34 = arith.constant 0 : index
    %79 = vector.load %arg1[%c0_32, %c4, %c0_33, %c0_34] : memref<2x16x6x128xf32, #tpu.memory_space<vmem>>, vector<1x1x6x128xf32>
    %80 = vector.shape_cast %79 : vector<1x1x6x128xf32> to vector<6x128xf32>
    %c1_35 = arith.constant 1 : index
    %c4_36 = arith.constant 4 : index
    %c0_37 = arith.constant 0 : index
    %c0_38 = arith.constant 0 : index
    %81 = vector.load %arg1[%c1_35, %c4_36, %c0_37, %c0_38] : memref<2x16x6x128xf32, #tpu.memory_space<vmem>>, vector<1x1x6x128xf32>
    %82 = vector.shape_cast %81 : vector<1x1x6x128xf32> to vector<6x128xf32>
    %83 = vector.shape_cast %80 : vector<6x128xf32> to vector<6x1x128xf32>
    %84 = vector.shape_cast %80 : vector<6x128xf32> to vector<1x6x128xf32>
    %85 = vector.broadcast %83 : vector<6x1x128xf32> to vector<6x6x128xf32>
    %86 = vector.broadcast %84 : vector<1x6x128xf32> to vector<6x6x128xf32>
    %87 = arith.subf %85, %86 : vector<6x6x128xf32>
    %88 = arith.mulf %87, %87 : vector<6x6x128xf32>
    %89 = vector.shape_cast %82 : vector<6x128xf32> to vector<6x1x128xf32>
    %90 = vector.shape_cast %82 : vector<6x128xf32> to vector<1x6x128xf32>
    %91 = vector.broadcast %89 : vector<6x1x128xf32> to vector<6x6x128xf32>
    %92 = vector.broadcast %90 : vector<1x6x128xf32> to vector<6x6x128xf32>
    %93 = arith.subf %91, %92 : vector<6x6x128xf32>
    %94 = arith.mulf %93, %93 : vector<6x6x128xf32>
    %95 = arith.addf %88, %94 : vector<6x6x128xf32>
    %96 = math.sqrt %95 : vector<6x6x128xf32>
    %97 = arith.addf %78, %96 : vector<6x6x128xf32>
    %c0_39 = arith.constant 0 : index
    %c5 = arith.constant 5 : index
    %c0_40 = arith.constant 0 : index
    %c0_41 = arith.constant 0 : index
    %98 = vector.load %arg1[%c0_39, %c5, %c0_40, %c0_41] : memref<2x16x6x128xf32, #tpu.memory_space<vmem>>, vector<1x1x6x128xf32>
    %99 = vector.shape_cast %98 : vector<1x1x6x128xf32> to vector<6x128xf32>
    %c1_42 = arith.constant 1 : index
    %c5_43 = arith.constant 5 : index
    %c0_44 = arith.constant 0 : index
    %c0_45 = arith.constant 0 : index
    %100 = vector.load %arg1[%c1_42, %c5_43, %c0_44, %c0_45] : memref<2x16x6x128xf32, #tpu.memory_space<vmem>>, vector<1x1x6x128xf32>
    %101 = vector.shape_cast %100 : vector<1x1x6x128xf32> to vector<6x128xf32>
    %102 = vector.shape_cast %99 : vector<6x128xf32> to vector<6x1x128xf32>
    %103 = vector.shape_cast %99 : vector<6x128xf32> to vector<1x6x128xf32>
    %104 = vector.broadcast %102 : vector<6x1x128xf32> to vector<6x6x128xf32>
    %105 = vector.broadcast %103 : vector<1x6x128xf32> to vector<6x6x128xf32>
    %106 = arith.subf %104, %105 : vector<6x6x128xf32>
    %107 = arith.mulf %106, %106 : vector<6x6x128xf32>
    %108 = vector.shape_cast %101 : vector<6x128xf32> to vector<6x1x128xf32>
    %109 = vector.shape_cast %101 : vector<6x128xf32> to vector<1x6x128xf32>
    %110 = vector.broadcast %108 : vector<6x1x128xf32> to vector<6x6x128xf32>
    %111 = vector.broadcast %109 : vector<1x6x128xf32> to vector<6x6x128xf32>
    %112 = arith.subf %110, %111 : vector<6x6x128xf32>
    %113 = arith.mulf %112, %112 : vector<6x6x128xf32>
    %114 = arith.addf %107, %113 : vector<6x6x128xf32>
    %115 = math.sqrt %114 : vector<6x6x128xf32>
    %116 = arith.addf %97, %115 : vector<6x6x128xf32>
    %c0_46 = arith.constant 0 : index
    %c6 = arith.constant 6 : index
    %c0_47 = arith.constant 0 : index
    %c0_48 = arith.constant 0 : index
    %117 = vector.load %arg1[%c0_46, %c6, %c0_47, %c0_48] : memref<2x16x6x128xf32, #tpu.memory_space<vmem>>, vector<1x1x6x128xf32>
    %118 = vector.shape_cast %117 : vector<1x1x6x128xf32> to vector<6x128xf32>
    %c1_49 = arith.constant 1 : index
    %c6_50 = arith.constant 6 : index
    %c0_51 = arith.constant 0 : index
    %c0_52 = arith.constant 0 : index
    %119 = vector.load %arg1[%c1_49, %c6_50, %c0_51, %c0_52] : memref<2x16x6x128xf32, #tpu.memory_space<vmem>>, vector<1x1x6x128xf32>
    %120 = vector.shape_cast %119 : vector<1x1x6x128xf32> to vector<6x128xf32>
    %121 = vector.shape_cast %118 : vector<6x128xf32> to vector<6x1x128xf32>
    %122 = vector.shape_cast %118 : vector<6x128xf32> to vector<1x6x128xf32>
    %123 = vector.broadcast %121 : vector<6x1x128xf32> to vector<6x6x128xf32>
    %124 = vector.broadcast %122 : vector<1x6x128xf32> to vector<6x6x128xf32>
    %125 = arith.subf %123, %124 : vector<6x6x128xf32>
    %126 = arith.mulf %125, %125 : vector<6x6x128xf32>
    %127 = vector.shape_cast %120 : vector<6x128xf32> to vector<6x1x128xf32>
    %128 = vector.shape_cast %120 : vector<6x128xf32> to vector<1x6x128xf32>
    %129 = vector.broadcast %127 : vector<6x1x128xf32> to vector<6x6x128xf32>
    %130 = vector.broadcast %128 : vector<1x6x128xf32> to vector<6x6x128xf32>
    %131 = arith.subf %129, %130 : vector<6x6x128xf32>
    %132 = arith.mulf %131, %131 : vector<6x6x128xf32>
    %133 = arith.addf %126, %132 : vector<6x6x128xf32>
    %134 = math.sqrt %133 : vector<6x6x128xf32>
    %135 = arith.addf %116, %134 : vector<6x6x128xf32>
    %c0_53 = arith.constant 0 : index
    %c7 = arith.constant 7 : index
    %c0_54 = arith.constant 0 : index
    %c0_55 = arith.constant 0 : index
    %136 = vector.load %arg1[%c0_53, %c7, %c0_54, %c0_55] : memref<2x16x6x128xf32, #tpu.memory_space<vmem>>, vector<1x1x6x128xf32>
    %137 = vector.shape_cast %136 : vector<1x1x6x128xf32> to vector<6x128xf32>
    %c1_56 = arith.constant 1 : index
    %c7_57 = arith.constant 7 : index
    %c0_58 = arith.constant 0 : index
    %c0_59 = arith.constant 0 : index
    %138 = vector.load %arg1[%c1_56, %c7_57, %c0_58, %c0_59] : memref<2x16x6x128xf32, #tpu.memory_space<vmem>>, vector<1x1x6x128xf32>
    %139 = vector.shape_cast %138 : vector<1x1x6x128xf32> to vector<6x128xf32>
    %140 = vector.shape_cast %137 : vector<6x128xf32> to vector<6x1x128xf32>
    %141 = vector.shape_cast %137 : vector<6x128xf32> to vector<1x6x128xf32>
    %142 = vector.broadcast %140 : vector<6x1x128xf32> to vector<6x6x128xf32>
    %143 = vector.broadcast %141 : vector<1x6x128xf32> to vector<6x6x128xf32>
    %144 = arith.subf %142, %143 : vector<6x6x128xf32>
    %145 = arith.mulf %144, %144 : vector<6x6x128xf32>
    %146 = vector.shape_cast %139 : vector<6x128xf32> to vector<6x1x128xf32>
    %147 = vector.shape_cast %139 : vector<6x128xf32> to vector<1x6x128xf32>
    %148 = vector.broadcast %146 : vector<6x1x128xf32> to vector<6x6x128xf32>
    %149 = vector.broadcast %147 : vector<1x6x128xf32> to vector<6x6x128xf32>
    %150 = arith.subf %148, %149 : vector<6x6x128xf32>
    %151 = arith.mulf %150, %150 : vector<6x6x128xf32>
    %152 = arith.addf %145, %151 : vector<6x6x128xf32>
    %153 = math.sqrt %152 : vector<6x6x128xf32>
    %154 = arith.addf %135, %153 : vector<6x6x128xf32>
    %c0_60 = arith.constant 0 : index
    %c8 = arith.constant 8 : index
    %c0_61 = arith.constant 0 : index
    %c0_62 = arith.constant 0 : index
    %155 = vector.load %arg1[%c0_60, %c8, %c0_61, %c0_62] : memref<2x16x6x128xf32, #tpu.memory_space<vmem>>, vector<1x1x6x128xf32>
    %156 = vector.shape_cast %155 : vector<1x1x6x128xf32> to vector<6x128xf32>
    %c1_63 = arith.constant 1 : index
    %c8_64 = arith.constant 8 : index
    %c0_65 = arith.constant 0 : index
    %c0_66 = arith.constant 0 : index
    %157 = vector.load %arg1[%c1_63, %c8_64, %c0_65, %c0_66] : memref<2x16x6x128xf32, #tpu.memory_space<vmem>>, vector<1x1x6x128xf32>
    %158 = vector.shape_cast %157 : vector<1x1x6x128xf32> to vector<6x128xf32>
    %159 = vector.shape_cast %156 : vector<6x128xf32> to vector<6x1x128xf32>
    %160 = vector.shape_cast %156 : vector<6x128xf32> to vector<1x6x128xf32>
    %161 = vector.broadcast %159 : vector<6x1x128xf32> to vector<6x6x128xf32>
    %162 = vector.broadcast %160 : vector<1x6x128xf32> to vector<6x6x128xf32>
    %163 = arith.subf %161, %162 : vector<6x6x128xf32>
    %164 = arith.mulf %163, %163 : vector<6x6x128xf32>
    %165 = vector.shape_cast %158 : vector<6x128xf32> to vector<6x1x128xf32>
    %166 = vector.shape_cast %158 : vector<6x128xf32> to vector<1x6x128xf32>
    %167 = vector.broadcast %165 : vector<6x1x128xf32> to vector<6x6x128xf32>
    %168 = vector.broadcast %166 : vector<1x6x128xf32> to vector<6x6x128xf32>
    %169 = arith.subf %167, %168 : vector<6x6x128xf32>
    %170 = arith.mulf %169, %169 : vector<6x6x128xf32>
    %171 = arith.addf %164, %170 : vector<6x6x128xf32>
    %172 = math.sqrt %171 : vector<6x6x128xf32>
    %173 = arith.addf %154, %172 : vector<6x6x128xf32>
    %c0_67 = arith.constant 0 : index
    %c9 = arith.constant 9 : index
    %c0_68 = arith.constant 0 : index
    %c0_69 = arith.constant 0 : index
    %174 = vector.load %arg1[%c0_67, %c9, %c0_68, %c0_69] : memref<2x16x6x128xf32, #tpu.memory_space<vmem>>, vector<1x1x6x128xf32>
    %175 = vector.shape_cast %174 : vector<1x1x6x128xf32> to vector<6x128xf32>
    %c1_70 = arith.constant 1 : index
    %c9_71 = arith.constant 9 : index
    %c0_72 = arith.constant 0 : index
    %c0_73 = arith.constant 0 : index
    %176 = vector.load %arg1[%c1_70, %c9_71, %c0_72, %c0_73] : memref<2x16x6x128xf32, #tpu.memory_space<vmem>>, vector<1x1x6x128xf32>
    %177 = vector.shape_cast %176 : vector<1x1x6x128xf32> to vector<6x128xf32>
    %178 = vector.shape_cast %175 : vector<6x128xf32> to vector<6x1x128xf32>
    %179 = vector.shape_cast %175 : vector<6x128xf32> to vector<1x6x128xf32>
    %180 = vector.broadcast %178 : vector<6x1x128xf32> to vector<6x6x128xf32>
    %181 = vector.broadcast %179 : vector<1x6x128xf32> to vector<6x6x128xf32>
    %182 = arith.subf %180, %181 : vector<6x6x128xf32>
    %183 = arith.mulf %182, %182 : vector<6x6x128xf32>
    %184 = vector.shape_cast %177 : vector<6x128xf32> to vector<6x1x128xf32>
    %185 = vector.shape_cast %177 : vector<6x128xf32> to vector<1x6x128xf32>
    %186 = vector.broadcast %184 : vector<6x1x128xf32> to vector<6x6x128xf32>
    %187 = vector.broadcast %185 : vector<1x6x128xf32> to vector<6x6x128xf32>
    %188 = arith.subf %186, %187 : vector<6x6x128xf32>
    %189 = arith.mulf %188, %188 : vector<6x6x128xf32>
    %190 = arith.addf %183, %189 : vector<6x6x128xf32>
    %191 = math.sqrt %190 : vector<6x6x128xf32>
    %192 = arith.addf %173, %191 : vector<6x6x128xf32>
    %c0_74 = arith.constant 0 : index
    %c10 = arith.constant 10 : index
    %c0_75 = arith.constant 0 : index
    %c0_76 = arith.constant 0 : index
    %193 = vector.load %arg1[%c0_74, %c10, %c0_75, %c0_76] : memref<2x16x6x128xf32, #tpu.memory_space<vmem>>, vector<1x1x6x128xf32>
    %194 = vector.shape_cast %193 : vector<1x1x6x128xf32> to vector<6x128xf32>
    %c1_77 = arith.constant 1 : index
    %c10_78 = arith.constant 10 : index
    %c0_79 = arith.constant 0 : index
    %c0_80 = arith.constant 0 : index
    %195 = vector.load %arg1[%c1_77, %c10_78, %c0_79, %c0_80] : memref<2x16x6x128xf32, #tpu.memory_space<vmem>>, vector<1x1x6x128xf32>
    %196 = vector.shape_cast %195 : vector<1x1x6x128xf32> to vector<6x128xf32>
    %197 = vector.shape_cast %194 : vector<6x128xf32> to vector<6x1x128xf32>
    %198 = vector.shape_cast %194 : vector<6x128xf32> to vector<1x6x128xf32>
    %199 = vector.broadcast %197 : vector<6x1x128xf32> to vector<6x6x128xf32>
    %200 = vector.broadcast %198 : vector<1x6x128xf32> to vector<6x6x128xf32>
    %201 = arith.subf %199, %200 : vector<6x6x128xf32>
    %202 = arith.mulf %201, %201 : vector<6x6x128xf32>
    %203 = vector.shape_cast %196 : vector<6x128xf32> to vector<6x1x128xf32>
    %204 = vector.shape_cast %196 : vector<6x128xf32> to vector<1x6x128xf32>
    %205 = vector.broadcast %203 : vector<6x1x128xf32> to vector<6x6x128xf32>
    %206 = vector.broadcast %204 : vector<1x6x128xf32> to vector<6x6x128xf32>
    %207 = arith.subf %205, %206 : vector<6x6x128xf32>
    %208 = arith.mulf %207, %207 : vector<6x6x128xf32>
    %209 = arith.addf %202, %208 : vector<6x6x128xf32>
    %210 = math.sqrt %209 : vector<6x6x128xf32>
    %211 = arith.addf %192, %210 : vector<6x6x128xf32>
    %c0_81 = arith.constant 0 : index
    %c11 = arith.constant 11 : index
    %c0_82 = arith.constant 0 : index
    %c0_83 = arith.constant 0 : index
    %212 = vector.load %arg1[%c0_81, %c11, %c0_82, %c0_83] : memref<2x16x6x128xf32, #tpu.memory_space<vmem>>, vector<1x1x6x128xf32>
    %213 = vector.shape_cast %212 : vector<1x1x6x128xf32> to vector<6x128xf32>
    %c1_84 = arith.constant 1 : index
    %c11_85 = arith.constant 11 : index
    %c0_86 = arith.constant 0 : index
    %c0_87 = arith.constant 0 : index
    %214 = vector.load %arg1[%c1_84, %c11_85, %c0_86, %c0_87] : memref<2x16x6x128xf32, #tpu.memory_space<vmem>>, vector<1x1x6x128xf32>
    %215 = vector.shape_cast %214 : vector<1x1x6x128xf32> to vector<6x128xf32>
    %216 = vector.shape_cast %213 : vector<6x128xf32> to vector<6x1x128xf32>
    %217 = vector.shape_cast %213 : vector<6x128xf32> to vector<1x6x128xf32>
    %218 = vector.broadcast %216 : vector<6x1x128xf32> to vector<6x6x128xf32>
    %219 = vector.broadcast %217 : vector<1x6x128xf32> to vector<6x6x128xf32>
    %220 = arith.subf %218, %219 : vector<6x6x128xf32>
    %221 = arith.mulf %220, %220 : vector<6x6x128xf32>
    %222 = vector.shape_cast %215 : vector<6x128xf32> to vector<6x1x128xf32>
    %223 = vector.shape_cast %215 : vector<6x128xf32> to vector<1x6x128xf32>
    %224 = vector.broadcast %222 : vector<6x1x128xf32> to vector<6x6x128xf32>
    %225 = vector.broadcast %223 : vector<1x6x128xf32> to vector<6x6x128xf32>
    %226 = arith.subf %224, %225 : vector<6x6x128xf32>
    %227 = arith.mulf %226, %226 : vector<6x6x128xf32>
    %228 = arith.addf %221, %227 : vector<6x6x128xf32>
    %229 = math.sqrt %228 : vector<6x6x128xf32>
    %230 = arith.addf %211, %229 : vector<6x6x128xf32>
    %c0_88 = arith.constant 0 : index
    %c12 = arith.constant 12 : index
    %c0_89 = arith.constant 0 : index
    %c0_90 = arith.constant 0 : index
    %231 = vector.load %arg1[%c0_88, %c12, %c0_89, %c0_90] : memref<2x16x6x128xf32, #tpu.memory_space<vmem>>, vector<1x1x6x128xf32>
    %232 = vector.shape_cast %231 : vector<1x1x6x128xf32> to vector<6x128xf32>
    %c1_91 = arith.constant 1 : index
    %c12_92 = arith.constant 12 : index
    %c0_93 = arith.constant 0 : index
    %c0_94 = arith.constant 0 : index
    %233 = vector.load %arg1[%c1_91, %c12_92, %c0_93, %c0_94] : memref<2x16x6x128xf32, #tpu.memory_space<vmem>>, vector<1x1x6x128xf32>
    %234 = vector.shape_cast %233 : vector<1x1x6x128xf32> to vector<6x128xf32>
    %235 = vector.shape_cast %232 : vector<6x128xf32> to vector<6x1x128xf32>
    %236 = vector.shape_cast %232 : vector<6x128xf32> to vector<1x6x128xf32>
    %237 = vector.broadcast %235 : vector<6x1x128xf32> to vector<6x6x128xf32>
    %238 = vector.broadcast %236 : vector<1x6x128xf32> to vector<6x6x128xf32>
    %239 = arith.subf %237, %238 : vector<6x6x128xf32>
    %240 = arith.mulf %239, %239 : vector<6x6x128xf32>
    %241 = vector.shape_cast %234 : vector<6x128xf32> to vector<6x1x128xf32>
    %242 = vector.shape_cast %234 : vector<6x128xf32> to vector<1x6x128xf32>
    %243 = vector.broadcast %241 : vector<6x1x128xf32> to vector<6x6x128xf32>
    %244 = vector.broadcast %242 : vector<1x6x128xf32> to vector<6x6x128xf32>
    %245 = arith.subf %243, %244 : vector<6x6x128xf32>
    %246 = arith.mulf %245, %245 : vector<6x6x128xf32>
    %247 = arith.addf %240, %246 : vector<6x6x128xf32>
    %248 = math.sqrt %247 : vector<6x6x128xf32>
    %249 = arith.addf %230, %248 : vector<6x6x128xf32>
    %c0_95 = arith.constant 0 : index
    %c13 = arith.constant 13 : index
    %c0_96 = arith.constant 0 : index
    %c0_97 = arith.constant 0 : index
    %250 = vector.load %arg1[%c0_95, %c13, %c0_96, %c0_97] : memref<2x16x6x128xf32, #tpu.memory_space<vmem>>, vector<1x1x6x128xf32>
    %251 = vector.shape_cast %250 : vector<1x1x6x128xf32> to vector<6x128xf32>
    %c1_98 = arith.constant 1 : index
    %c13_99 = arith.constant 13 : index
    %c0_100 = arith.constant 0 : index
    %c0_101 = arith.constant 0 : index
    %252 = vector.load %arg1[%c1_98, %c13_99, %c0_100, %c0_101] : memref<2x16x6x128xf32, #tpu.memory_space<vmem>>, vector<1x1x6x128xf32>
    %253 = vector.shape_cast %252 : vector<1x1x6x128xf32> to vector<6x128xf32>
    %254 = vector.shape_cast %251 : vector<6x128xf32> to vector<6x1x128xf32>
    %255 = vector.shape_cast %251 : vector<6x128xf32> to vector<1x6x128xf32>
    %256 = vector.broadcast %254 : vector<6x1x128xf32> to vector<6x6x128xf32>
    %257 = vector.broadcast %255 : vector<1x6x128xf32> to vector<6x6x128xf32>
    %258 = arith.subf %256, %257 : vector<6x6x128xf32>
    %259 = arith.mulf %258, %258 : vector<6x6x128xf32>
    %260 = vector.shape_cast %253 : vector<6x128xf32> to vector<6x1x128xf32>
    %261 = vector.shape_cast %253 : vector<6x128xf32> to vector<1x6x128xf32>
    %262 = vector.broadcast %260 : vector<6x1x128xf32> to vector<6x6x128xf32>
    %263 = vector.broadcast %261 : vector<1x6x128xf32> to vector<6x6x128xf32>
    %264 = arith.subf %262, %263 : vector<6x6x128xf32>
    %265 = arith.mulf %264, %264 : vector<6x6x128xf32>
    %266 = arith.addf %259, %265 : vector<6x6x128xf32>
    %267 = math.sqrt %266 : vector<6x6x128xf32>
    %268 = arith.addf %249, %267 : vector<6x6x128xf32>
    %c0_102 = arith.constant 0 : index
    %c14 = arith.constant 14 : index
    %c0_103 = arith.constant 0 : index
    %c0_104 = arith.constant 0 : index
    %269 = vector.load %arg1[%c0_102, %c14, %c0_103, %c0_104] : memref<2x16x6x128xf32, #tpu.memory_space<vmem>>, vector<1x1x6x128xf32>
    %270 = vector.shape_cast %269 : vector<1x1x6x128xf32> to vector<6x128xf32>
    %c1_105 = arith.constant 1 : index
    %c14_106 = arith.constant 14 : index
    %c0_107 = arith.constant 0 : index
    %c0_108 = arith.constant 0 : index
    %271 = vector.load %arg1[%c1_105, %c14_106, %c0_107, %c0_108] : memref<2x16x6x128xf32, #tpu.memory_space<vmem>>, vector<1x1x6x128xf32>
    %272 = vector.shape_cast %271 : vector<1x1x6x128xf32> to vector<6x128xf32>
    %273 = vector.shape_cast %270 : vector<6x128xf32> to vector<6x1x128xf32>
    %274 = vector.shape_cast %270 : vector<6x128xf32> to vector<1x6x128xf32>
    %275 = vector.broadcast %273 : vector<6x1x128xf32> to vector<6x6x128xf32>
    %276 = vector.broadcast %274 : vector<1x6x128xf32> to vector<6x6x128xf32>
    %277 = arith.subf %275, %276 : vector<6x6x128xf32>
    %278 = arith.mulf %277, %277 : vector<6x6x128xf32>
    %279 = vector.shape_cast %272 : vector<6x128xf32> to vector<6x1x128xf32>
    %280 = vector.shape_cast %272 : vector<6x128xf32> to vector<1x6x128xf32>
    %281 = vector.broadcast %279 : vector<6x1x128xf32> to vector<6x6x128xf32>
    %282 = vector.broadcast %280 : vector<1x6x128xf32> to vector<6x6x128xf32>
    %283 = arith.subf %281, %282 : vector<6x6x128xf32>
    %284 = arith.mulf %283, %283 : vector<6x6x128xf32>
    %285 = arith.addf %278, %284 : vector<6x6x128xf32>
    %286 = math.sqrt %285 : vector<6x6x128xf32>
    %287 = arith.addf %268, %286 : vector<6x6x128xf32>
    %c0_109 = arith.constant 0 : index
    %c15 = arith.constant 15 : index
    %c0_110 = arith.constant 0 : index
    %c0_111 = arith.constant 0 : index
    %288 = vector.load %arg1[%c0_109, %c15, %c0_110, %c0_111] : memref<2x16x6x128xf32, #tpu.memory_space<vmem>>, vector<1x1x6x128xf32>
    %289 = vector.shape_cast %288 : vector<1x1x6x128xf32> to vector<6x128xf32>
    %c1_112 = arith.constant 1 : index
    %c15_113 = arith.constant 15 : index
    %c0_114 = arith.constant 0 : index
    %c0_115 = arith.constant 0 : index
    %290 = vector.load %arg1[%c1_112, %c15_113, %c0_114, %c0_115] : memref<2x16x6x128xf32, #tpu.memory_space<vmem>>, vector<1x1x6x128xf32>
    %291 = vector.shape_cast %290 : vector<1x1x6x128xf32> to vector<6x128xf32>
    %292 = vector.shape_cast %289 : vector<6x128xf32> to vector<6x1x128xf32>
    %293 = vector.shape_cast %289 : vector<6x128xf32> to vector<1x6x128xf32>
    %294 = vector.broadcast %292 : vector<6x1x128xf32> to vector<6x6x128xf32>
    %295 = vector.broadcast %293 : vector<1x6x128xf32> to vector<6x6x128xf32>
    %296 = arith.subf %294, %295 : vector<6x6x128xf32>
    %297 = arith.mulf %296, %296 : vector<6x6x128xf32>
    %298 = vector.shape_cast %291 : vector<6x128xf32> to vector<6x1x128xf32>
    %299 = vector.shape_cast %291 : vector<6x128xf32> to vector<1x6x128xf32>
    %300 = vector.broadcast %298 : vector<6x1x128xf32> to vector<6x6x128xf32>
    %301 = vector.broadcast %299 : vector<1x6x128xf32> to vector<6x6x128xf32>
    %302 = arith.subf %300, %301 : vector<6x6x128xf32>
    %303 = arith.mulf %302, %302 : vector<6x6x128xf32>
    %304 = arith.addf %297, %303 : vector<6x6x128xf32>
    %305 = math.sqrt %304 : vector<6x6x128xf32>
    %306 = arith.addf %287, %305 : vector<6x6x128xf32>
    %307 = vector.shape_cast %0 : vector<1x128xf32> to vector<1x1x128xf32>
    %308 = vector.broadcast %307 : vector<1x1x128xf32> to vector<6x6x128xf32>
    %309 = arith.cmpf olt, %306, %308 : vector<6x6x128xf32>
    %310 = tpu.iota {dimensions = array<i32: 1>} : vector<6x6x128xi32>
    %311 = tpu.iota {dimensions = array<i32: 0>} : vector<6x6x128xi32>
    %312 = vector.shape_cast %1 : vector<6x128xf32> to vector<1x6x128xf32>
    %313 = vector.shape_cast %1 : vector<6x128xf32> to vector<6x1x128xf32>
    %314 = vector.broadcast %313 : vector<6x1x128xf32> to vector<6x6x128xf32>
    %315 = vector.broadcast %312 : vector<1x6x128xf32> to vector<6x6x128xf32>
    %316 = arith.cmpf ogt, %314, %315 : vector<6x6x128xf32>
    %317 = vector.broadcast %313 : vector<6x1x128xf32> to vector<6x6x128xf32>
    %318 = vector.broadcast %312 : vector<1x6x128xf32> to vector<6x6x128xf32>
    %319 = arith.cmpf oeq, %317, %318 : vector<6x6x128xf32>
    %320 = arith.cmpi slt, %311, %310 : vector<6x6x128xi32>
    %321 = arith.andi %319, %320 : vector<6x6x128xi1>
    %322 = arith.ori %316, %321 : vector<6x6x128xi1>
    %323 = arith.extui %322 : vector<6x6x128xi1> to vector<6x6x128xi32>
    %cst_116 = arith.constant dense<0> : vector<6x128xi32>
    %324 = vector.multi_reduction <add>, %323, %cst_116 [0] : vector<6x6x128xi32> to vector<6x128xi32>
    %c0_i32 = arith.constant 0 : i32
    %325 = vector.broadcast %c0_i32 : i32 to vector<6x128xi32>
    %326 = arith.cmpi eq, %324, %325 : vector<6x128xi32>
    %cst_117 = arith.constant 0.000000e+00 : f32
    %327 = vector.broadcast %cst_117 : f32 to vector<6x128xf32>
    %328 = arith.select %326, %1, %327 : vector<6x128xi1>, vector<6x128xf32>
    %cst_118 = arith.constant dense<0.000000e+00> : vector<128xf32>
    %329 = vector.multi_reduction <add>, %328, %cst_118 [0] : vector<6x128xf32> to vector<128xf32>
    %330 = vector.shape_cast %329 : vector<128xf32> to vector<1x128xf32>
    %331 = vector.shape_cast %326 : vector<6x128xi1> to vector<6x1x128xi1>
    %332 = vector.broadcast %331 : vector<6x1x128xi1> to vector<6x6x128xi1>
    %333 = arith.andi %309, %332 : vector<6x6x128xi1>
    %334 = vector.extract_strided_slice %333 {offsets = [0, 0, 0], sizes = [1, 6, 128], strides = [1, 1, 1]} : vector<6x6x128xi1> to vector<1x6x128xi1>
    %335 = vector.shape_cast %334 : vector<1x6x128xi1> to vector<6x128xi1>
    %336 = vector.extract_strided_slice %333 {offsets = [1, 0, 0], sizes = [1, 6, 128], strides = [1, 1, 1]} : vector<6x6x128xi1> to vector<1x6x128xi1>
    %337 = vector.shape_cast %336 : vector<1x6x128xi1> to vector<6x128xi1>
    %338 = arith.ori %335, %337 : vector<6x128xi1>
    %339 = vector.extract_strided_slice %333 {offsets = [2, 0, 0], sizes = [1, 6, 128], strides = [1, 1, 1]} : vector<6x6x128xi1> to vector<1x6x128xi1>
    %340 = vector.shape_cast %339 : vector<1x6x128xi1> to vector<6x128xi1>
    %341 = arith.ori %338, %340 : vector<6x128xi1>
    %342 = vector.extract_strided_slice %333 {offsets = [3, 0, 0], sizes = [1, 6, 128], strides = [1, 1, 1]} : vector<6x6x128xi1> to vector<1x6x128xi1>
    %343 = vector.shape_cast %342 : vector<1x6x128xi1> to vector<6x128xi1>
    %344 = arith.ori %341, %343 : vector<6x128xi1>
    %345 = vector.extract_strided_slice %333 {offsets = [4, 0, 0], sizes = [1, 6, 128], strides = [1, 1, 1]} : vector<6x6x128xi1> to vector<1x6x128xi1>
    %346 = vector.shape_cast %345 : vector<1x6x128xi1> to vector<6x128xi1>
    %347 = arith.ori %344, %346 : vector<6x128xi1>
    %348 = vector.extract_strided_slice %333 {offsets = [5, 0, 0], sizes = [1, 6, 128], strides = [1, 1, 1]} : vector<6x6x128xi1> to vector<1x6x128xi1>
    %349 = vector.shape_cast %348 : vector<1x6x128xi1> to vector<6x128xi1>
    %350 = arith.ori %347, %349 : vector<6x128xi1>
    %351 = vector.broadcast %330 : vector<1x128xf32> to vector<6x128xf32>
    %352 = arith.cmpf ogt, %1, %351 : vector<6x128xf32>
    %353 = arith.andi %350, %352 : vector<6x128xi1>
    %354 = arith.extui %353 : vector<6x128xi1> to vector<6x128xi32>
    %355 = arith.sitofp %354 : vector<6x128xi32> to vector<6x128xf32>
    %cst_119 = arith.constant dense<0xFF800000> : vector<128xf32>
    %356 = vector.multi_reduction <maximumf>, %355, %cst_119 [0] : vector<6x128xf32> to vector<128xf32>
    %357 = vector.shape_cast %356 : vector<128xf32> to vector<1x128xf32>
    %cst_120 = arith.constant 5.000000e-01 : f32
    %358 = vector.broadcast %cst_120 : f32 to vector<1x128xf32>
    %359 = arith.cmpf ogt, %357, %358 : vector<1x128xf32>
    %360 = vector.broadcast %359 : vector<1x128xi1> to vector<6x128xi1>
    %361 = arith.andi %326, %360 : vector<6x128xi1>
    %cst_121 = arith.constant 1.000000e-03 : f32
    %362 = vector.broadcast %cst_121 : f32 to vector<6x128xf32>
    %363 = arith.select %361, %362, %1 : vector<6x128xi1>, vector<6x128xf32>
    %c1_i32 = arith.constant 1 : i32
    %364 = vector.broadcast %c1_i32 : i32 to vector<6x128xi32>
    %365 = arith.cmpi eq, %324, %364 : vector<6x128xi32>
    %cst_122 = arith.constant 0.000000e+00 : f32
    %366 = vector.broadcast %cst_122 : f32 to vector<6x128xf32>
    %367 = arith.select %365, %363, %366 : vector<6x128xi1>, vector<6x128xf32>
    %cst_123 = arith.constant dense<0.000000e+00> : vector<128xf32>
    %368 = vector.multi_reduction <add>, %367, %cst_123 [0] : vector<6x128xf32> to vector<128xf32>
    %369 = vector.shape_cast %368 : vector<128xf32> to vector<1x128xf32>
    %370 = vector.shape_cast %365 : vector<6x128xi1> to vector<6x1x128xi1>
    %371 = vector.broadcast %370 : vector<6x1x128xi1> to vector<6x6x128xi1>
    %372 = arith.andi %309, %371 : vector<6x6x128xi1>
    %373 = vector.extract_strided_slice %372 {offsets = [0, 0, 0], sizes = [1, 6, 128], strides = [1, 1, 1]} : vector<6x6x128xi1> to vector<1x6x128xi1>
    %374 = vector.shape_cast %373 : vector<1x6x128xi1> to vector<6x128xi1>
    %375 = vector.extract_strided_slice %372 {offsets = [1, 0, 0], sizes = [1, 6, 128], strides = [1, 1, 1]} : vector<6x6x128xi1> to vector<1x6x128xi1>
    %376 = vector.shape_cast %375 : vector<1x6x128xi1> to vector<6x128xi1>
    %377 = arith.ori %374, %376 : vector<6x128xi1>
    %378 = vector.extract_strided_slice %372 {offsets = [2, 0, 0], sizes = [1, 6, 128], strides = [1, 1, 1]} : vector<6x6x128xi1> to vector<1x6x128xi1>
    %379 = vector.shape_cast %378 : vector<1x6x128xi1> to vector<6x128xi1>
    %380 = arith.ori %377, %379 : vector<6x128xi1>
    %381 = vector.extract_strided_slice %372 {offsets = [3, 0, 0], sizes = [1, 6, 128], strides = [1, 1, 1]} : vector<6x6x128xi1> to vector<1x6x128xi1>
    %382 = vector.shape_cast %381 : vector<1x6x128xi1> to vector<6x128xi1>
    %383 = arith.ori %380, %382 : vector<6x128xi1>
    %384 = vector.extract_strided_slice %372 {offsets = [4, 0, 0], sizes = [1, 6, 128], strides = [1, 1, 1]} : vector<6x6x128xi1> to vector<1x6x128xi1>
    %385 = vector.shape_cast %384 : vector<1x6x128xi1> to vector<6x128xi1>
    %386 = arith.ori %383, %385 : vector<6x128xi1>
    %387 = vector.extract_strided_slice %372 {offsets = [5, 0, 0], sizes = [1, 6, 128], strides = [1, 1, 1]} : vector<6x6x128xi1> to vector<1x6x128xi1>
    %388 = vector.shape_cast %387 : vector<1x6x128xi1> to vector<6x128xi1>
    %389 = arith.ori %386, %388 : vector<6x128xi1>
    %390 = vector.broadcast %369 : vector<1x128xf32> to vector<6x128xf32>
    %391 = arith.cmpf ogt, %363, %390 : vector<6x128xf32>
    %392 = arith.andi %389, %391 : vector<6x128xi1>
    %393 = arith.extui %392 : vector<6x128xi1> to vector<6x128xi32>
    %394 = arith.sitofp %393 : vector<6x128xi32> to vector<6x128xf32>
    %cst_124 = arith.constant dense<0xFF800000> : vector<128xf32>
    %395 = vector.multi_reduction <maximumf>, %394, %cst_124 [0] : vector<6x128xf32> to vector<128xf32>
    %396 = vector.shape_cast %395 : vector<128xf32> to vector<1x128xf32>
    %cst_125 = arith.constant 5.000000e-01 : f32
    %397 = vector.broadcast %cst_125 : f32 to vector<1x128xf32>
    %398 = arith.cmpf ogt, %396, %397 : vector<1x128xf32>
    %399 = vector.broadcast %398 : vector<1x128xi1> to vector<6x128xi1>
    %400 = arith.andi %365, %399 : vector<6x128xi1>
    %cst_126 = arith.constant 1.000000e-03 : f32
    %401 = vector.broadcast %cst_126 : f32 to vector<6x128xf32>
    %402 = arith.select %400, %401, %363 : vector<6x128xi1>, vector<6x128xf32>
    %c2_i32 = arith.constant 2 : i32
    %403 = vector.broadcast %c2_i32 : i32 to vector<6x128xi32>
    %404 = arith.cmpi eq, %324, %403 : vector<6x128xi32>
    %cst_127 = arith.constant 0.000000e+00 : f32
    %405 = vector.broadcast %cst_127 : f32 to vector<6x128xf32>
    %406 = arith.select %404, %402, %405 : vector<6x128xi1>, vector<6x128xf32>
    %cst_128 = arith.constant dense<0.000000e+00> : vector<128xf32>
    %407 = vector.multi_reduction <add>, %406, %cst_128 [0] : vector<6x128xf32> to vector<128xf32>
    %408 = vector.shape_cast %407 : vector<128xf32> to vector<1x128xf32>
    %409 = vector.shape_cast %404 : vector<6x128xi1> to vector<6x1x128xi1>
    %410 = vector.broadcast %409 : vector<6x1x128xi1> to vector<6x6x128xi1>
    %411 = arith.andi %309, %410 : vector<6x6x128xi1>
    %412 = vector.extract_strided_slice %411 {offsets = [0, 0, 0], sizes = [1, 6, 128], strides = [1, 1, 1]} : vector<6x6x128xi1> to vector<1x6x128xi1>
    %413 = vector.shape_cast %412 : vector<1x6x128xi1> to vector<6x128xi1>
    %414 = vector.extract_strided_slice %411 {offsets = [1, 0, 0], sizes = [1, 6, 128], strides = [1, 1, 1]} : vector<6x6x128xi1> to vector<1x6x128xi1>
    %415 = vector.shape_cast %414 : vector<1x6x128xi1> to vector<6x128xi1>
    %416 = arith.ori %413, %415 : vector<6x128xi1>
    %417 = vector.extract_strided_slice %411 {offsets = [2, 0, 0], sizes = [1, 6, 128], strides = [1, 1, 1]} : vector<6x6x128xi1> to vector<1x6x128xi1>
    %418 = vector.shape_cast %417 : vector<1x6x128xi1> to vector<6x128xi1>
    %419 = arith.ori %416, %418 : vector<6x128xi1>
    %420 = vector.extract_strided_slice %411 {offsets = [3, 0, 0], sizes = [1, 6, 128], strides = [1, 1, 1]} : vector<6x6x128xi1> to vector<1x6x128xi1>
    %421 = vector.shape_cast %420 : vector<1x6x128xi1> to vector<6x128xi1>
    %422 = arith.ori %419, %421 : vector<6x128xi1>
    %423 = vector.extract_strided_slice %411 {offsets = [4, 0, 0], sizes = [1, 6, 128], strides = [1, 1, 1]} : vector<6x6x128xi1> to vector<1x6x128xi1>
    %424 = vector.shape_cast %423 : vector<1x6x128xi1> to vector<6x128xi1>
    %425 = arith.ori %422, %424 : vector<6x128xi1>
    %426 = vector.extract_strided_slice %411 {offsets = [5, 0, 0], sizes = [1, 6, 128], strides = [1, 1, 1]} : vector<6x6x128xi1> to vector<1x6x128xi1>
    %427 = vector.shape_cast %426 : vector<1x6x128xi1> to vector<6x128xi1>
    %428 = arith.ori %425, %427 : vector<6x128xi1>
    %429 = vector.broadcast %408 : vector<1x128xf32> to vector<6x128xf32>
    %430 = arith.cmpf ogt, %402, %429 : vector<6x128xf32>
    %431 = arith.andi %428, %430 : vector<6x128xi1>
    %432 = arith.extui %431 : vector<6x128xi1> to vector<6x128xi32>
    %433 = arith.sitofp %432 : vector<6x128xi32> to vector<6x128xf32>
    %cst_129 = arith.constant dense<0xFF800000> : vector<128xf32>
    %434 = vector.multi_reduction <maximumf>, %433, %cst_129 [0] : vector<6x128xf32> to vector<128xf32>
    %435 = vector.shape_cast %434 : vector<128xf32> to vector<1x128xf32>
    %cst_130 = arith.constant 5.000000e-01 : f32
    %436 = vector.broadcast %cst_130 : f32 to vector<1x128xf32>
    %437 = arith.cmpf ogt, %435, %436 : vector<1x128xf32>
    %438 = vector.broadcast %437 : vector<1x128xi1> to vector<6x128xi1>
    %439 = arith.andi %404, %438 : vector<6x128xi1>
    %cst_131 = arith.constant 1.000000e-03 : f32
    %440 = vector.broadcast %cst_131 : f32 to vector<6x128xf32>
    %441 = arith.select %439, %440, %402 : vector<6x128xi1>, vector<6x128xf32>
    %c3_i32 = arith.constant 3 : i32
    %442 = vector.broadcast %c3_i32 : i32 to vector<6x128xi32>
    %443 = arith.cmpi eq, %324, %442 : vector<6x128xi32>
    %cst_132 = arith.constant 0.000000e+00 : f32
    %444 = vector.broadcast %cst_132 : f32 to vector<6x128xf32>
    %445 = arith.select %443, %441, %444 : vector<6x128xi1>, vector<6x128xf32>
    %cst_133 = arith.constant dense<0.000000e+00> : vector<128xf32>
    %446 = vector.multi_reduction <add>, %445, %cst_133 [0] : vector<6x128xf32> to vector<128xf32>
    %447 = vector.shape_cast %446 : vector<128xf32> to vector<1x128xf32>
    %448 = vector.shape_cast %443 : vector<6x128xi1> to vector<6x1x128xi1>
    %449 = vector.broadcast %448 : vector<6x1x128xi1> to vector<6x6x128xi1>
    %450 = arith.andi %309, %449 : vector<6x6x128xi1>
    %451 = vector.extract_strided_slice %450 {offsets = [0, 0, 0], sizes = [1, 6, 128], strides = [1, 1, 1]} : vector<6x6x128xi1> to vector<1x6x128xi1>
    %452 = vector.shape_cast %451 : vector<1x6x128xi1> to vector<6x128xi1>
    %453 = vector.extract_strided_slice %450 {offsets = [1, 0, 0], sizes = [1, 6, 128], strides = [1, 1, 1]} : vector<6x6x128xi1> to vector<1x6x128xi1>
    %454 = vector.shape_cast %453 : vector<1x6x128xi1> to vector<6x128xi1>
    %455 = arith.ori %452, %454 : vector<6x128xi1>
    %456 = vector.extract_strided_slice %450 {offsets = [2, 0, 0], sizes = [1, 6, 128], strides = [1, 1, 1]} : vector<6x6x128xi1> to vector<1x6x128xi1>
    %457 = vector.shape_cast %456 : vector<1x6x128xi1> to vector<6x128xi1>
    %458 = arith.ori %455, %457 : vector<6x128xi1>
    %459 = vector.extract_strided_slice %450 {offsets = [3, 0, 0], sizes = [1, 6, 128], strides = [1, 1, 1]} : vector<6x6x128xi1> to vector<1x6x128xi1>
    %460 = vector.shape_cast %459 : vector<1x6x128xi1> to vector<6x128xi1>
    %461 = arith.ori %458, %460 : vector<6x128xi1>
    %462 = vector.extract_strided_slice %450 {offsets = [4, 0, 0], sizes = [1, 6, 128], strides = [1, 1, 1]} : vector<6x6x128xi1> to vector<1x6x128xi1>
    %463 = vector.shape_cast %462 : vector<1x6x128xi1> to vector<6x128xi1>
    %464 = arith.ori %461, %463 : vector<6x128xi1>
    %465 = vector.extract_strided_slice %450 {offsets = [5, 0, 0], sizes = [1, 6, 128], strides = [1, 1, 1]} : vector<6x6x128xi1> to vector<1x6x128xi1>
    %466 = vector.shape_cast %465 : vector<1x6x128xi1> to vector<6x128xi1>
    %467 = arith.ori %464, %466 : vector<6x128xi1>
    %468 = vector.broadcast %447 : vector<1x128xf32> to vector<6x128xf32>
    %469 = arith.cmpf ogt, %441, %468 : vector<6x128xf32>
    %470 = arith.andi %467, %469 : vector<6x128xi1>
    %471 = arith.extui %470 : vector<6x128xi1> to vector<6x128xi32>
    %472 = arith.sitofp %471 : vector<6x128xi32> to vector<6x128xf32>
    %cst_134 = arith.constant dense<0xFF800000> : vector<128xf32>
    %473 = vector.multi_reduction <maximumf>, %472, %cst_134 [0] : vector<6x128xf32> to vector<128xf32>
    %474 = vector.shape_cast %473 : vector<128xf32> to vector<1x128xf32>
    %cst_135 = arith.constant 5.000000e-01 : f32
    %475 = vector.broadcast %cst_135 : f32 to vector<1x128xf32>
    %476 = arith.cmpf ogt, %474, %475 : vector<1x128xf32>
    %477 = vector.broadcast %476 : vector<1x128xi1> to vector<6x128xi1>
    %478 = arith.andi %443, %477 : vector<6x128xi1>
    %cst_136 = arith.constant 1.000000e-03 : f32
    %479 = vector.broadcast %cst_136 : f32 to vector<6x128xf32>
    %480 = arith.select %478, %479, %441 : vector<6x128xi1>, vector<6x128xf32>
    %c4_i32 = arith.constant 4 : i32
    %481 = vector.broadcast %c4_i32 : i32 to vector<6x128xi32>
    %482 = arith.cmpi eq, %324, %481 : vector<6x128xi32>
    %cst_137 = arith.constant 0.000000e+00 : f32
    %483 = vector.broadcast %cst_137 : f32 to vector<6x128xf32>
    %484 = arith.select %482, %480, %483 : vector<6x128xi1>, vector<6x128xf32>
    %cst_138 = arith.constant dense<0.000000e+00> : vector<128xf32>
    %485 = vector.multi_reduction <add>, %484, %cst_138 [0] : vector<6x128xf32> to vector<128xf32>
    %486 = vector.shape_cast %485 : vector<128xf32> to vector<1x128xf32>
    %487 = vector.shape_cast %482 : vector<6x128xi1> to vector<6x1x128xi1>
    %488 = vector.broadcast %487 : vector<6x1x128xi1> to vector<6x6x128xi1>
    %489 = arith.andi %309, %488 : vector<6x6x128xi1>
    %490 = vector.extract_strided_slice %489 {offsets = [0, 0, 0], sizes = [1, 6, 128], strides = [1, 1, 1]} : vector<6x6x128xi1> to vector<1x6x128xi1>
    %491 = vector.shape_cast %490 : vector<1x6x128xi1> to vector<6x128xi1>
    %492 = vector.extract_strided_slice %489 {offsets = [1, 0, 0], sizes = [1, 6, 128], strides = [1, 1, 1]} : vector<6x6x128xi1> to vector<1x6x128xi1>
    %493 = vector.shape_cast %492 : vector<1x6x128xi1> to vector<6x128xi1>
    %494 = arith.ori %491, %493 : vector<6x128xi1>
    %495 = vector.extract_strided_slice %489 {offsets = [2, 0, 0], sizes = [1, 6, 128], strides = [1, 1, 1]} : vector<6x6x128xi1> to vector<1x6x128xi1>
    %496 = vector.shape_cast %495 : vector<1x6x128xi1> to vector<6x128xi1>
    %497 = arith.ori %494, %496 : vector<6x128xi1>
    %498 = vector.extract_strided_slice %489 {offsets = [3, 0, 0], sizes = [1, 6, 128], strides = [1, 1, 1]} : vector<6x6x128xi1> to vector<1x6x128xi1>
    %499 = vector.shape_cast %498 : vector<1x6x128xi1> to vector<6x128xi1>
    %500 = arith.ori %497, %499 : vector<6x128xi1>
    %501 = vector.extract_strided_slice %489 {offsets = [4, 0, 0], sizes = [1, 6, 128], strides = [1, 1, 1]} : vector<6x6x128xi1> to vector<1x6x128xi1>
    %502 = vector.shape_cast %501 : vector<1x6x128xi1> to vector<6x128xi1>
    %503 = arith.ori %500, %502 : vector<6x128xi1>
    %504 = vector.extract_strided_slice %489 {offsets = [5, 0, 0], sizes = [1, 6, 128], strides = [1, 1, 1]} : vector<6x6x128xi1> to vector<1x6x128xi1>
    %505 = vector.shape_cast %504 : vector<1x6x128xi1> to vector<6x128xi1>
    %506 = arith.ori %503, %505 : vector<6x128xi1>
    %507 = vector.broadcast %486 : vector<1x128xf32> to vector<6x128xf32>
    %508 = arith.cmpf ogt, %480, %507 : vector<6x128xf32>
    %509 = arith.andi %506, %508 : vector<6x128xi1>
    %510 = arith.extui %509 : vector<6x128xi1> to vector<6x128xi32>
    %511 = arith.sitofp %510 : vector<6x128xi32> to vector<6x128xf32>
    %cst_139 = arith.constant dense<0xFF800000> : vector<128xf32>
    %512 = vector.multi_reduction <maximumf>, %511, %cst_139 [0] : vector<6x128xf32> to vector<128xf32>
    %513 = vector.shape_cast %512 : vector<128xf32> to vector<1x128xf32>
    %cst_140 = arith.constant 5.000000e-01 : f32
    %514 = vector.broadcast %cst_140 : f32 to vector<1x128xf32>
    %515 = arith.cmpf ogt, %513, %514 : vector<1x128xf32>
    %516 = vector.broadcast %515 : vector<1x128xi1> to vector<6x128xi1>
    %517 = arith.andi %482, %516 : vector<6x128xi1>
    %cst_141 = arith.constant 1.000000e-03 : f32
    %518 = vector.broadcast %cst_141 : f32 to vector<6x128xf32>
    %519 = arith.select %517, %518, %480 : vector<6x128xi1>, vector<6x128xf32>
    %c5_i32 = arith.constant 5 : i32
    %520 = vector.broadcast %c5_i32 : i32 to vector<6x128xi32>
    %521 = arith.cmpi eq, %324, %520 : vector<6x128xi32>
    %cst_142 = arith.constant 0.000000e+00 : f32
    %522 = vector.broadcast %cst_142 : f32 to vector<6x128xf32>
    %523 = arith.select %521, %519, %522 : vector<6x128xi1>, vector<6x128xf32>
    %cst_143 = arith.constant dense<0.000000e+00> : vector<128xf32>
    %524 = vector.multi_reduction <add>, %523, %cst_143 [0] : vector<6x128xf32> to vector<128xf32>
    %525 = vector.shape_cast %524 : vector<128xf32> to vector<1x128xf32>
    %526 = vector.shape_cast %521 : vector<6x128xi1> to vector<6x1x128xi1>
    %527 = vector.broadcast %526 : vector<6x1x128xi1> to vector<6x6x128xi1>
    %528 = arith.andi %309, %527 : vector<6x6x128xi1>
    %529 = vector.extract_strided_slice %528 {offsets = [0, 0, 0], sizes = [1, 6, 128], strides = [1, 1, 1]} : vector<6x6x128xi1> to vector<1x6x128xi1>
    %530 = vector.shape_cast %529 : vector<1x6x128xi1> to vector<6x128xi1>
    %531 = vector.extract_strided_slice %528 {offsets = [1, 0, 0], sizes = [1, 6, 128], strides = [1, 1, 1]} : vector<6x6x128xi1> to vector<1x6x128xi1>
    %532 = vector.shape_cast %531 : vector<1x6x128xi1> to vector<6x128xi1>
    %533 = arith.ori %530, %532 : vector<6x128xi1>
    %534 = vector.extract_strided_slice %528 {offsets = [2, 0, 0], sizes = [1, 6, 128], strides = [1, 1, 1]} : vector<6x6x128xi1> to vector<1x6x128xi1>
    %535 = vector.shape_cast %534 : vector<1x6x128xi1> to vector<6x128xi1>
    %536 = arith.ori %533, %535 : vector<6x128xi1>
    %537 = vector.extract_strided_slice %528 {offsets = [3, 0, 0], sizes = [1, 6, 128], strides = [1, 1, 1]} : vector<6x6x128xi1> to vector<1x6x128xi1>
    %538 = vector.shape_cast %537 : vector<1x6x128xi1> to vector<6x128xi1>
    %539 = arith.ori %536, %538 : vector<6x128xi1>
    %540 = vector.extract_strided_slice %528 {offsets = [4, 0, 0], sizes = [1, 6, 128], strides = [1, 1, 1]} : vector<6x6x128xi1> to vector<1x6x128xi1>
    %541 = vector.shape_cast %540 : vector<1x6x128xi1> to vector<6x128xi1>
    %542 = arith.ori %539, %541 : vector<6x128xi1>
    %543 = vector.extract_strided_slice %528 {offsets = [5, 0, 0], sizes = [1, 6, 128], strides = [1, 1, 1]} : vector<6x6x128xi1> to vector<1x6x128xi1>
    %544 = vector.shape_cast %543 : vector<1x6x128xi1> to vector<6x128xi1>
    %545 = arith.ori %542, %544 : vector<6x128xi1>
    %546 = vector.broadcast %525 : vector<1x128xf32> to vector<6x128xf32>
    %547 = arith.cmpf ogt, %519, %546 : vector<6x128xf32>
    %548 = arith.andi %545, %547 : vector<6x128xi1>
    %549 = arith.extui %548 : vector<6x128xi1> to vector<6x128xi32>
    %550 = arith.sitofp %549 : vector<6x128xi32> to vector<6x128xf32>
    %cst_144 = arith.constant dense<0xFF800000> : vector<128xf32>
    %551 = vector.multi_reduction <maximumf>, %550, %cst_144 [0] : vector<6x128xf32> to vector<128xf32>
    %552 = vector.shape_cast %551 : vector<128xf32> to vector<1x128xf32>
    %cst_145 = arith.constant 5.000000e-01 : f32
    %553 = vector.broadcast %cst_145 : f32 to vector<1x128xf32>
    %554 = arith.cmpf ogt, %552, %553 : vector<1x128xf32>
    %555 = vector.broadcast %554 : vector<1x128xi1> to vector<6x128xi1>
    %556 = arith.andi %521, %555 : vector<6x128xi1>
    %cst_146 = arith.constant 1.000000e-03 : f32
    %557 = vector.broadcast %cst_146 : f32 to vector<6x128xf32>
    %558 = arith.select %556, %557, %519 : vector<6x128xi1>, vector<6x128xf32>
    %cst_147 = arith.constant dense<0.000000e+00> : vector<128xf32>
    %559 = vector.multi_reduction <add>, %558, %cst_147 [0] : vector<6x128xf32> to vector<128xf32>
    %560 = vector.shape_cast %559 : vector<128xf32> to vector<1x128xf32>
    %561 = vector.broadcast %560 : vector<1x128xf32> to vector<6x128xf32>
    %562 = arith.divf %558, %561 : vector<6x128xf32>
    %563 = math.log %562 : vector<6x128xf32>
    %cst_148 = arith.constant 2.000000e+00 : f32
    %564 = vector.broadcast %cst_148 : f32 to vector<6x128xf32>
    %565 = arith.mulf %563, %564 : vector<6x128xf32>
    %cst_149 = arith.constant dense<0xFF800000> : vector<128xf32>
    %566 = vector.multi_reduction <maximumf>, %565, %cst_149 [0] : vector<6x128xf32> to vector<128xf32>
    %567 = vector.shape_cast %566 : vector<128xf32> to vector<1x128xf32>
    %568 = vector.broadcast %567 : vector<1x128xf32> to vector<6x128xf32>
    %569 = arith.subf %565, %568 : vector<6x128xf32>
    %570 = math.exp %569 : vector<6x128xf32>
    %cst_150 = arith.constant dense<0.000000e+00> : vector<128xf32>
    %571 = vector.multi_reduction <add>, %570, %cst_150 [0] : vector<6x128xf32> to vector<128xf32>
    %572 = vector.shape_cast %571 : vector<128xf32> to vector<1x128xf32>
    %573 = vector.broadcast %572 : vector<1x128xf32> to vector<6x128xf32>
    %574 = arith.divf %570, %573 : vector<6x128xf32>
    %c0_151 = arith.constant 0 : index
    %c0_152 = arith.constant 0 : index
    %575 = vector.load %arg4[%c0_151, %c0_152] : memref<6x128xf32, #tpu.memory_space<vmem>>, vector<6x128xf32>
    tpu.vector_store %arg4[%c0_151, %c0_152], %574 {strides = array<i32>} : memref<6x128xf32, #tpu.memory_space<vmem>>, vector<6x128xf32>,
    return
  }
  func.func @transform_0(%arg0: i32) -> (i32, i32, i32, i32) {
    %c0_i32 = arith.constant 0 : i32
    %c0_i32_0 = arith.constant 0 : i32
    %c0_i32_1 = arith.constant 0 : i32
    %c0_i32_2 = arith.constant 0 : i32
    return %c0_i32, %c0_i32_0, %c0_i32_1, %arg0 : i32, i32, i32, i32
  }
  func.func @transform_1(%arg0: i32) -> (i32, i32) {
    %c0_i32 = arith.constant 0 : i32
    %c0_i32_0 = arith.constant 0 : i32
    return %c0_i32, %arg0 : i32, i32
  }
  func.func @transform_2(%arg0: i32) -> (i32, i32) {
    %c0_i32 = arith.constant 0 : i32
    %c0_i32_0 = arith.constant 0 : i32
    return %c0_i32, %arg0 : i32, i32
  }
  func.func @transform_3(%arg0: i32) -> (i32, i32) {
    %c0_i32 = arith.constant 0 : i32
    %c0_i32_0 = arith.constant 0 : i32
    return %c0_i32, %arg0 : i32, i32
  }
}

</mosaic_0001>

<llo_original>
// kernel: tpu_custom_call.1
$region0: #{tpu_custom_call.1}
  #allocation0 [shape = 'u32[]', space=smem, size = 0x4, offset = 0x4, fixed_abs, tag = 'smem constant byte address 0x4 - core index']
  #allocation1 [shape = 'u32[144,128]{1,0:T(1,128)}', space=vmem, size = 0x12000, scoped, tag = 'internal scratch']
  %s0 = inlined_call_operand.vmem [shape: f32[2,16,6,128], index: 0, kind: input, shape index: {}]
  %s1 = inlined_call_operand.vmem [shape: f32[6,128], index: 1, kind: input, shape index: {}]
  %s2 = inlined_call_operand.vmem [shape: f32[1,128], index: 2, kind: input, shape index: {}]
  %s3 = inlined_call_operand.hbm [shape: f32[6,128], index: 3, kind: output, shape index: {}]
  %s4 = sld [smem:[#allocation0]]
  $region22: #{tpu_custom_call.1} parent=0
    _
  %s6 = ssub.s32 1, %s4
  %s7 = scalar_select 0, %s6, %s4
  $region1: #{tpu_custom_call.1} parent=0
    #allocation2 [shape = 'u8[4096]{0}', space=vmem, size = 0x1000, scoped, tag = 'output window, operand 0, single buffered']
    #allocation3 [shape = 's32[1]{0}', space=sflag, size = 0x4, scoped, tag = 'scoped memory for tpu_custom_call.1']
    %8 = vsyncpa [#allocation3], 0
    // Predicated region
    $region2: #{tpu_custom_call.1} parent=1 // pred_check
      _
    $region3: #{tpu_custom_call.1} parent=1 // pred_check_branch
      %10 = sbr.rel (0) target = $region5
    $region4: #{tpu_custom_call.1} parent=1 // pred_region
      _
    $region5: #{tpu_custom_call.1} parent=1 // pred_fallthru
      _
    // Predicated region
    $region6: #{tpu_custom_call.1} parent=1 // pred_check
      _
    $region7: #{tpu_custom_call.1} parent=1 // pred_check_branch
      %12 = sbr.rel (0) target = $region9
    $region8: #{tpu_custom_call.1} parent=1 // pred_region
      _
    $region9: #{tpu_custom_call.1} parent=1 // pred_fallthru
      _
    // Predicated region
    $region10: #{tpu_custom_call.1} parent=1 // pred_check
      _
    $region11: #{tpu_custom_call.1} parent=1 // pred_check_branch
      %14 = sbr.rel (0) target = $region13
    $region12: #{tpu_custom_call.1} parent=1 // pred_region
      _
    $region13: #{tpu_custom_call.1} parent=1 // pred_fallthru
      _
    %v15 = vld [vmem:[%s2] sm:$0x1]
    %v16 = vld [vmem:[%s1] sm:$0x3f]
    %v17 = vld [vmem:[%s0] sm:$0x3f]
    %s18 = scalar_lea.vmem %s0, 128
    %v19 = vld [vmem:[%s18] sm:$0x3f]
    %v21 = vcombine.high %v17, %v17
    %v23 = vunpack.c.l.s4 1966171168
    %v24 = vunpack.c.0.s8 %v23
    %v25 = vlaneseq
    %v26 = vshrl.u32 %v25, 7
    %v27 = vsub.s32 %v24, %v26
    %v28 = vrot.slane %v17, %v27
    %v30 = vunpack.c.l.s4 1966171168
    %v31 = vunpack.c.0.s8 %v30
    %v32 = vlaneseq
    %v33 = vshrl.u32 %v32, 7
    %v34 = vsub.s32 %v31, %v33
    %v35 = vrot.slane %v21, %v34
    %v36 = vcombine.high %v28, %v28
    %v37 = vcombine.high %v35, %v35
    %v39 = vunpack.c.l.s4 1966171168
    %v40 = vunpack.c.0.s8 %v39
    %v41 = vlaneseq
    %v42 = vshrl.u32 %v41, 7
    %v43 = vsub.s32 %v40, %v42
    %v44 = vrot.slane %v28, %v43
    %v46 = vunpack.c.l.s4 1966171168
    %v47 = vunpack.c.0.s8 %v46
    %v48 = vlaneseq
    %v49 = vshrl.u32 %v48, 7
    %v50 = vsub.s32 %v47, %v49
    %v51 = vrot.slane %v35, %v50
    %v53 = vunpack.c.l.s4 1966171168
    %v54 = vunpack.c.0.s8 %v53
    %v55 = vlaneseq
    %v56 = vshrl.u32 %v55, 7
    %v57 = vsub.s32 %v54, %v56
    %v58 = vrot.slane %v36, %v57
    %v60 = vunpack.c.l.s4 1966171168
    %v61 = vunpack.c.0.s8 %v60
    %v62 = vlaneseq
    %v63 = vshrl.u32 %v62, 7
    %v64 = vsub.s32 %v61, %v63
    %v65 = vrot.slane %v37, %v64
    %v66 = vcombine.high %v44, %v44
    %v67 = vcombine.high %v58, %v58
    %v68 = vlaneseq
    %v69 = vshrl.u32 %v68, 7
    %v70 = vsub.s32 0, %v69
    %v71 = vrot.slane %v44, %v70
    %v72 = vlaneseq
    %v73 = vshrl.u32 %v72, 7
    %v74 = vsub.s32 0, %v73
    %v75 = vrot.slane %v58, %v74
    %v76 = vlaneseq
    %v77 = vshrl.u32 %v76, 7
    %v78 = vsub.s32 0, %v77
    %v79 = vrot.slane %v66, %v78
    %v80 = vlaneseq
    %v81 = vshrl.u32 %v80, 7
    %v82 = vsub.s32 0, %v81
    %v83 = vrot.slane %v67, %v82
    %v84 = vlaneseq
    %v85 = vshrl.u32 %v84, 7
    %v86 = vsub.s32 0, %v85
    %v87 = vrot.slane %v51, %v86
    %v88 = vlaneseq
    %v89 = vshrl.u32 %v88, 7
    %v90 = vsub.s32 0, %v89
    %v91 = vrot.slane %v65, %v90
    %v98 = vsub.f32 %v71, %v17
    %v99 = vsub.f32 %v75, %v17
    %v100 = vsub.f32 %v79, %v17
    %v101 = vsub.f32 %v83, %v17
    %v102 = vsub.f32 %v87, %v17
    %v103 = vsub.f32 %v91, %v17
    %v104 = vmul.f32 %v98, %v98
    %v105 = vmul.f32 %v99, %v99
    %v106 = vmul.f32 %v100, %v100
    %v107 = vmul.f32 %v101, %v101
    %v108 = vmul.f32 %v102, %v102
    %v109 = vmul.f32 %v103, %v103
    %v111 = vcombine.high %v19, %v19
    %v113 = vunpack.c.l.s4 1966171168
    %v114 = vunpack.c.0.s8 %v113
    %v115 = vlaneseq
    %v116 = vshrl.u32 %v115, 7
    %v117 = vsub.s32 %v114, %v116
    %v118 = vrot.slane %v19, %v117
    %v120 = vunpack.c.l.s4 1966171168
    %v121 = vunpack.c.0.s8 %v120
    %v122 = vlaneseq
    %v123 = vshrl.u32 %v122, 7
    %v124 = vsub.s32 %v121, %v123
    %v125 = vrot.slane %v111, %v124
    %v126 = vcombine.high %v118, %v118
    %v127 = vcombine.high %v125, %v125
    %v129 = vunpack.c.l.s4 1966171168
    %v130 = vunpack.c.0.s8 %v129
    %v131 = vlaneseq
    %v132 = vshrl.u32 %v131, 7
    %v133 = vsub.s32 %v130, %v132
    %v134 = vrot.slane %v118, %v133
    %v136 = vunpack.c.l.s4 1966171168
    %v137 = vunpack.c.0.s8 %v136
    %v138 = vlaneseq
    %v139 = vshrl.u32 %v138, 7
    %v140 = vsub.s32 %v137, %v139
    %v141 = vrot.slane %v125, %v140
    %v143 = vunpack.c.l.s4 1966171168
    %v144 = vunpack.c.0.s8 %v143
    %v145 = vlaneseq
    %v146 = vshrl.u32 %v145, 7
    %v147 = vsub.s32 %v144, %v146
    %v148 = vrot.slane %v126, %v147
    %v150 = vunpack.c.l.s4 1966171168
    %v151 = vunpack.c.0.s8 %v150
    %v152 = vlaneseq
    %v153 = vshrl.u32 %v152, 7
    %v154 = vsub.s32 %v151, %v153
    %v155 = vrot.slane %v127, %v154
    %v156 = vcombine.high %v134, %v134
    %v157 = vcombine.high %v148, %v148
    %v158 = vlaneseq
    %v159 = vshrl.u32 %v158, 7
    %v160 = vsub.s32 0, %v159
    %v161 = vrot.slane %v134, %v160
    %v162 = vlaneseq
    %v163 = vshrl.u32 %v162, 7
    %v164 = vsub.s32 0, %v163
    %v165 = vrot.slane %v148, %v164
    %v166 = vlaneseq
    %v167 = vshrl.u32 %v166, 7
    %v168 = vsub.s32 0, %v167
    %v169 = vrot.slane %v156, %v168
    %v170 = vlaneseq
    %v171 = vshrl.u32 %v170, 7
    %v172 = vsub.s32 0, %v171
    %v173 = vrot.slane %v157, %v172
    %v174 = vlaneseq
    %v175 = vshrl.u32 %v174, 7
    %v176 = vsub.s32 0, %v175
    %v177 = vrot.slane %v141, %v176
    %v178 = vlaneseq
    %v179 = vshrl.u32 %v178, 7
    %v180 = vsub.s32 0, %v179
    %v181 = vrot.slane %v155, %v180
    %v188 = vsub.f32 %v161, %v19
    %v189 = vsub.f32 %v165, %v19
    %v190 = vsub.f32 %v169, %v19
    %v191 = vsub.f32 %v173, %v19
    %v192 = vsub.f32 %v177, %v19
    %v193 = vsub.f32 %v181, %v19
    %v194 = vmul.f32 %v188, %v188
    %v195 = vmul.f32 %v189, %v189
    %v196 = vmul.f32 %v190, %v190
    %v197 = vmul.f32 %v191, %v191
    %v198 = vmul.f32 %v192, %v192
    %v199 = vmul.f32 %v193, %v193
    %v200 = vadd.f32 %v104, %v194
    %v201 = vadd.f32 %v105, %v195
    %v202 = vadd.f32 %v106, %v196
    %v203 = vadd.f32 %v107, %v197
    %v204 = vadd.f32 %v108, %v198
    %v205 = vadd.f32 %v109, %v199
    %v206 = vrsqrt.pop %v200
    %v207 = vmul.f32 %v200, %v206
    %vm208 = vcmp.eq.f32.partialorder %v200, inf
    %v209 = vsel %vm208, %v200, %v207
    %vm210 = vcmp.eq.f32.partialorder %v200, 0.0
    %v211 = vand.u32 %v200, 2147483648
    %v212 = vsel %vm210, %v211, %v209
    %v213 = vrsqrt.pop %v201
    %v214 = vmul.f32 %v201, %v213
    %vm215 = vcmp.eq.f32.partialorder %v201, inf
    %v216 = vsel %vm215, %v201, %v214
    %vm217 = vcmp.eq.f32.partialorder %v201, 0.0
    %v218 = vand.u32 %v201, 2147483648
    %v219 = vsel %vm217, %v218, %v216
    %v220 = vrsqrt.pop %v202
    %v221 = vmul.f32 %v202, %v220
    %vm222 = vcmp.eq.f32.partialorder %v202, inf
    %v223 = vsel %vm222, %v202, %v221
    %vm224 = vcmp.eq.f32.partialorder %v202, 0.0
    %v225 = vand.u32 %v202, 2147483648
    %v226 = vsel %vm224, %v225, %v223
    %v227 = vrsqrt.pop %v203
    %v228 = vmul.f32 %v203, %v227
    %vm229 = vcmp.eq.f32.partialorder %v203, inf
    %v230 = vsel %vm229, %v203, %v228
    %vm231 = vcmp.eq.f32.partialorder %v203, 0.0
    %v232 = vand.u32 %v203, 2147483648
    %v233 = vsel %vm231, %v232, %v230
    %v234 = vrsqrt.pop %v204
    %v235 = vmul.f32 %v204, %v234
    %vm236 = vcmp.eq.f32.partialorder %v204, inf
    %v237 = vsel %vm236, %v204, %v235
    %vm238 = vcmp.eq.f32.partialorder %v204, 0.0
    %v239 = vand.u32 %v204, 2147483648
    %v240 = vsel %vm238, %v239, %v237
    %v241 = vrsqrt.pop %v205
    %v242 = vmul.f32 %v205, %v241
    %vm243 = vcmp.eq.f32.partialorder %v205, inf
    %v244 = vsel %vm243, %v205, %v242
    %vm245 = vcmp.eq.f32.partialorder %v205, 0.0
    %v246 = vand.u32 %v205, 2147483648
    %v247 = vsel %vm245, %v246, %v244
    %v248 = vadd.f32 %v212, 0.0
    %v249 = vadd.f32 %v219, 0.0
    %v250 = vadd.f32 %v226, 0.0
    %v251 = vadd.f32 %v233, 0.0
    %v252 = vadd.f32 %v240, 0.0
    %v253 = vadd.f32 %v247, 0.0
    %s254 = scalar_lea.vmem %s0, 8
    %v255 = vld [vmem:[%s254] sm:$0x3f]
    %s256 = scalar_lea.vmem %s0, 136
    %v257 = vld [vmem:[%s256] sm:$0x3f]
    %v259 = vcombine.high %v255, %v255
    %v261 = vunpack.c.l.s4 1966171168
    %v262 = vunpack.c.0.s8 %v261
    %v263 = vlaneseq
    %v264 = vshrl.u32 %v263, 7
    %v265 = vsub.s32 %v262, %v264
    %v266 = vrot.slane %v255, %v265
    %v268 = vunpack.c.l.s4 1966171168
    %v269 = vunpack.c.0.s8 %v268
    %v270 = vlaneseq
    %v271 = vshrl.u32 %v270, 7
    %v272 = vsub.s32 %v269, %v271
    %v273 = vrot.slane %v259, %v272
    %v274 = vcombine.high %v266, %v266
    %v275 = vcombine.high %v273, %v273
    %v277 = vunpack.c.l.s4 1966171168
    %v278 = vunpack.c.0.s8 %v277
    %v279 = vlaneseq
    %v280 = vshrl.u32 %v279, 7
    %v281 = vsub.s32 %v278, %v280
    %v282 = vrot.slane %v266, %v281
    %v284 = vunpack.c.l.s4 1966171168
    %v285 = vunpack.c.0.s8 %v284
    %v286 = vlaneseq
    %v287 = vshrl.u32 %v286, 7
    %v288 = vsub.s32 %v285, %v287
    %v289 = vrot.slane %v273, %v288
    %v291 = vunpack.c.l.s4 1966171168
    %v292 = vunpack.c.0.s8 %v291
    %v293 = vlaneseq
    %v294 = vshrl.u32 %v293, 7
    %v295 = vsub.s32 %v292, %v294
    %v296 = vrot.slane %v274, %v295
    %v298 = vunpack.c.l.s4 1966171168
    %v299 = vunpack.c.0.s8 %v298
    %v300 = vlaneseq
    %v301 = vshrl.u32 %v300, 7
    %v302 = vsub.s32 %v299, %v301
    %v303 = vrot.slane %v275, %v302
    %v304 = vcombine.high %v282, %v282
    %v305 = vcombine.high %v296, %v296
    %v306 = vlaneseq
    %v307 = vshrl.u32 %v306, 7
    %v308 = vsub.s32 0, %v307
    %v309 = vrot.slane %v282, %v308
    %v310 = vlaneseq
    %v311 = vshrl.u32 %v310, 7
    %v312 = vsub.s32 0, %v311
    %v313 = vrot.slane %v296, %v312
    %v314 = vlaneseq
    %v315 = vshrl.u32 %v314, 7
    %v316 = vsub.s32 0, %v315
    %v317 = vrot.slane %v304, %v316
    %v318 = vlaneseq
    %v319 = vshrl.u32 %v318, 7
    %v320 = vsub.s32 0, %v319
    %v321 = vrot.slane %v305, %v320
    %v322 = vlaneseq
    %v323 = vshrl.u32 %v322, 7
    %v324 = vsub.s32 0, %v323
    %v325 = vrot.slane %v289, %v324
    %v326 = vlaneseq
    %v327 = vshrl.u32 %v326, 7
    %v328 = vsub.s32 0, %v327
    %v329 = vrot.slane %v303, %v328
    %v336 = vsub.f32 %v309, %v255
    %v337 = vsub.f32 %v313, %v255
    %v338 = vsub.f32 %v317, %v255
    %v339 = vsub.f32 %v321, %v255
    %v340 = vsub.f32 %v325, %v255
    %v341 = vsub.f32 %v329, %v255
    %v342 = vmul.f32 %v336, %v336
    %v343 = vmul.f32 %v337, %v337
    %v344 = vmul.f32 %v338, %v338
    %v345 = vmul.f32 %v339, %v339
    %v346 = vmul.f32 %v340, %v340
    %v347 = vmul.f32 %v341, %v341
    %v349 = vcombine.high %v257, %v257
    %v351 = vunpack.c.l.s4 1966171168
    %v352 = vunpack.c.0.s8 %v351
    %v353 = vlaneseq
    %v354 = vshrl.u32 %v353, 7
    %v355 = vsub.s32 %v352, %v354
    %v356 = vrot.slane %v257, %v355
    %v358 = vunpack.c.l.s4 1966171168
    %v359 = vunpack.c.0.s8 %v358
    %v360 = vlaneseq
    %v361 = vshrl.u32 %v360, 7
    %v362 = vsub.s32 %v359, %v361
    %v363 = vrot.slane %v349, %v362
    %v364 = vcombine.high %v356, %v356
    %v365 = vcombine.high %v363, %v363
    %v367 = vunpack.c.l.s4 1966171168
    %v368 = vunpack.c.0.s8 %v367
    %v369 = vlaneseq
    %v370 = vshrl.u32 %v369, 7
    %v371 = vsub.s32 %v368, %v370
    %v372 = vrot.slane %v356, %v371
    %v374 = vunpack.c.l.s4 1966171168
    %v375 = vunpack.c.0.s8 %v374
    %v376 = vlaneseq
    %v377 = vshrl.u32 %v376, 7
    %v378 = vsub.s32 %v375, %v377
    %v379 = vrot.slane %v363, %v378
    %v381 = vunpack.c.l.s4 1966171168
    %v382 = vunpack.c.0.s8 %v381
    %v383 = vlaneseq
    %v384 = vshrl.u32 %v383, 7
    %v385 = vsub.s32 %v382, %v384
    %v386 = vrot.slane %v364, %v385
    %v388 = vunpack.c.l.s4 1966171168
    %v389 = vunpack.c.0.s8 %v388
    %v390 = vlaneseq
    %v391 = vshrl.u32 %v390, 7
    %v392 = vsub.s32 %v389, %v391
    %v393 = vrot.slane %v365, %v392
    %v394 = vcombine.high %v372, %v372
    %v395 = vcombine.high %v386, %v386
    %v396 = vlaneseq
    %v397 = vshrl.u32 %v396, 7
    %v398 = vsub.s32 0, %v397
    %v399 = vrot.slane %v372, %v398
    %v400 = vlaneseq
    %v401 = vshrl.u32 %v400, 7
    %v402 = vsub.s32 0, %v401
    %v403 = vrot.slane %v386, %v402
    %v404 = vlaneseq
    %v405 = vshrl.u32 %v404, 7
    %v406 = vsub.s32 0, %v405
    %v407 = vrot.slane %v394, %v406
    %v408 = vlaneseq
    %v409 = vshrl.u32 %v408, 7
    %v410 = vsub.s32 0, %v409
    %v411 = vrot.slane %v395, %v410
    %v412 = vlaneseq
    %v413 = vshrl.u32 %v412, 7
    %v414 = vsub.s32 0, %v413
    %v415 = vrot.slane %v379, %v414
    %v416 = vlaneseq
    %v417 = vshrl.u32 %v416, 7
    %v418 = vsub.s32 0, %v417
    %v419 = vrot.slane %v393, %v418
    %v426 = vsub.f32 %v399, %v257
    %v427 = vsub.f32 %v403, %v257
    %v428 = vsub.f32 %v407, %v257
    %v429 = vsub.f32 %v411, %v257
    %v430 = vsub.f32 %v415, %v257
    %v431 = vsub.f32 %v419, %v257
    %v432 = vmul.f32 %v426, %v426
    %v433 = vmul.f32 %v427, %v427
    %v434 = vmul.f32 %v428, %v428
    %v435 = vmul.f32 %v429, %v429
    %v436 = vmul.f32 %v430, %v430
    %v437 = vmul.f32 %v431, %v431
    %v438 = vadd.f32 %v342, %v432
    %v439 = vadd.f32 %v343, %v433
    %v440 = vadd.f32 %v344, %v434
    %v441 = vadd.f32 %v345, %v435
    %v442 = vadd.f32 %v346, %v436
    %v443 = vadd.f32 %v347, %v437
    %v444 = vrsqrt.pop %v438
    %v445 = vmul.f32 %v438, %v444
    %vm446 = vcmp.eq.f32.partialorder %v438, inf
    %v447 = vsel %vm446, %v438, %v445
    %vm448 = vcmp.eq.f32.partialorder %v438, 0.0
    %v449 = vand.u32 %v438, 2147483648
    %v450 = vsel %vm448, %v449, %v447
    %v451 = vrsqrt.pop %v439
    %v452 = vmul.f32 %v439, %v451
    %vm453 = vcmp.eq.f32.partialorder %v439, inf
    %v454 = vsel %vm453, %v439, %v452
    %vm455 = vcmp.eq.f32.partialorder %v439, 0.0
    %v456 = vand.u32 %v439, 2147483648
    %v457 = vsel %vm455, %v456, %v454
    %v458 = vrsqrt.pop %v440
    %v459 = vmul.f32 %v440, %v458
    %vm460 = vcmp.eq.f32.partialorder %v440, inf
    %v461 = vsel %vm460, %v440, %v459
    %vm462 = vcmp.eq.f32.partialorder %v440, 0.0
    %v463 = vand.u32 %v440, 2147483648
    %v464 = vsel %vm462, %v463, %v461
    %v465 = vrsqrt.pop %v441
    %v466 = vmul.f32 %v441, %v465
    %vm467 = vcmp.eq.f32.partialorder %v441, inf
    %v468 = vsel %vm467, %v441, %v466
    %vm469 = vcmp.eq.f32.partialorder %v441, 0.0
    %v470 = vand.u32 %v441, 2147483648
    %v471 = vsel %vm469, %v470, %v468
    %v472 = vrsqrt.pop %v442
    %v473 = vmul.f32 %v442, %v472
    %vm474 = vcmp.eq.f32.partialorder %v442, inf
    %v475 = vsel %vm474, %v442, %v473
    %vm476 = vcmp.eq.f32.partialorder %v442, 0.0
    %v477 = vand.u32 %v442, 2147483648
    %v478 = vsel %vm476, %v477, %v475
    %v479 = vrsqrt.pop %v443
    %v480 = vmul.f32 %v443, %v479
    %vm481 = vcmp.eq.f32.partialorder %v443, inf
    %v482 = vsel %vm481, %v443, %v480
    %vm483 = vcmp.eq.f32.partialorder %v443, 0.0
    %v484 = vand.u32 %v443, 2147483648
    %v485 = vsel %vm483, %v484, %v482
    %v486 = vadd.f32 %v248, %v450
    %v487 = vadd.f32 %v249, %v457
    %v488 = vadd.f32 %v250, %v464
    %v489 = vadd.f32 %v251, %v471
    %v490 = vadd.f32 %v252, %v478
    %v491 = vadd.f32 %v253, %v485
    %s492 = scalar_lea.vmem %s0, 16
    %v493 = vld [vmem:[%s492] sm:$0x3f]
    %s494 = scalar_lea.vmem %s0, 144
    %v495 = vld [vmem:[%s494] sm:$0x3f]
    %v497 = vcombine.high %v493, %v493
    %v499 = vunpack.c.l.s4 1966171168
    %v500 = vunpack.c.0.s8 %v499
    %v501 = vlaneseq
    %v502 = vshrl.u32 %v501, 7
    %v503 = vsub.s32 %v500, %v502
    %v504 = vrot.slane %v493, %v503
    %v506 = vunpack.c.l.s4 1966171168
    %v507 = vunpack.c.0.s8 %v506
    %v508 = vlaneseq
    %v509 = vshrl.u32 %v508, 7
    %v510 = vsub.s32 %v507, %v509
    %v511 = vrot.slane %v497, %v510
    %v512 = vcombine.high %v504, %v504
    %v513 = vcombine.high %v511, %v511
    %v515 = vunpack.c.l.s4 1966171168
    %v516 = vunpack.c.0.s8 %v515
    %v517 = vlaneseq
    %v518 = vshrl.u32 %v517, 7
    %v519 = vsub.s32 %v516, %v518
    %v520 = vrot.slane %v504, %v519
    %v522 = vunpack.c.l.s4 1966171168
    %v523 = vunpack.c.0.s8 %v522
    %v524 = vlaneseq
    %v525 = vshrl.u32 %v524, 7
    %v526 = vsub.s32 %v523, %v525
    %v527 = vrot.slane %v511, %v526
    %v529 = vunpack.c.l.s4 1966171168
    %v530 = vunpack.c.0.s8 %v529
    %v531 = vlaneseq
    %v532 = vshrl.u32 %v531, 7
    %v533 = vsub.s32 %v530, %v532
    %v534 = vrot.slane %v512, %v533
    %v536 = vunpack.c.l.s4 1966171168
    %v537 = vunpack.c.0.s8 %v536
    %v538 = vlaneseq
    %v539 = vshrl.u32 %v538, 7
    %v540 = vsub.s32 %v537, %v539
    %v541 = vrot.slane %v513, %v540
    %v542 = vcombine.high %v520, %v520
    %v543 = vcombine.high %v534, %v534
    %v544 = vlaneseq
    %v545 = vshrl.u32 %v544, 7
    %v546 = vsub.s32 0, %v545
    %v547 = vrot.slane %v520, %v546
    %v548 = vlaneseq
    %v549 = vshrl.u32 %v548, 7
    %v550 = vsub.s32 0, %v549
    %v551 = vrot.slane %v534, %v550
    %v552 = vlaneseq
    %v553 = vshrl.u32 %v552, 7
    %v554 = vsub.s32 0, %v553
    %v555 = vrot.slane %v542, %v554
    %v556 = vlaneseq
    %v557 = vshrl.u32 %v556, 7
    %v558 = vsub.s32 0, %v557
    %v559 = vrot.slane %v543, %v558
    %v560 = vlaneseq
    %v561 = vshrl.u32 %v560, 7
    %v562 = vsub.s32 0, %v561
    %v563 = vrot.slane %v527, %v562
    %v564 = vlaneseq
    %v565 = vshrl.u32 %v564, 7
    %v566 = vsub.s32 0, %v565
    %v567 = vrot.slane %v541, %v566
    %v574 = vsub.f32 %v547, %v493
    %v575 = vsub.f32 %v551, %v493
    %v576 = vsub.f32 %v555, %v493
    %v577 = vsub.f32 %v559, %v493
    %v578 = vsub.f32 %v563, %v493
    %v579 = vsub.f32 %v567, %v493
    %v580 = vmul.f32 %v574, %v574
    %v581 = vmul.f32 %v575, %v575
    %v582 = vmul.f32 %v576, %v576
    %v583 = vmul.f32 %v577, %v577
    %v584 = vmul.f32 %v578, %v578
    %v585 = vmul.f32 %v579, %v579
    %v587 = vcombine.high %v495, %v495
    %v589 = vunpack.c.l.s4 1966171168
    %v590 = vunpack.c.0.s8 %v589
    %v591 = vlaneseq
    %v592 = vshrl.u32 %v591, 7
    %v593 = vsub.s32 %v590, %v592
    %v594 = vrot.slane %v495, %v593
    %v596 = vunpack.c.l.s4 1966171168
    %v597 = vunpack.c.0.s8 %v596
    %v598 = vlaneseq
    %v599 = vshrl.u32 %v598, 7
    %v600 = vsub.s32 %v597, %v599
    %v601 = vrot.slane %v587, %v600
    %v602 = vcombine.high %v594, %v594
    %v603 = vcombine.high %v601, %v601
    %v605 = vunpack.c.l.s4 1966171168
    %v606 = vunpack.c.0.s8 %v605
    %v607 = vlaneseq
    %v608 = vshrl.u32 %v607, 7
    %v609 = vsub.s32 %v606, %v608
    %v610 = vrot.slane %v594, %v609
    %v612 = vunpack.c.l.s4 1966171168
    %v613 = vunpack.c.0.s8 %v612
    %v614 = vlaneseq
    %v615 = vshrl.u32 %v614, 7
    %v616 = vsub.s32 %v613, %v615
    %v617 = vrot.slane %v601, %v616
    %v619 = vunpack.c.l.s4 1966171168
    %v620 = vunpack.c.0.s8 %v619
    %v621 = vlaneseq
    %v622 = vshrl.u32 %v621, 7
    %v623 = vsub.s32 %v620, %v622
    %v624 = vrot.slane %v602, %v623
    %v626 = vunpack.c.l.s4 1966171168
    %v627 = vunpack.c.0.s8 %v626
    %v628 = vlaneseq
    %v629 = vshrl.u32 %v628, 7
    %v630 = vsub.s32 %v627, %v629
    %v631 = vrot.slane %v603, %v630
    %v632 = vcombine.high %v610, %v610
    %v633 = vcombine.high %v624, %v624
    %v634 = vlaneseq
    %v635 = vshrl.u32 %v634, 7
    %v636 = vsub.s32 0, %v635
    %v637 = vrot.slane %v610, %v636
    %v638 = vlaneseq
    %v639 = vshrl.u32 %v638, 7
    %v640 = vsub.s32 0, %v639
    %v641 = vrot.slane %v624, %v640
    %v642 = vlaneseq
    %v643 = vshrl.u32 %v642, 7
    %v644 = vsub.s32 0, %v643
    %v645 = vrot.slane %v632, %v644
    %v646 = vlaneseq
    %v647 = vshrl.u32 %v646, 7
    %v648 = vsub.s32 0, %v647
    %v649 = vrot.slane %v633, %v648
    %v650 = vlaneseq
    %v651 = vshrl.u32 %v650, 7
    %v652 = vsub.s32 0, %v651
    %v653 = vrot.slane %v617, %v652
    %v654 = vlaneseq
    %v655 = vshrl.u32 %v654, 7
    %v656 = vsub.s32 0, %v655
    %v657 = vrot.slane %v631, %v656
    %v664 = vsub.f32 %v637, %v495
    %v665 = vsub.f32 %v641, %v495
    %v666 = vsub.f32 %v645, %v495
    %v667 = vsub.f32 %v649, %v495
    %v668 = vsub.f32 %v653, %v495
    %v669 = vsub.f32 %v657, %v495
    %v670 = vmul.f32 %v664, %v664
    %v671 = vmul.f32 %v665, %v665
    %v672 = vmul.f32 %v666, %v666
    %v673 = vmul.f32 %v667, %v667
    %v674 = vmul.f32 %v668, %v668
    %v675 = vmul.f32 %v669, %v669
    %v676 = vadd.f32 %v580, %v670
    %v677 = vadd.f32 %v581, %v671
    %v678 = vadd.f32 %v582, %v672
    %v679 = vadd.f32 %v583, %v673
    %v680 = vadd.f32 %v584, %v674
    %v681 = vadd.f32 %v585, %v675
    %v682 = vrsqrt.pop %v676
    %v683 = vmul.f32 %v676, %v682
    %vm684 = vcmp.eq.f32.partialorder %v676, inf
    %v685 = vsel %vm684, %v676, %v683
    %vm686 = vcmp.eq.f32.partialorder %v676, 0.0
    %v687 = vand.u32 %v676, 2147483648
    %v688 = vsel %vm686, %v687, %v685
    %v689 = vrsqrt.pop %v677
    %v690 = vmul.f32 %v677, %v689
    %vm691 = vcmp.eq.f32.partialorder %v677, inf
    %v692 = vsel %vm691, %v677, %v690
    %vm693 = vcmp.eq.f32.partialorder %v677, 0.0
    %v694 = vand.u32 %v677, 2147483648
    %v695 = vsel %vm693, %v694, %v692
    %v696 = vrsqrt.pop %v678
    %v697 = vmul.f32 %v678, %v696
    %vm698 = vcmp.eq.f32.partialorder %v678, inf
    %v699 = vsel %vm698, %v678, %v697
    %vm700 = vcmp.eq.f32.partialorder %v678, 0.0
    %v701 = vand.u32 %v678, 2147483648
    %v702 = vsel %vm700, %v701, %v699
    %v703 = vrsqrt.pop %v679
    %v704 = vmul.f32 %v679, %v703
    %vm705 = vcmp.eq.f32.partialorder %v679, inf
    %v706 = vsel %vm705, %v679, %v704
    %vm707 = vcmp.eq.f32.partialorder %v679, 0.0
    %v708 = vand.u32 %v679, 2147483648
    %v709 = vsel %vm707, %v708, %v706
    %v710 = vrsqrt.pop %v680
    %v711 = vmul.f32 %v680, %v710
    %vm712 = vcmp.eq.f32.partialorder %v680, inf
    %v713 = vsel %vm712, %v680, %v711
    %vm714 = vcmp.eq.f32.partialorder %v680, 0.0
    %v715 = vand.u32 %v680, 2147483648
    %v716 = vsel %vm714, %v715, %v713
    %v717 = vrsqrt.pop %v681
    %v718 = vmul.f32 %v681, %v717
    %vm719 = vcmp.eq.f32.partialorder %v681, inf
    %v720 = vsel %vm719, %v681, %v718
    %vm721 = vcmp.eq.f32.partialorder %v681, 0.0
    %v722 = vand.u32 %v681, 2147483648
    %v723 = vsel %vm721, %v722, %v720
    %v724 = vadd.f32 %v486, %v688
    %v725 = vadd.f32 %v487, %v695
    %v726 = vadd.f32 %v488, %v702
    %v727 = vadd.f32 %v489, %v709
    %v728 = vadd.f32 %v490, %v716
    %v729 = vadd.f32 %v491, %v723
    %s730 = scalar_lea.vmem %s0, 24
    %v731 = vld [vmem:[%s730] sm:$0x3f]
    %s732 = scalar_lea.vmem %s0, 152
    %v733 = vld [vmem:[%s732] sm:$0x3f]
    %v735 = vcombine.high %v731, %v731
    %v737 = vunpack.c.l.s4 1966171168
    %v738 = vunpack.c.0.s8 %v737
    %v739 = vlaneseq
    %v740 = vshrl.u32 %v739, 7
    %v741 = vsub.s32 %v738, %v740
    %v742 = vrot.slane %v731, %v741
    %v744 = vunpack.c.l.s4 1966171168
    %v745 = vunpack.c.0.s8 %v744
    %v746 = vlaneseq
    %v747 = vshrl.u32 %v746, 7
    %v748 = vsub.s32 %v745, %v747
    %v749 = vrot.slane %v735, %v748
    %v750 = vcombine.high %v742, %v742
    %v751 = vcombine.high %v749, %v749
    %v753 = vunpack.c.l.s4 1966171168
    %v754 = vunpack.c.0.s8 %v753
    %v755 = vlaneseq
    %v756 = vshrl.u32 %v755, 7
    %v757 = vsub.s32 %v754, %v756
    %v758 = vrot.slane %v742, %v757
    %v760 = vunpack.c.l.s4 1966171168
    %v761 = vunpack.c.0.s8 %v760
    %v762 = vlaneseq
    %v763 = vshrl.u32 %v762, 7
    %v764 = vsub.s32 %v761, %v763
    %v765 = vrot.slane %v749, %v764
    %v767 = vunpack.c.l.s4 1966171168
    %v768 = vunpack.c.0.s8 %v767
    %v769 = vlaneseq
    %v770 = vshrl.u32 %v769, 7
    %v771 = vsub.s32 %v768, %v770
    %v772 = vrot.slane %v750, %v771
    %v774 = vunpack.c.l.s4 1966171168
    %v775 = vunpack.c.0.s8 %v774
    %v776 = vlaneseq
    %v777 = vshrl.u32 %v776, 7
    %v778 = vsub.s32 %v775, %v777
    %v779 = vrot.slane %v751, %v778
    %v780 = vcombine.high %v758, %v758
    %v781 = vcombine.high %v772, %v772
    %v782 = vlaneseq
    %v783 = vshrl.u32 %v782, 7
    %v784 = vsub.s32 0, %v783
    %v785 = vrot.slane %v758, %v784
    %v786 = vlaneseq
    %v787 = vshrl.u32 %v786, 7
    %v788 = vsub.s32 0, %v787
    %v789 = vrot.slane %v772, %v788
    %v790 = vlaneseq
    %v791 = vshrl.u32 %v790, 7
    %v792 = vsub.s32 0, %v791
    %v793 = vrot.slane %v780, %v792
    %v794 = vlaneseq
    %v795 = vshrl.u32 %v794, 7
    %v796 = vsub.s32 0, %v795
    %v797 = vrot.slane %v781, %v796
    %v798 = vlaneseq
    %v799 = vshrl.u32 %v798, 7
    %v800 = vsub.s32 0, %v799
    %v801 = vrot.slane %v765, %v800
    %v802 = vlaneseq
    %v803 = vshrl.u32 %v802, 7
    %v804 = vsub.s32 0, %v803
    %v805 = vrot.slane %v779, %v804
    %v812 = vsub.f32 %v785, %v731
    %v813 = vsub.f32 %v789, %v731
    %v814 = vsub.f32 %v793, %v731
    %v815 = vsub.f32 %v797, %v731
    %v816 = vsub.f32 %v801, %v731
    %v817 = vsub.f32 %v805, %v731
    %v818 = vmul.f32 %v812, %v812
    %v819 = vmul.f32 %v813, %v813
    %v820 = vmul.f32 %v814, %v814
    %v821 = vmul.f32 %v815, %v815
    %v822 = vmul.f32 %v816, %v816
    %v823 = vmul.f32 %v817, %v817
    %v825 = vcombine.high %v733, %v733
    %v827 = vunpack.c.l.s4 1966171168
    %v828 = vunpack.c.0.s8 %v827
    %v829 = vlaneseq
    %v830 = vshrl.u32 %v829, 7
    %v831 = vsub.s32 %v828, %v830
    %v832 = vrot.slane %v733, %v831
    %v834 = vunpack.c.l.s4 1966171168
    %v835 = vunpack.c.0.s8 %v834
    %v836 = vlaneseq
    %v837 = vshrl.u32 %v836, 7
    %v838 = vsub.s32 %v835, %v837
    %v839 = vrot.slane %v825, %v838
    %v840 = vcombine.high %v832, %v832
    %v841 = vcombine.high %v839, %v839
    %v843 = vunpack.c.l.s4 1966171168
    %v844 = vunpack.c.0.s8 %v843
    %v845 = vlaneseq
    %v846 = vshrl.u32 %v845, 7
    %v847 = vsub.s32 %v844, %v846
    %v848 = vrot.slane %v832, %v847
    %v850 = vunpack.c.l.s4 1966171168
    %v851 = vunpack.c.0.s8 %v850
    %v852 = vlaneseq
    %v853 = vshrl.u32 %v852, 7
    %v854 = vsub.s32 %v851, %v853
    %v855 = vrot.slane %v839, %v854
    %v857 = vunpack.c.l.s4 1966171168
    %v858 = vunpack.c.0.s8 %v857
    %v859 = vlaneseq
    %v860 = vshrl.u32 %v859, 7
    %v861 = vsub.s32 %v858, %v860
    %v862 = vrot.slane %v840, %v861
    %v864 = vunpack.c.l.s4 1966171168
    %v865 = vunpack.c.0.s8 %v864
    %v866 = vlaneseq
    %v867 = vshrl.u32 %v866, 7
    %v868 = vsub.s32 %v865, %v867
    %v869 = vrot.slane %v841, %v868
    %v870 = vcombine.high %v848, %v848
    %v871 = vcombine.high %v862, %v862
    %v872 = vlaneseq
    %v873 = vshrl.u32 %v872, 7
    %v874 = vsub.s32 0, %v873
    %v875 = vrot.slane %v848, %v874
    %v876 = vlaneseq
    %v877 = vshrl.u32 %v876, 7
    %v878 = vsub.s32 0, %v877
    %v879 = vrot.slane %v862, %v878
    %v880 = vlaneseq
    %v881 = vshrl.u32 %v880, 7
    %v882 = vsub.s32 0, %v881
    %v883 = vrot.slane %v870, %v882
    %v884 = vlaneseq
    %v885 = vshrl.u32 %v884, 7
    %v886 = vsub.s32 0, %v885
    %v887 = vrot.slane %v871, %v886
    %v888 = vlaneseq
    %v889 = vshrl.u32 %v888, 7
    %v890 = vsub.s32 0, %v889
    %v891 = vrot.slane %v855, %v890
    %v892 = vlaneseq
    %v893 = vshrl.u32 %v892, 7
    %v894 = vsub.s32 0, %v893
    %v895 = vrot.slane %v869, %v894
    %v902 = vsub.f32 %v875, %v733
    %v903 = vsub.f32 %v879, %v733
    %v904 = vsub.f32 %v883, %v733
    %v905 = vsub.f32 %v887, %v733
    %v906 = vsub.f32 %v891, %v733
    %v907 = vsub.f32 %v895, %v733
    %v908 = vmul.f32 %v902, %v902
    %v909 = vmul.f32 %v903, %v903
    %v910 = vmul.f32 %v904, %v904
    %v911 = vmul.f32 %v905, %v905
    %v912 = vmul.f32 %v906, %v906
    %v913 = vmul.f32 %v907, %v907
    %v914 = vadd.f32 %v818, %v908
    %v915 = vadd.f32 %v819, %v909
    %v916 = vadd.f32 %v820, %v910
    %v917 = vadd.f32 %v821, %v911
    %v918 = vadd.f32 %v822, %v912
    %v919 = vadd.f32 %v823, %v913
    %v920 = vrsqrt.pop %v914
    %v921 = vmul.f32 %v914, %v920
    %vm922 = vcmp.eq.f32.partialorder %v914, inf
    %v923 = vsel %vm922, %v914, %v921
    %vm924 = vcmp.eq.f32.partialorder %v914, 0.0
    %v925 = vand.u32 %v914, 2147483648
    %v926 = vsel %vm924, %v925, %v923
    %v927 = vrsqrt.pop %v915
    %v928 = vmul.f32 %v915, %v927
    %vm929 = vcmp.eq.f32.partialorder %v915, inf
    %v930 = vsel %vm929, %v915, %v928
    %vm931 = vcmp.eq.f32.partialorder %v915, 0.0
    %v932 = vand.u32 %v915, 2147483648
    %v933 = vsel %vm931, %v932, %v930
    %v934 = vrsqrt.pop %v916
    %v935 = vmul.f32 %v916, %v934
    %vm936 = vcmp.eq.f32.partialorder %v916, inf
    %v937 = vsel %vm936, %v916, %v935
    %vm938 = vcmp.eq.f32.partialorder %v916, 0.0
    %v939 = vand.u32 %v916, 2147483648
    %v940 = vsel %vm938, %v939, %v937
    %v941 = vrsqrt.pop %v917
    %v942 = vmul.f32 %v917, %v941
    %vm943 = vcmp.eq.f32.partialorder %v917, inf
    %v944 = vsel %vm943, %v917, %v942
    %vm945 = vcmp.eq.f32.partialorder %v917, 0.0
    %v946 = vand.u32 %v917, 2147483648
    %v947 = vsel %vm945, %v946, %v944
    %v948 = vrsqrt.pop %v918
    %v949 = vmul.f32 %v918, %v948
    %vm950 = vcmp.eq.f32.partialorder %v918, inf
    %v951 = vsel %vm950, %v918, %v949
    %vm952 = vcmp.eq.f32.partialorder %v918, 0.0
    %v953 = vand.u32 %v918, 2147483648
    %v954 = vsel %vm952, %v953, %v951
    %v955 = vrsqrt.pop %v919
    %v956 = vmul.f32 %v919, %v955
    %vm957 = vcmp.eq.f32.partialorder %v919, inf
    %v958 = vsel %vm957, %v919, %v956
    %vm959 = vcmp.eq.f32.partialorder %v919, 0.0
    %v960 = vand.u32 %v919, 2147483648
    %v961 = vsel %vm959, %v960, %v958
    %v962 = vadd.f32 %v724, %v926
    %v963 = vadd.f32 %v725, %v933
    %v964 = vadd.f32 %v726, %v940
    %v965 = vadd.f32 %v727, %v947
    %v966 = vadd.f32 %v728, %v954
    %v967 = vadd.f32 %v729, %v961
    %s968 = scalar_lea.vmem %s0, 32
    %v969 = vld [vmem:[%s968] sm:$0x3f]
    %s970 = scalar_lea.vmem %s0, 160
    %v971 = vld [vmem:[%s970] sm:$0x3f]
    %v973 = vcombine.high %v969, %v969
    %v975 = vunpack.c.l.s4 1966171168
    %v976 = vunpack.c.0.s8 %v975
    %v977 = vlaneseq
    %v978 = vshrl.u32 %v977, 7
    %v979 = vsub.s32 %v976, %v978
    %v980 = vrot.slane %v969, %v979
    %v982 = vunpack.c.l.s4 1966171168
    %v983 = vunpack.c.0.s8 %v982
    %v984 = vlaneseq
    %v985 = vshrl.u32 %v984, 7
    %v986 = vsub.s32 %v983, %v985
    %v987 = vrot.slane %v973, %v986
    %v988 = vcombine.high %v980, %v980
    %v989 = vcombine.high %v987, %v987
    %v991 = vunpack.c.l.s4 1966171168
    %v992 = vunpack.c.0.s8 %v991
    %v993 = vlaneseq
    %v994 = vshrl.u32 %v993, 7
    %v995 = vsub.s32 %v992, %v994
    %v996 = vrot.slane %v980, %v995
    %v998 = vunpack.c.l.s4 1966171168
    %v999 = vunpack.c.0.s8 %v998
    %v1000 = vlaneseq
    %v1001 = vshrl.u32 %v1000, 7
    %v1002 = vsub.s32 %v999, %v1001
    %v1003 = vrot.slane %v987, %v1002
    %v1005 = vunpack.c.l.s4 1966171168
    %v1006 = vunpack.c.0.s8 %v1005
    %v1007 = vlaneseq
    %v1008 = vshrl.u32 %v1007, 7
    %v1009 = vsub.s32 %v1006, %v1008
    %v1010 = vrot.slane %v988, %v1009
    %v1012 = vunpack.c.l.s4 1966171168
    %v1013 = vunpack.c.0.s8 %v1012
    %v1014 = vlaneseq
    %v1015 = vshrl.u32 %v1014, 7
    %v1016 = vsub.s32 %v1013, %v1015
    %v1017 = vrot.slane %v989, %v1016
    %v1018 = vcombine.high %v996, %v996
    %v1019 = vcombine.high %v1010, %v1010
    %v1020 = vlaneseq
    %v1021 = vshrl.u32 %v1020, 7
    %v1022 = vsub.s32 0, %v1021
    %v1023 = vrot.slane %v996, %v1022
    %v1024 = vlaneseq
    %v1025 = vshrl.u32 %v1024, 7
    %v1026 = vsub.s32 0, %v1025
    %v1027 = vrot.slane %v1010, %v1026
    %v1028 = vlaneseq
    %v1029 = vshrl.u32 %v1028, 7
    %v1030 = vsub.s32 0, %v1029
    %v1031 = vrot.slane %v1018, %v1030
    %v1032 = vlaneseq
    %v1033 = vshrl.u32 %v1032, 7
    %v1034 = vsub.s32 0, %v1033
    %v1035 = vrot.slane %v1019, %v1034
    %v1036 = vlaneseq
    %v1037 = vshrl.u32 %v1036, 7
    %v1038 = vsub.s32 0, %v1037
    %v1039 = vrot.slane %v1003, %v1038
    %v1040 = vlaneseq
    %v1041 = vshrl.u32 %v1040, 7
    %v1042 = vsub.s32 0, %v1041
    %v1043 = vrot.slane %v1017, %v1042
    %v1050 = vsub.f32 %v1023, %v969
    %v1051 = vsub.f32 %v1027, %v969
    %v1052 = vsub.f32 %v1031, %v969
    %v1053 = vsub.f32 %v1035, %v969
    %v1054 = vsub.f32 %v1039, %v969
    %v1055 = vsub.f32 %v1043, %v969
    %v1056 = vmul.f32 %v1050, %v1050
    %v1057 = vmul.f32 %v1051, %v1051
    %v1058 = vmul.f32 %v1052, %v1052
    %v1059 = vmul.f32 %v1053, %v1053
    %v1060 = vmul.f32 %v1054, %v1054
    %v1061 = vmul.f32 %v1055, %v1055
    %v1063 = vcombine.high %v971, %v971
    %v1065 = vunpack.c.l.s4 1966171168
    %v1066 = vunpack.c.0.s8 %v1065
    %v1067 = vlaneseq
    %v1068 = vshrl.u32 %v1067, 7
    %v1069 = vsub.s32 %v1066, %v1068
    %v1070 = vrot.slane %v971, %v1069
    %v1072 = vunpack.c.l.s4 1966171168
    %v1073 = vunpack.c.0.s8 %v1072
    %v1074 = vlaneseq
    %v1075 = vshrl.u32 %v1074, 7
    %v1076 = vsub.s32 %v1073, %v1075
    %v1077 = vrot.slane %v1063, %v1076
    %v1078 = vcombine.high %v1070, %v1070
    %v1079 = vcombine.high %v1077, %v1077
    %v1081 = vunpack.c.l.s4 1966171168
    %v1082 = vunpack.c.0.s8 %v1081
    %v1083 = vlaneseq
    %v1084 = vshrl.u32 %v1083, 7
    %v1085 = vsub.s32 %v1082, %v1084
    %v1086 = vrot.slane %v1070, %v1085
    %v1088 = vunpack.c.l.s4 1966171168
    %v1089 = vunpack.c.0.s8 %v1088
    %v1090 = vlaneseq
    %v1091 = vshrl.u32 %v1090, 7
    %v1092 = vsub.s32 %v1089, %v1091
    %v1093 = vrot.slane %v1077, %v1092
    %v1095 = vunpack.c.l.s4 1966171168
    %v1096 = vunpack.c.0.s8 %v1095
    %v1097 = vlaneseq
    %v1098 = vshrl.u32 %v1097, 7
    %v1099 = vsub.s32 %v1096, %v1098
    %v1100 = vrot.slane %v1078, %v1099
    %v1102 = vunpack.c.l.s4 1966171168
    %v1103 = vunpack.c.0.s8 %v1102
    %v1104 = vlaneseq
    %v1105 = vshrl.u32 %v1104, 7
    %v1106 = vsub.s32 %v1103, %v1105
    %v1107 = vrot.slane %v1079, %v1106
    %v1108 = vcombine.high %v1086, %v1086
    %v1109 = vcombine.high %v1100, %v1100
    %v1110 = vlaneseq
    %v1111 = vshrl.u32 %v1110, 7
    %v1112 = vsub.s32 0, %v1111
    %v1113 = vrot.slane %v1086, %v1112
    %v1114 = vlaneseq
    %v1115 = vshrl.u32 %v1114, 7
    %v1116 = vsub.s32 0, %v1115
    %v1117 = vrot.slane %v1100, %v1116
    %v1118 = vlaneseq
    %v1119 = vshrl.u32 %v1118, 7
    %v1120 = vsub.s32 0, %v1119
    %v1121 = vrot.slane %v1108, %v1120
    %v1122 = vlaneseq
    %v1123 = vshrl.u32 %v1122, 7
    %v1124 = vsub.s32 0, %v1123
    %v1125 = vrot.slane %v1109, %v1124
    %v1126 = vlaneseq
    %v1127 = vshrl.u32 %v1126, 7
    %v1128 = vsub.s32 0, %v1127
    %v1129 = vrot.slane %v1093, %v1128
    %v1130 = vlaneseq
    %v1131 = vshrl.u32 %v1130, 7
    %v1132 = vsub.s32 0, %v1131
    %v1133 = vrot.slane %v1107, %v1132
    %v1140 = vsub.f32 %v1113, %v971
    %v1141 = vsub.f32 %v1117, %v971
    %v1142 = vsub.f32 %v1121, %v971
    %v1143 = vsub.f32 %v1125, %v971
    %v1144 = vsub.f32 %v1129, %v971
    %v1145 = vsub.f32 %v1133, %v971
    %v1146 = vmul.f32 %v1140, %v1140
    %v1147 = vmul.f32 %v1141, %v1141
    %v1148 = vmul.f32 %v1142, %v1142
    %v1149 = vmul.f32 %v1143, %v1143
    %v1150 = vmul.f32 %v1144, %v1144
    %v1151 = vmul.f32 %v1145, %v1145
    %v1152 = vadd.f32 %v1056, %v1146
    %v1153 = vadd.f32 %v1057, %v1147
    %v1154 = vadd.f32 %v1058, %v1148
    %v1155 = vadd.f32 %v1059, %v1149
    %v1156 = vadd.f32 %v1060, %v1150
    %v1157 = vadd.f32 %v1061, %v1151
    %v1158 = vrsqrt.pop %v1152
    %v1159 = vmul.f32 %v1152, %v1158
    %vm1160 = vcmp.eq.f32.partialorder %v1152, inf
    %v1161 = vsel %vm1160, %v1152, %v1159
    %vm1162 = vcmp.eq.f32.partialorder %v1152, 0.0
    %v1163 = vand.u32 %v1152, 2147483648
    %v1164 = vsel %vm1162, %v1163, %v1161
    %v1165 = vrsqrt.pop %v1153
    %v1166 = vmul.f32 %v1153, %v1165
    %vm1167 = vcmp.eq.f32.partialorder %v1153, inf
    %v1168 = vsel %vm1167, %v1153, %v1166
    %vm1169 = vcmp.eq.f32.partialorder %v1153, 0.0
    %v1170 = vand.u32 %v1153, 2147483648
    %v1171 = vsel %vm1169, %v1170, %v1168
    %v1172 = vrsqrt.pop %v1154
    %v1173 = vmul.f32 %v1154, %v1172
    %vm1174 = vcmp.eq.f32.partialorder %v1154, inf
    %v1175 = vsel %vm1174, %v1154, %v1173
    %vm1176 = vcmp.eq.f32.partialorder %v1154, 0.0
    %v1177 = vand.u32 %v1154, 2147483648
    %v1178 = vsel %vm1176, %v1177, %v1175
    %v1179 = vrsqrt.pop %v1155
    %v1180 = vmul.f32 %v1155, %v1179
    %vm1181 = vcmp.eq.f32.partialorder %v1155, inf
    %v1182 = vsel %vm1181, %v1155, %v1180
    %vm1183 = vcmp.eq.f32.partialorder %v1155, 0.0
    %v1184 = vand.u32 %v1155, 2147483648
    %v1185 = vsel %vm1183, %v1184, %v1182
    %v1186 = vrsqrt.pop %v1156
    %v1187 = vmul.f32 %v1156, %v1186
    %vm1188 = vcmp.eq.f32.partialorder %v1156, inf
    %v1189 = vsel %vm1188, %v1156, %v1187
    %vm1190 = vcmp.eq.f32.partialorder %v1156, 0.0
    %v1191 = vand.u32 %v1156, 2147483648
    %v1192 = vsel %vm1190, %v1191, %v1189
    %v1193 = vrsqrt.pop %v1157
    %v1194 = vmul.f32 %v1157, %v1193
    %vm1195 = vcmp.eq.f32.partialorder %v1157, inf
    %v1196 = vsel %vm1195, %v1157, %v1194
    %vm1197 = vcmp.eq.f32.partialorder %v1157, 0.0
    %v1198 = vand.u32 %v1157, 2147483648
    %v1199 = vsel %vm1197, %v1198, %v1196
    %v1200 = vadd.f32 %v962, %v1164
    %v1201 = vadd.f32 %v963, %v1171
    %v1202 = vadd.f32 %v964, %v1178
    %v1203 = vadd.f32 %v965, %v1185
    %v1204 = vadd.f32 %v966, %v1192
    %v1205 = vadd.f32 %v967, %v1199
    %s1206 = scalar_lea.vmem %s0, 40
    %v1207 = vld [vmem:[%s1206] sm:$0x3f]
    %s1208 = scalar_lea.vmem %s0, 168
    %v1209 = vld [vmem:[%s1208] sm:$0x3f]
    %v1211 = vcombine.high %v1207, %v1207
    %v1213 = vunpack.c.l.s4 1966171168
    %v1214 = vunpack.c.0.s8 %v1213
    %v1215 = vlaneseq
    %v1216 = vshrl.u32 %v1215, 7
    %v1217 = vsub.s32 %v1214, %v1216
    %v1218 = vrot.slane %v1207, %v1217
    %v1220 = vunpack.c.l.s4 1966171168
    %v1221 = vunpack.c.0.s8 %v1220
    %v1222 = vlaneseq
    %v1223 = vshrl.u32 %v1222, 7
    %v1224 = vsub.s32 %v1221, %v1223
    %v1225 = vrot.slane %v1211, %v1224
    %v1226 = vcombine.high %v1218, %v1218
    %v1227 = vcombine.high %v1225, %v1225
    %v1229 = vunpack.c.l.s4 1966171168
    %v1230 = vunpack.c.0.s8 %v1229
    %v1231 = vlaneseq
    %v1232 = vshrl.u32 %v1231, 7
    %v1233 = vsub.s32 %v1230, %v1232
    %v1234 = vrot.slane %v1218, %v1233
    %v1236 = vunpack.c.l.s4 1966171168
    %v1237 = vunpack.c.0.s8 %v1236
    %v1238 = vlaneseq
    %v1239 = vshrl.u32 %v1238, 7
    %v1240 = vsub.s32 %v1237, %v1239
    %v1241 = vrot.slane %v1225, %v1240
    %v1243 = vunpack.c.l.s4 1966171168
    %v1244 = vunpack.c.0.s8 %v1243
    %v1245 = vlaneseq
    %v1246 = vshrl.u32 %v1245, 7
    %v1247 = vsub.s32 %v1244, %v1246
    %v1248 = vrot.slane %v1226, %v1247
    %v1250 = vunpack.c.l.s4 1966171168
    %v1251 = vunpack.c.0.s8 %v1250
    %v1252 = vlaneseq
    %v1253 = vshrl.u32 %v1252, 7
    %v1254 = vsub.s32 %v1251, %v1253
    %v1255 = vrot.slane %v1227, %v1254
    %v1256 = vcombine.high %v1234, %v1234
    %v1257 = vcombine.high %v1248, %v1248
    %v1258 = vlaneseq
    %v1259 = vshrl.u32 %v1258, 7
    %v1260 = vsub.s32 0, %v1259
    %v1261 = vrot.slane %v1234, %v1260
    %v1262 = vlaneseq
    %v1263 = vshrl.u32 %v1262, 7
    %v1264 = vsub.s32 0, %v1263
    %v1265 = vrot.slane %v1248, %v1264
    %v1266 = vlaneseq
    %v1267 = vshrl.u32 %v1266, 7
    %v1268 = vsub.s32 0, %v1267
    %v1269 = vrot.slane %v1256, %v1268
    %v1270 = vlaneseq
    %v1271 = vshrl.u32 %v1270, 7
    %v1272 = vsub.s32 0, %v1271
    %v1273 = vrot.slane %v1257, %v1272
    %v1274 = vlaneseq
    %v1275 = vshrl.u32 %v1274, 7
    %v1276 = vsub.s32 0, %v1275
    %v1277 = vrot.slane %v1241, %v1276
    %v1278 = vlaneseq
    %v1279 = vshrl.u32 %v1278, 7
    %v1280 = vsub.s32 0, %v1279
    %v1281 = vrot.slane %v1255, %v1280
    %v1288 = vsub.f32 %v1261, %v1207
    %v1289 = vsub.f32 %v1265, %v1207
    %v1290 = vsub.f32 %v1269, %v1207
    %v1291 = vsub.f32 %v1273, %v1207
    %v1292 = vsub.f32 %v1277, %v1207
    %v1293 = vsub.f32 %v1281, %v1207
    %v1294 = vmul.f32 %v1288, %v1288
    %v1295 = vmul.f32 %v1289, %v1289
    %v1296 = vmul.f32 %v1290, %v1290
    %v1297 = vmul.f32 %v1291, %v1291
    %v1298 = vmul.f32 %v1292, %v1292
    %v1299 = vmul.f32 %v1293, %v1293
    %v1301 = vcombine.high %v1209, %v1209
    %v1303 = vunpack.c.l.s4 1966171168
    %v1304 = vunpack.c.0.s8 %v1303
    %v1305 = vlaneseq
    %v1306 = vshrl.u32 %v1305, 7
    %v1307 = vsub.s32 %v1304, %v1306
    %v1308 = vrot.slane %v1209, %v1307
    %v1310 = vunpack.c.l.s4 1966171168
    %v1311 = vunpack.c.0.s8 %v1310
    %v1312 = vlaneseq
    %v1313 = vshrl.u32 %v1312, 7
    %v1314 = vsub.s32 %v1311, %v1313
    %v1315 = vrot.slane %v1301, %v1314
    %v1316 = vcombine.high %v1308, %v1308
    %v1317 = vcombine.high %v1315, %v1315
    %v1319 = vunpack.c.l.s4 1966171168
    %v1320 = vunpack.c.0.s8 %v1319
    %v1321 = vlaneseq
    %v1322 = vshrl.u32 %v1321, 7
    %v1323 = vsub.s32 %v1320, %v1322
    %v1324 = vrot.slane %v1308, %v1323
    %v1326 = vunpack.c.l.s4 1966171168
    %v1327 = vunpack.c.0.s8 %v1326
    %v1328 = vlaneseq
    %v1329 = vshrl.u32 %v1328, 7
    %v1330 = vsub.s32 %v1327, %v1329
    %v1331 = vrot.slane %v1315, %v1330
    %v1333 = vunpack.c.l.s4 1966171168
    %v1334 = vunpack.c.0.s8 %v1333
    %v1335 = vlaneseq
    %v1336 = vshrl.u32 %v1335, 7
    %v1337 = vsub.s32 %v1334, %v1336
    %v1338 = vrot.slane %v1316, %v1337
    %v1340 = vunpack.c.l.s4 1966171168
    %v1341 = vunpack.c.0.s8 %v1340
    %v1342 = vlaneseq
    %v1343 = vshrl.u32 %v1342, 7
    %v1344 = vsub.s32 %v1341, %v1343
    %v1345 = vrot.slane %v1317, %v1344
    %v1346 = vcombine.high %v1324, %v1324
    %v1347 = vcombine.high %v1338, %v1338
    %v1348 = vlaneseq
    %v1349 = vshrl.u32 %v1348, 7
    %v1350 = vsub.s32 0, %v1349
    %v1351 = vrot.slane %v1324, %v1350
    %v1352 = vlaneseq
    %v1353 = vshrl.u32 %v1352, 7
    %v1354 = vsub.s32 0, %v1353
    %v1355 = vrot.slane %v1338, %v1354
    %v1356 = vlaneseq
    %v1357 = vshrl.u32 %v1356, 7
    %v1358 = vsub.s32 0, %v1357
    %v1359 = vrot.slane %v1346, %v1358
    %v1360 = vlaneseq
    %v1361 = vshrl.u32 %v1360, 7
    %v1362 = vsub.s32 0, %v1361
    %v1363 = vrot.slane %v1347, %v1362
    %v1364 = vlaneseq
    %v1365 = vshrl.u32 %v1364, 7
    %v1366 = vsub.s32 0, %v1365
    %v1367 = vrot.slane %v1331, %v1366
    %v1368 = vlaneseq
    %v1369 = vshrl.u32 %v1368, 7
    %v1370 = vsub.s32 0, %v1369
    %v1371 = vrot.slane %v1345, %v1370
    %v1378 = vsub.f32 %v1351, %v1209
    %v1379 = vsub.f32 %v1355, %v1209
    %v1380 = vsub.f32 %v1359, %v1209
    %v1381 = vsub.f32 %v1363, %v1209
    %v1382 = vsub.f32 %v1367, %v1209
    %v1383 = vsub.f32 %v1371, %v1209
    %v1384 = vmul.f32 %v1378, %v1378
    %v1385 = vmul.f32 %v1379, %v1379
    %v1386 = vmul.f32 %v1380, %v1380
    %v1387 = vmul.f32 %v1381, %v1381
    %v1388 = vmul.f32 %v1382, %v1382
    %v1389 = vmul.f32 %v1383, %v1383
    %v1390 = vadd.f32 %v1294, %v1384
    %v1391 = vadd.f32 %v1295, %v1385
    %v1392 = vadd.f32 %v1296, %v1386
    %v1393 = vadd.f32 %v1297, %v1387
    %v1394 = vadd.f32 %v1298, %v1388
    %v1395 = vadd.f32 %v1299, %v1389
    %v1396 = vrsqrt.pop %v1390
    %v1397 = vmul.f32 %v1390, %v1396
    %vm1398 = vcmp.eq.f32.partialorder %v1390, inf
    %v1399 = vsel %vm1398, %v1390, %v1397
    %vm1400 = vcmp.eq.f32.partialorder %v1390, 0.0
    %v1401 = vand.u32 %v1390, 2147483648
    %v1402 = vsel %vm1400, %v1401, %v1399
    %v1403 = vrsqrt.pop %v1391
    %v1404 = vmul.f32 %v1391, %v1403
    %vm1405 = vcmp.eq.f32.partialorder %v1391, inf
    %v1406 = vsel %vm1405, %v1391, %v1404
    %vm1407 = vcmp.eq.f32.partialorder %v1391, 0.0
    %v1408 = vand.u32 %v1391, 2147483648
    %v1409 = vsel %vm1407, %v1408, %v1406
    %v1410 = vrsqrt.pop %v1392
    %v1411 = vmul.f32 %v1392, %v1410
    %vm1412 = vcmp.eq.f32.partialorder %v1392, inf
    %v1413 = vsel %vm1412, %v1392, %v1411
    %vm1414 = vcmp.eq.f32.partialorder %v1392, 0.0
    %v1415 = vand.u32 %v1392, 2147483648
    %v1416 = vsel %vm1414, %v1415, %v1413
    %v1417 = vrsqrt.pop %v1393
    %v1418 = vmul.f32 %v1393, %v1417
    %vm1419 = vcmp.eq.f32.partialorder %v1393, inf
    %v1420 = vsel %vm1419, %v1393, %v1418
    %vm1421 = vcmp.eq.f32.partialorder %v1393, 0.0
    %v1422 = vand.u32 %v1393, 2147483648
    %v1423 = vsel %vm1421, %v1422, %v1420
    %v1424 = vrsqrt.pop %v1394
    %v1425 = vmul.f32 %v1394, %v1424
    %vm1426 = vcmp.eq.f32.partialorder %v1394, inf
    %v1427 = vsel %vm1426, %v1394, %v1425
    %vm1428 = vcmp.eq.f32.partialorder %v1394, 0.0
    %v1429 = vand.u32 %v1394, 2147483648
    %v1430 = vsel %vm1428, %v1429, %v1427
    %v1431 = vrsqrt.pop %v1395
    %v1432 = vmul.f32 %v1395, %v1431
    %vm1433 = vcmp.eq.f32.partialorder %v1395, inf
    %v1434 = vsel %vm1433, %v1395, %v1432
    %vm1435 = vcmp.eq.f32.partialorder %v1395, 0.0
    %v1436 = vand.u32 %v1395, 2147483648
    %v1437 = vsel %vm1435, %v1436, %v1434
    %v1438 = vadd.f32 %v1200, %v1402
    %v1439 = vadd.f32 %v1201, %v1409
    %v1440 = vadd.f32 %v1202, %v1416
    %v1441 = vadd.f32 %v1203, %v1423
    %v1442 = vadd.f32 %v1204, %v1430
    %v1443 = vadd.f32 %v1205, %v1437
    %s1444 = scalar_lea.vmem %s0, 48
    %v1445 = vld [vmem:[%s1444] sm:$0x3f]
    %s1446 = scalar_lea.vmem %s0, 176
    %v1447 = vld [vmem:[%s1446] sm:$0x3f]
    %v1449 = vcombine.high %v1445, %v1445
    %v1451 = vunpack.c.l.s4 1966171168
    %v1452 = vunpack.c.0.s8 %v1451
    %v1453 = vlaneseq
    %v1454 = vshrl.u32 %v1453, 7
    %v1455 = vsub.s32 %v1452, %v1454
    %v1456 = vrot.slane %v1445, %v1455
    %v1458 = vunpack.c.l.s4 1966171168
    %v1459 = vunpack.c.0.s8 %v1458
    %v1460 = vlaneseq
    %v1461 = vshrl.u32 %v1460, 7
    %v1462 = vsub.s32 %v1459, %v1461
    %v1463 = vrot.slane %v1449, %v1462
    %v1464 = vcombine.high %v1456, %v1456
    %v1465 = vcombine.high %v1463, %v1463
    %v1467 = vunpack.c.l.s4 1966171168
    %v1468 = vunpack.c.0.s8 %v1467
    %v1469 = vlaneseq
    %v1470 = vshrl.u32 %v1469, 7
    %v1471 = vsub.s32 %v1468, %v1470
    %v1472 = vrot.slane %v1456, %v1471
    %v1474 = vunpack.c.l.s4 1966171168
    %v1475 = vunpack.c.0.s8 %v1474
    %v1476 = vlaneseq
    %v1477 = vshrl.u32 %v1476, 7
    %v1478 = vsub.s32 %v1475, %v1477
    %v1479 = vrot.slane %v1463, %v1478
    %v1481 = vunpack.c.l.s4 1966171168
    %v1482 = vunpack.c.0.s8 %v1481
    %v1483 = vlaneseq
    %v1484 = vshrl.u32 %v1483, 7
    %v1485 = vsub.s32 %v1482, %v1484
    %v1486 = vrot.slane %v1464, %v1485
    %v1488 = vunpack.c.l.s4 1966171168
    %v1489 = vunpack.c.0.s8 %v1488
    %v1490 = vlaneseq
    %v1491 = vshrl.u32 %v1490, 7
    %v1492 = vsub.s32 %v1489, %v1491
    %v1493 = vrot.slane %v1465, %v1492
    %v1494 = vcombine.high %v1472, %v1472
    %v1495 = vcombine.high %v1486, %v1486
    %v1496 = vlaneseq
    %v1497 = vshrl.u32 %v1496, 7
    %v1498 = vsub.s32 0, %v1497
    %v1499 = vrot.slane %v1472, %v1498
    %v1500 = vlaneseq
    %v1501 = vshrl.u32 %v1500, 7
    %v1502 = vsub.s32 0, %v1501
    %v1503 = vrot.slane %v1486, %v1502
    %v1504 = vlaneseq
    %v1505 = vshrl.u32 %v1504, 7
    %v1506 = vsub.s32 0, %v1505
    %v1507 = vrot.slane %v1494, %v1506
    %v1508 = vlaneseq
    %v1509 = vshrl.u32 %v1508, 7
    %v1510 = vsub.s32 0, %v1509
    %v1511 = vrot.slane %v1495, %v1510
    %v1512 = vlaneseq
    %v1513 = vshrl.u32 %v1512, 7
    %v1514 = vsub.s32 0, %v1513
    %v1515 = vrot.slane %v1479, %v1514
    %v1516 = vlaneseq
    %v1517 = vshrl.u32 %v1516, 7
    %v1518 = vsub.s32 0, %v1517
    %v1519 = vrot.slane %v1493, %v1518
    %v1526 = vsub.f32 %v1499, %v1445
    %v1527 = vsub.f32 %v1503, %v1445
    %v1528 = vsub.f32 %v1507, %v1445
    %v1529 = vsub.f32 %v1511, %v1445
    %v1530 = vsub.f32 %v1515, %v1445
    %v1531 = vsub.f32 %v1519, %v1445
    %v1532 = vmul.f32 %v1526, %v1526
    %v1533 = vmul.f32 %v1527, %v1527
    %v1534 = vmul.f32 %v1528, %v1528
    %v1535 = vmul.f32 %v1529, %v1529
    %v1536 = vmul.f32 %v1530, %v1530
    %v1537 = vmul.f32 %v1531, %v1531
    %v1539 = vcombine.high %v1447, %v1447
    %v1541 = vunpack.c.l.s4 1966171168
    %v1542 = vunpack.c.0.s8 %v1541
    %v1543 = vlaneseq
    %v1544 = vshrl.u32 %v1543, 7
    %v1545 = vsub.s32 %v1542, %v1544
    %v1546 = vrot.slane %v1447, %v1545
    %v1548 = vunpack.c.l.s4 1966171168
    %v1549 = vunpack.c.0.s8 %v1548
    %v1550 = vlaneseq
    %v1551 = vshrl.u32 %v1550, 7
    %v1552 = vsub.s32 %v1549, %v1551
    %v1553 = vrot.slane %v1539, %v1552
    %v1554 = vcombine.high %v1546, %v1546
    %v1555 = vcombine.high %v1553, %v1553
    %v1557 = vunpack.c.l.s4 1966171168
    %v1558 = vunpack.c.0.s8 %v1557
    %v1559 = vlaneseq
    %v1560 = vshrl.u32 %v1559, 7
    %v1561 = vsub.s32 %v1558, %v1560
    %v1562 = vrot.slane %v1546, %v1561
    %v1564 = vunpack.c.l.s4 1966171168
    %v1565 = vunpack.c.0.s8 %v1564
    %v1566 = vlaneseq
    %v1567 = vshrl.u32 %v1566, 7
    %v1568 = vsub.s32 %v1565, %v1567
    %v1569 = vrot.slane %v1553, %v1568
    %v1571 = vunpack.c.l.s4 1966171168
    %v1572 = vunpack.c.0.s8 %v1571
    %v1573 = vlaneseq
    %v1574 = vshrl.u32 %v1573, 7
    %v1575 = vsub.s32 %v1572, %v1574
    %v1576 = vrot.slane %v1554, %v1575
    %v1578 = vunpack.c.l.s4 1966171168
    %v1579 = vunpack.c.0.s8 %v1578
    %v1580 = vlaneseq
    %v1581 = vshrl.u32 %v1580, 7
    %v1582 = vsub.s32 %v1579, %v1581
    %v1583 = vrot.slane %v1555, %v1582
    %v1584 = vcombine.high %v1562, %v1562
    %v1585 = vcombine.high %v1576, %v1576
    %v1586 = vlaneseq
    %v1587 = vshrl.u32 %v1586, 7
    %v1588 = vsub.s32 0, %v1587
    %v1589 = vrot.slane %v1562, %v1588
    %v1590 = vlaneseq
    %v1591 = vshrl.u32 %v1590, 7
    %v1592 = vsub.s32 0, %v1591
    %v1593 = vrot.slane %v1576, %v1592
    %v1594 = vlaneseq
    %v1595 = vshrl.u32 %v1594, 7
    %v1596 = vsub.s32 0, %v1595
    %v1597 = vrot.slane %v1584, %v1596
    %v1598 = vlaneseq
    %v1599 = vshrl.u32 %v1598, 7
    %v1600 = vsub.s32 0, %v1599
    %v1601 = vrot.slane %v1585, %v1600
    %v1602 = vlaneseq
    %v1603 = vshrl.u32 %v1602, 7
    %v1604 = vsub.s32 0, %v1603
    %v1605 = vrot.slane %v1569, %v1604
    %v1606 = vlaneseq
    %v1607 = vshrl.u32 %v1606, 7
    %v1608 = vsub.s32 0, %v1607
    %v1609 = vrot.slane %v1583, %v1608
    %v1616 = vsub.f32 %v1589, %v1447
    %v1617 = vsub.f32 %v1593, %v1447
    %v1618 = vsub.f32 %v1597, %v1447
    %v1619 = vsub.f32 %v1601, %v1447
    %v1620 = vsub.f32 %v1605, %v1447
    %v1621 = vsub.f32 %v1609, %v1447
    %v1622 = vmul.f32 %v1616, %v1616
    %v1623 = vmul.f32 %v1617, %v1617
    %v1624 = vmul.f32 %v1618, %v1618
    %v1625 = vmul.f32 %v1619, %v1619
    %v1626 = vmul.f32 %v1620, %v1620
    %v1627 = vmul.f32 %v1621, %v1621
    %v1628 = vadd.f32 %v1532, %v1622
    %v1629 = vadd.f32 %v1533, %v1623
    %v1630 = vadd.f32 %v1534, %v1624
    %v1631 = vadd.f32 %v1535, %v1625
    %v1632 = vadd.f32 %v1536, %v1626
    %v1633 = vadd.f32 %v1537, %v1627
    %v1634 = vrsqrt.pop %v1628
    %v1635 = vmul.f32 %v1628, %v1634
    %vm1636 = vcmp.eq.f32.partialorder %v1628, inf
    %v1637 = vsel %vm1636, %v1628, %v1635
    %vm1638 = vcmp.eq.f32.partialorder %v1628, 0.0
    %v1639 = vand.u32 %v1628, 2147483648
    %v1640 = vsel %vm1638, %v1639, %v1637
    %v1641 = vrsqrt.pop %v1629
    %v1642 = vmul.f32 %v1629, %v1641
    %vm1643 = vcmp.eq.f32.partialorder %v1629, inf
    %v1644 = vsel %vm1643, %v1629, %v1642
    %vm1645 = vcmp.eq.f32.partialorder %v1629, 0.0
    %v1646 = vand.u32 %v1629, 2147483648
    %v1647 = vsel %vm1645, %v1646, %v1644
    %v1648 = vrsqrt.pop %v1630
    %v1649 = vmul.f32 %v1630, %v1648
    %vm1650 = vcmp.eq.f32.partialorder %v1630, inf
    %v1651 = vsel %vm1650, %v1630, %v1649
    %vm1652 = vcmp.eq.f32.partialorder %v1630, 0.0
    %v1653 = vand.u32 %v1630, 2147483648
    %v1654 = vsel %vm1652, %v1653, %v1651
    %v1655 = vrsqrt.pop %v1631
    %v1656 = vmul.f32 %v1631, %v1655
    %vm1657 = vcmp.eq.f32.partialorder %v1631, inf
    %v1658 = vsel %vm1657, %v1631, %v1656
    %vm1659 = vcmp.eq.f32.partialorder %v1631, 0.0
    %v1660 = vand.u32 %v1631, 2147483648
    %v1661 = vsel %vm1659, %v1660, %v1658
    %v1662 = vrsqrt.pop %v1632
    %v1663 = vmul.f32 %v1632, %v1662
    %vm1664 = vcmp.eq.f32.partialorder %v1632, inf
    %v1665 = vsel %vm1664, %v1632, %v1663
    %vm1666 = vcmp.eq.f32.partialorder %v1632, 0.0
    %v1667 = vand.u32 %v1632, 2147483648
    %v1668 = vsel %vm1666, %v1667, %v1665
    %v1669 = vrsqrt.pop %v1633
    %v1670 = vmul.f32 %v1633, %v1669
    %vm1671 = vcmp.eq.f32.partialorder %v1633, inf
    %v1672 = vsel %vm1671, %v1633, %v1670
    %vm1673 = vcmp.eq.f32.partialorder %v1633, 0.0
    %v1674 = vand.u32 %v1633, 2147483648
    %v1675 = vsel %vm1673, %v1674, %v1672
    %v1676 = vadd.f32 %v1438, %v1640
    %v1677 = vadd.f32 %v1439, %v1647
    %v1678 = vadd.f32 %v1440, %v1654
    %v1679 = vadd.f32 %v1441, %v1661
    %v1680 = vadd.f32 %v1442, %v1668
    %v1681 = vadd.f32 %v1443, %v1675
    %s1682 = scalar_lea.vmem %s0, 56
    %v1683 = vld [vmem:[%s1682] sm:$0x3f]
    %s1684 = scalar_lea.vmem %s0, 184
    %v1685 = vld [vmem:[%s1684] sm:$0x3f]
    %v1687 = vcombine.high %v1683, %v1683
    %v1689 = vunpack.c.l.s4 1966171168
    %v1690 = vunpack.c.0.s8 %v1689
    %v1691 = vlaneseq
    %v1692 = vshrl.u32 %v1691, 7
    %v1693 = vsub.s32 %v1690, %v1692
    %v1694 = vrot.slane %v1683, %v1693
    %v1696 = vunpack.c.l.s4 1966171168
    %v1697 = vunpack.c.0.s8 %v1696
    %v1698 = vlaneseq
    %v1699 = vshrl.u32 %v1698, 7
    %v1700 = vsub.s32 %v1697, %v1699
    %v1701 = vrot.slane %v1687, %v1700
    %v1702 = vcombine.high %v1694, %v1694
    %v1703 = vcombine.high %v1701, %v1701
    %v1705 = vunpack.c.l.s4 1966171168
    %v1706 = vunpack.c.0.s8 %v1705
    %v1707 = vlaneseq
    %v1708 = vshrl.u32 %v1707, 7
    %v1709 = vsub.s32 %v1706, %v1708
    %v1710 = vrot.slane %v1694, %v1709
    %v1712 = vunpack.c.l.s4 1966171168
    %v1713 = vunpack.c.0.s8 %v1712
    %v1714 = vlaneseq
    %v1715 = vshrl.u32 %v1714, 7
    %v1716 = vsub.s32 %v1713, %v1715
    %v1717 = vrot.slane %v1701, %v1716
    %v1719 = vunpack.c.l.s4 1966171168
    %v1720 = vunpack.c.0.s8 %v1719
    %v1721 = vlaneseq
    %v1722 = vshrl.u32 %v1721, 7
    %v1723 = vsub.s32 %v1720, %v1722
    %v1724 = vrot.slane %v1702, %v1723
    %v1726 = vunpack.c.l.s4 1966171168
    %v1727 = vunpack.c.0.s8 %v1726
    %v1728 = vlaneseq
    %v1729 = vshrl.u32 %v1728, 7
    %v1730 = vsub.s32 %v1727, %v1729
    %v1731 = vrot.slane %v1703, %v1730
    %v1732 = vcombine.high %v1710, %v1710
    %v1733 = vcombine.high %v1724, %v1724
    %v1734 = vlaneseq
    %v1735 = vshrl.u32 %v1734, 7
    %v1736 = vsub.s32 0, %v1735
    %v1737 = vrot.slane %v1710, %v1736
    %v1738 = vlaneseq
    %v1739 = vshrl.u32 %v1738, 7
    %v1740 = vsub.s32 0, %v1739
    %v1741 = vrot.slane %v1724, %v1740
    %v1742 = vlaneseq
    %v1743 = vshrl.u32 %v1742, 7
    %v1744 = vsub.s32 0, %v1743
    %v1745 = vrot.slane %v1732, %v1744
    %v1746 = vlaneseq
    %v1747 = vshrl.u32 %v1746, 7
    %v1748 = vsub.s32 0, %v1747
    %v1749 = vrot.slane %v1733, %v1748
    %v1750 = vlaneseq
    %v1751 = vshrl.u32 %v1750, 7
    %v1752 = vsub.s32 0, %v1751
    %v1753 = vrot.slane %v1717, %v1752
    %v1754 = vlaneseq
    %v1755 = vshrl.u32 %v1754, 7
    %v1756 = vsub.s32 0, %v1755
    %v1757 = vrot.slane %v1731, %v1756
    %v1764 = vsub.f32 %v1737, %v1683
    %v1765 = vsub.f32 %v1741, %v1683
    %v1766 = vsub.f32 %v1745, %v1683
    %v1767 = vsub.f32 %v1749, %v1683
    %v1768 = vsub.f32 %v1753, %v1683
    %v1769 = vsub.f32 %v1757, %v1683
    %v1770 = vmul.f32 %v1764, %v1764
    %v1771 = vmul.f32 %v1765, %v1765
    %v1772 = vmul.f32 %v1766, %v1766
    %v1773 = vmul.f32 %v1767, %v1767
    %v1774 = vmul.f32 %v1768, %v1768
    %v1775 = vmul.f32 %v1769, %v1769
    %v1777 = vcombine.high %v1685, %v1685
    %v1779 = vunpack.c.l.s4 1966171168
    %v1780 = vunpack.c.0.s8 %v1779
    %v1781 = vlaneseq
    %v1782 = vshrl.u32 %v1781, 7
    %v1783 = vsub.s32 %v1780, %v1782
    %v1784 = vrot.slane %v1685, %v1783
    %v1786 = vunpack.c.l.s4 1966171168
    %v1787 = vunpack.c.0.s8 %v1786
    %v1788 = vlaneseq
    %v1789 = vshrl.u32 %v1788, 7
    %v1790 = vsub.s32 %v1787, %v1789
    %v1791 = vrot.slane %v1777, %v1790
    %v1792 = vcombine.high %v1784, %v1784
    %v1793 = vcombine.high %v1791, %v1791
    %v1795 = vunpack.c.l.s4 1966171168
    %v1796 = vunpack.c.0.s8 %v1795
    %v1797 = vlaneseq
    %v1798 = vshrl.u32 %v1797, 7
    %v1799 = vsub.s32 %v1796, %v1798
    %v1800 = vrot.slane %v1784, %v1799
    %v1802 = vunpack.c.l.s4 1966171168
    %v1803 = vunpack.c.0.s8 %v1802
    %v1804 = vlaneseq
    %v1805 = vshrl.u32 %v1804, 7
    %v1806 = vsub.s32 %v1803, %v1805
    %v1807 = vrot.slane %v1791, %v1806
    %v1809 = vunpack.c.l.s4 1966171168
    %v1810 = vunpack.c.0.s8 %v1809
    %v1811 = vlaneseq
    %v1812 = vshrl.u32 %v1811, 7
    %v1813 = vsub.s32 %v1810, %v1812
    %v1814 = vrot.slane %v1792, %v1813
    %v1816 = vunpack.c.l.s4 1966171168
    %v1817 = vunpack.c.0.s8 %v1816
    %v1818 = vlaneseq
    %v1819 = vshrl.u32 %v1818, 7
    %v1820 = vsub.s32 %v1817, %v1819
    %v1821 = vrot.slane %v1793, %v1820
    %v1822 = vcombine.high %v1800, %v1800
    %v1823 = vcombine.high %v1814, %v1814
    %v1824 = vlaneseq
    %v1825 = vshrl.u32 %v1824, 7
    %v1826 = vsub.s32 0, %v1825
    %v1827 = vrot.slane %v1800, %v1826
    %v1828 = vlaneseq
    %v1829 = vshrl.u32 %v1828, 7
    %v1830 = vsub.s32 0, %v1829
    %v1831 = vrot.slane %v1814, %v1830
    %v1832 = vlaneseq
    %v1833 = vshrl.u32 %v1832, 7
    %v1834 = vsub.s32 0, %v1833
    %v1835 = vrot.slane %v1822, %v1834
    %v1836 = vlaneseq
    %v1837 = vshrl.u32 %v1836, 7
    %v1838 = vsub.s32 0, %v1837
    %v1839 = vrot.slane %v1823, %v1838
    %v1840 = vlaneseq
    %v1841 = vshrl.u32 %v1840, 7
    %v1842 = vsub.s32 0, %v1841
    %v1843 = vrot.slane %v1807, %v1842
    %v1844 = vlaneseq
    %v1845 = vshrl.u32 %v1844, 7
    %v1846 = vsub.s32 0, %v1845
    %v1847 = vrot.slane %v1821, %v1846
    %v1854 = vsub.f32 %v1827, %v1685
    %v1855 = vsub.f32 %v1831, %v1685
    %v1856 = vsub.f32 %v1835, %v1685
    %v1857 = vsub.f32 %v1839, %v1685
    %v1858 = vsub.f32 %v1843, %v1685
    %v1859 = vsub.f32 %v1847, %v1685
    %v1860 = vmul.f32 %v1854, %v1854
    %v1861 = vmul.f32 %v1855, %v1855
    %v1862 = vmul.f32 %v1856, %v1856
    %v1863 = vmul.f32 %v1857, %v1857
    %v1864 = vmul.f32 %v1858, %v1858
    %v1865 = vmul.f32 %v1859, %v1859
    %v1866 = vadd.f32 %v1770, %v1860
    %v1867 = vadd.f32 %v1771, %v1861
    %v1868 = vadd.f32 %v1772, %v1862
    %v1869 = vadd.f32 %v1773, %v1863
    %v1870 = vadd.f32 %v1774, %v1864
    %v1871 = vadd.f32 %v1775, %v1865
    %v1872 = vrsqrt.pop %v1866
    %v1873 = vmul.f32 %v1866, %v1872
    %vm1874 = vcmp.eq.f32.partialorder %v1866, inf
    %v1875 = vsel %vm1874, %v1866, %v1873
    %vm1876 = vcmp.eq.f32.partialorder %v1866, 0.0
    %v1877 = vand.u32 %v1866, 2147483648
    %v1878 = vsel %vm1876, %v1877, %v1875
    %v1879 = vrsqrt.pop %v1867
    %v1880 = vmul.f32 %v1867, %v1879
    %vm1881 = vcmp.eq.f32.partialorder %v1867, inf
    %v1882 = vsel %vm1881, %v1867, %v1880
    %vm1883 = vcmp.eq.f32.partialorder %v1867, 0.0
    %v1884 = vand.u32 %v1867, 2147483648
    %v1885 = vsel %vm1883, %v1884, %v1882
    %v1886 = vrsqrt.pop %v1868
    %v1887 = vmul.f32 %v1868, %v1886
    %vm1888 = vcmp.eq.f32.partialorder %v1868, inf
    %v1889 = vsel %vm1888, %v1868, %v1887
    %vm1890 = vcmp.eq.f32.partialorder %v1868, 0.0
    %v1891 = vand.u32 %v1868, 2147483648
    %v1892 = vsel %vm1890, %v1891, %v1889
    %v1893 = vrsqrt.pop %v1869
    %v1894 = vmul.f32 %v1869, %v1893
    %vm1895 = vcmp.eq.f32.partialorder %v1869, inf
    %v1896 = vsel %vm1895, %v1869, %v1894
    %vm1897 = vcmp.eq.f32.partialorder %v1869, 0.0
    %v1898 = vand.u32 %v1869, 2147483648
    %v1899 = vsel %vm1897, %v1898, %v1896
    %v1900 = vrsqrt.pop %v1870
    %v1901 = vmul.f32 %v1870, %v1900
    %vm1902 = vcmp.eq.f32.partialorder %v1870, inf
    %v1903 = vsel %vm1902, %v1870, %v1901
    %vm1904 = vcmp.eq.f32.partialorder %v1870, 0.0
    %v1905 = vand.u32 %v1870, 2147483648
    %v1906 = vsel %vm1904, %v1905, %v1903
    %v1907 = vrsqrt.pop %v1871
    %v1908 = vmul.f32 %v1871, %v1907
    %vm1909 = vcmp.eq.f32.partialorder %v1871, inf
    %v1910 = vsel %vm1909, %v1871, %v1908
    %vm1911 = vcmp.eq.f32.partialorder %v1871, 0.0
    %v1912 = vand.u32 %v1871, 2147483648
    %v1913 = vsel %vm1911, %v1912, %v1910
    %v1914 = vadd.f32 %v1676, %v1878
    %v1915 = vadd.f32 %v1677, %v1885
    %v1916 = vadd.f32 %v1678, %v1892
    %v1917 = vadd.f32 %v1679, %v1899
    %v1918 = vadd.f32 %v1680, %v1906
    %v1919 = vadd.f32 %v1681, %v1913
    %s1920 = scalar_lea.vmem %s0, 64
    %v1921 = vld [vmem:[%s1920] sm:$0x3f]
    %s1922 = scalar_lea.vmem %s0, 192
    %v1923 = vld [vmem:[%s1922] sm:$0x3f]
    %v1925 = vcombine.high %v1921, %v1921
    %v1927 = vunpack.c.l.s4 1966171168
    %v1928 = vunpack.c.0.s8 %v1927
    %v1929 = vlaneseq
    %v1930 = vshrl.u32 %v1929, 7
    %v1931 = vsub.s32 %v1928, %v1930
    %v1932 = vrot.slane %v1921, %v1931
    %v1934 = vunpack.c.l.s4 1966171168
    %v1935 = vunpack.c.0.s8 %v1934
    %v1936 = vlaneseq
    %v1937 = vshrl.u32 %v1936, 7
    %v1938 = vsub.s32 %v1935, %v1937
    %v1939 = vrot.slane %v1925, %v1938
    %v1940 = vcombine.high %v1932, %v1932
    %v1941 = vcombine.high %v1939, %v1939
    %v1943 = vunpack.c.l.s4 1966171168
    %v1944 = vunpack.c.0.s8 %v1943
    %v1945 = vlaneseq
    %v1946 = vshrl.u32 %v1945, 7
    %v1947 = vsub.s32 %v1944, %v1946
    %v1948 = vrot.slane %v1932, %v1947
    %v1950 = vunpack.c.l.s4 1966171168
    %v1951 = vunpack.c.0.s8 %v1950
    %v1952 = vlaneseq
    %v1953 = vshrl.u32 %v1952, 7
    %v1954 = vsub.s32 %v1951, %v1953
    %v1955 = vrot.slane %v1939, %v1954
    %v1957 = vunpack.c.l.s4 1966171168
    %v1958 = vunpack.c.0.s8 %v1957
    %v1959 = vlaneseq
    %v1960 = vshrl.u32 %v1959, 7
    %v1961 = vsub.s32 %v1958, %v1960
    %v1962 = vrot.slane %v1940, %v1961
    %v1964 = vunpack.c.l.s4 1966171168
    %v1965 = vunpack.c.0.s8 %v1964
    %v1966 = vlaneseq
    %v1967 = vshrl.u32 %v1966, 7
    %v1968 = vsub.s32 %v1965, %v1967
    %v1969 = vrot.slane %v1941, %v1968
    %v1970 = vcombine.high %v1948, %v1948
    %v1971 = vcombine.high %v1962, %v1962
    %v1972 = vlaneseq
    %v1973 = vshrl.u32 %v1972, 7
    %v1974 = vsub.s32 0, %v1973
    %v1975 = vrot.slane %v1948, %v1974
    %v1976 = vlaneseq
    %v1977 = vshrl.u32 %v1976, 7
    %v1978 = vsub.s32 0, %v1977
    %v1979 = vrot.slane %v1962, %v1978
    %v1980 = vlaneseq
    %v1981 = vshrl.u32 %v1980, 7
    %v1982 = vsub.s32 0, %v1981
    %v1983 = vrot.slane %v1970, %v1982
    %v1984 = vlaneseq
    %v1985 = vshrl.u32 %v1984, 7
    %v1986 = vsub.s32 0, %v1985
    %v1987 = vrot.slane %v1971, %v1986
    %v1988 = vlaneseq
    %v1989 = vshrl.u32 %v1988, 7
    %v1990 = vsub.s32 0, %v1989
    %v1991 = vrot.slane %v1955, %v1990
    %v1992 = vlaneseq
    %v1993 = vshrl.u32 %v1992, 7
    %v1994 = vsub.s32 0, %v1993
    %v1995 = vrot.slane %v1969, %v1994
    %v2002 = vsub.f32 %v1975, %v1921
    %v2003 = vsub.f32 %v1979, %v1921
    %v2004 = vsub.f32 %v1983, %v1921
    %v2005 = vsub.f32 %v1987, %v1921
    %v2006 = vsub.f32 %v1991, %v1921
    %v2007 = vsub.f32 %v1995, %v1921
    %v2008 = vmul.f32 %v2002, %v2002
    %v2009 = vmul.f32 %v2003, %v2003
    %v2010 = vmul.f32 %v2004, %v2004
    %v2011 = vmul.f32 %v2005, %v2005
    %v2012 = vmul.f32 %v2006, %v2006
    %v2013 = vmul.f32 %v2007, %v2007
    %v2015 = vcombine.high %v1923, %v1923
    %v2017 = vunpack.c.l.s4 1966171168
    %v2018 = vunpack.c.0.s8 %v2017
    %v2019 = vlaneseq
    %v2020 = vshrl.u32 %v2019, 7
    %v2021 = vsub.s32 %v2018, %v2020
    %v2022 = vrot.slane %v1923, %v2021
    %v2024 = vunpack.c.l.s4 1966171168
    %v2025 = vunpack.c.0.s8 %v2024
    %v2026 = vlaneseq
    %v2027 = vshrl.u32 %v2026, 7
    %v2028 = vsub.s32 %v2025, %v2027
    %v2029 = vrot.slane %v2015, %v2028
    %v2030 = vcombine.high %v2022, %v2022
    %v2031 = vcombine.high %v2029, %v2029
    %v2033 = vunpack.c.l.s4 1966171168
    %v2034 = vunpack.c.0.s8 %v2033
    %v2035 = vlaneseq
    %v2036 = vshrl.u32 %v2035, 7
    %v2037 = vsub.s32 %v2034, %v2036
    %v2038 = vrot.slane %v2022, %v2037
    %v2040 = vunpack.c.l.s4 1966171168
    %v2041 = vunpack.c.0.s8 %v2040
    %v2042 = vlaneseq
    %v2043 = vshrl.u32 %v2042, 7
    %v2044 = vsub.s32 %v2041, %v2043
    %v2045 = vrot.slane %v2029, %v2044
    %v2047 = vunpack.c.l.s4 1966171168
    %v2048 = vunpack.c.0.s8 %v2047
    %v2049 = vlaneseq
    %v2050 = vshrl.u32 %v2049, 7
    %v2051 = vsub.s32 %v2048, %v2050
    %v2052 = vrot.slane %v2030, %v2051
    %v2054 = vunpack.c.l.s4 1966171168
    %v2055 = vunpack.c.0.s8 %v2054
    %v2056 = vlaneseq
    %v2057 = vshrl.u32 %v2056, 7
    %v2058 = vsub.s32 %v2055, %v2057
    %v2059 = vrot.slane %v2031, %v2058
    %v2060 = vcombine.high %v2038, %v2038
    %v2061 = vcombine.high %v2052, %v2052
    %v2062 = vlaneseq
    %v2063 = vshrl.u32 %v2062, 7
    %v2064 = vsub.s32 0, %v2063
    %v2065 = vrot.slane %v2038, %v2064
    %v2066 = vlaneseq
    %v2067 = vshrl.u32 %v2066, 7
    %v2068 = vsub.s32 0, %v2067
    %v2069 = vrot.slane %v2052, %v2068
    %v2070 = vlaneseq
    %v2071 = vshrl.u32 %v2070, 7
    %v2072 = vsub.s32 0, %v2071
    %v2073 = vrot.slane %v2060, %v2072
    %v2074 = vlaneseq
    %v2075 = vshrl.u32 %v2074, 7
    %v2076 = vsub.s32 0, %v2075
    %v2077 = vrot.slane %v2061, %v2076
    %v2078 = vlaneseq
    %v2079 = vshrl.u32 %v2078, 7
    %v2080 = vsub.s32 0, %v2079
    %v2081 = vrot.slane %v2045, %v2080
    %v2082 = vlaneseq
    %v2083 = vshrl.u32 %v2082, 7
    %v2084 = vsub.s32 0, %v2083
    %v2085 = vrot.slane %v2059, %v2084
    %v2092 = vsub.f32 %v2065, %v1923
    %v2093 = vsub.f32 %v2069, %v1923
    %v2094 = vsub.f32 %v2073, %v1923
    %v2095 = vsub.f32 %v2077, %v1923
    %v2096 = vsub.f32 %v2081, %v1923
    %v2097 = vsub.f32 %v2085, %v1923
    %v2098 = vmul.f32 %v2092, %v2092
    %v2099 = vmul.f32 %v2093, %v2093
    %v2100 = vmul.f32 %v2094, %v2094
    %v2101 = vmul.f32 %v2095, %v2095
    %v2102 = vmul.f32 %v2096, %v2096
    %v2103 = vmul.f32 %v2097, %v2097
    %v2104 = vadd.f32 %v2008, %v2098
    %v2105 = vadd.f32 %v2009, %v2099
    %v2106 = vadd.f32 %v2010, %v2100
    %v2107 = vadd.f32 %v2011, %v2101
    %v2108 = vadd.f32 %v2012, %v2102
    %v2109 = vadd.f32 %v2013, %v2103
    %v2110 = vrsqrt.pop %v2104
    %v2111 = vmul.f32 %v2104, %v2110
    %vm2112 = vcmp.eq.f32.partialorder %v2104, inf
    %v2113 = vsel %vm2112, %v2104, %v2111
    %vm2114 = vcmp.eq.f32.partialorder %v2104, 0.0
    %v2115 = vand.u32 %v2104, 2147483648
    %v2116 = vsel %vm2114, %v2115, %v2113
    %v2117 = vrsqrt.pop %v2105
    %v2118 = vmul.f32 %v2105, %v2117
    %vm2119 = vcmp.eq.f32.partialorder %v2105, inf
    %v2120 = vsel %vm2119, %v2105, %v2118
    %vm2121 = vcmp.eq.f32.partialorder %v2105, 0.0
    %v2122 = vand.u32 %v2105, 2147483648
    %v2123 = vsel %vm2121, %v2122, %v2120
    %v2124 = vrsqrt.pop %v2106
    %v2125 = vmul.f32 %v2106, %v2124
    %vm2126 = vcmp.eq.f32.partialorder %v2106, inf
    %v2127 = vsel %vm2126, %v2106, %v2125
    %vm2128 = vcmp.eq.f32.partialorder %v2106, 0.0
    %v2129 = vand.u32 %v2106, 2147483648
    %v2130 = vsel %vm2128, %v2129, %v2127
    %v2131 = vrsqrt.pop %v2107
    %v2132 = vmul.f32 %v2107, %v2131
    %vm2133 = vcmp.eq.f32.partialorder %v2107, inf
    %v2134 = vsel %vm2133, %v2107, %v2132
    %vm2135 = vcmp.eq.f32.partialorder %v2107, 0.0
    %v2136 = vand.u32 %v2107, 2147483648
    %v2137 = vsel %vm2135, %v2136, %v2134
    %v2138 = vrsqrt.pop %v2108
    %v2139 = vmul.f32 %v2108, %v2138
    %vm2140 = vcmp.eq.f32.partialorder %v2108, inf
    %v2141 = vsel %vm2140, %v2108, %v2139
    %vm2142 = vcmp.eq.f32.partialorder %v2108, 0.0
    %v2143 = vand.u32 %v2108, 2147483648
    %v2144 = vsel %vm2142, %v2143, %v2141
    %v2145 = vrsqrt.pop %v2109
    %v2146 = vmul.f32 %v2109, %v2145
    %vm2147 = vcmp.eq.f32.partialorder %v2109, inf
    %v2148 = vsel %vm2147, %v2109, %v2146
    %vm2149 = vcmp.eq.f32.partialorder %v2109, 0.0
    %v2150 = vand.u32 %v2109, 2147483648
    %v2151 = vsel %vm2149, %v2150, %v2148
    %v2152 = vadd.f32 %v1914, %v2116
    %v2153 = vadd.f32 %v1915, %v2123
    %v2154 = vadd.f32 %v1916, %v2130
    %v2155 = vadd.f32 %v1917, %v2137
    %v2156 = vadd.f32 %v1918, %v2144
    %v2157 = vadd.f32 %v1919, %v2151
    %s2158 = scalar_lea.vmem %s0, 72
    %v2159 = vld [vmem:[%s2158] sm:$0x3f]
    %s2160 = scalar_lea.vmem %s0, 200
    %v2161 = vld [vmem:[%s2160] sm:$0x3f]
    %v2163 = vcombine.high %v2159, %v2159
    %v2165 = vunpack.c.l.s4 1966171168
    %v2166 = vunpack.c.0.s8 %v2165
    %v2167 = vlaneseq
    %v2168 = vshrl.u32 %v2167, 7
    %v2169 = vsub.s32 %v2166, %v2168
    %v2170 = vrot.slane %v2159, %v2169
    %v2172 = vunpack.c.l.s4 1966171168
    %v2173 = vunpack.c.0.s8 %v2172
    %v2174 = vlaneseq
    %v2175 = vshrl.u32 %v2174, 7
    %v2176 = vsub.s32 %v2173, %v2175
    %v2177 = vrot.slane %v2163, %v2176
    %v2178 = vcombine.high %v2170, %v2170
    %v2179 = vcombine.high %v2177, %v2177
    %v2181 = vunpack.c.l.s4 1966171168
    %v2182 = vunpack.c.0.s8 %v2181
    %v2183 = vlaneseq
    %v2184 = vshrl.u32 %v2183, 7
    %v2185 = vsub.s32 %v2182, %v2184
    %v2186 = vrot.slane %v2170, %v2185
    %v2188 = vunpack.c.l.s4 1966171168
    %v2189 = vunpack.c.0.s8 %v2188
    %v2190 = vlaneseq
    %v2191 = vshrl.u32 %v2190, 7
    %v2192 = vsub.s32 %v2189, %v2191
    %v2193 = vrot.slane %v2177, %v2192
    %v2195 = vunpack.c.l.s4 1966171168
    %v2196 = vunpack.c.0.s8 %v2195
    %v2197 = vlaneseq
    %v2198 = vshrl.u32 %v2197, 7
    %v2199 = vsub.s32 %v2196, %v2198
    %v2200 = vrot.slane %v2178, %v2199
    %v2202 = vunpack.c.l.s4 1966171168
    %v2203 = vunpack.c.0.s8 %v2202
    %v2204 = vlaneseq
    %v2205 = vshrl.u32 %v2204, 7
    %v2206 = vsub.s32 %v2203, %v2205
    %v2207 = vrot.slane %v2179, %v2206
    %v2208 = vcombine.high %v2186, %v2186
    %v2209 = vcombine.high %v2200, %v2200
    %v2210 = vlaneseq
    %v2211 = vshrl.u32 %v2210, 7
    %v2212 = vsub.s32 0, %v2211
    %v2213 = vrot.slane %v2186, %v2212
    %v2214 = vlaneseq
    %v2215 = vshrl.u32 %v2214, 7
    %v2216 = vsub.s32 0, %v2215
    %v2217 = vrot.slane %v2200, %v2216
    %v2218 = vlaneseq
    %v2219 = vshrl.u32 %v2218, 7
    %v2220 = vsub.s32 0, %v2219
    %v2221 = vrot.slane %v2208, %v2220
    %v2222 = vlaneseq
    %v2223 = vshrl.u32 %v2222, 7
    %v2224 = vsub.s32 0, %v2223
    %v2225 = vrot.slane %v2209, %v2224
    %v2226 = vlaneseq
    %v2227 = vshrl.u32 %v2226, 7
    %v2228 = vsub.s32 0, %v2227
    %v2229 = vrot.slane %v2193, %v2228
    %v2230 = vlaneseq
    %v2231 = vshrl.u32 %v2230, 7
    %v2232 = vsub.s32 0, %v2231
    %v2233 = vrot.slane %v2207, %v2232
    %v2240 = vsub.f32 %v2213, %v2159
    %v2241 = vsub.f32 %v2217, %v2159
    %v2242 = vsub.f32 %v2221, %v2159
    %v2243 = vsub.f32 %v2225, %v2159
    %v2244 = vsub.f32 %v2229, %v2159
    %v2245 = vsub.f32 %v2233, %v2159
    %v2246 = vmul.f32 %v2240, %v2240
    %v2247 = vmul.f32 %v2241, %v2241
    %v2248 = vmul.f32 %v2242, %v2242
    %v2249 = vmul.f32 %v2243, %v2243
    %v2250 = vmul.f32 %v2244, %v2244
    %v2251 = vmul.f32 %v2245, %v2245
    %v2253 = vcombine.high %v2161, %v2161
    %v2255 = vunpack.c.l.s4 1966171168
    %v2256 = vunpack.c.0.s8 %v2255
    %v2257 = vlaneseq
    %v2258 = vshrl.u32 %v2257, 7
    %v2259 = vsub.s32 %v2256, %v2258
    %v2260 = vrot.slane %v2161, %v2259
    %v2262 = vunpack.c.l.s4 1966171168
    %v2263 = vunpack.c.0.s8 %v2262
    %v2264 = vlaneseq
    %v2265 = vshrl.u32 %v2264, 7
    %v2266 = vsub.s32 %v2263, %v2265
    %v2267 = vrot.slane %v2253, %v2266
    %v2268 = vcombine.high %v2260, %v2260
    %v2269 = vcombine.high %v2267, %v2267
    %v2271 = vunpack.c.l.s4 1966171168
    %v2272 = vunpack.c.0.s8 %v2271
    %v2273 = vlaneseq
    %v2274 = vshrl.u32 %v2273, 7
    %v2275 = vsub.s32 %v2272, %v2274
    %v2276 = vrot.slane %v2260, %v2275
    %v2278 = vunpack.c.l.s4 1966171168
    %v2279 = vunpack.c.0.s8 %v2278
    %v2280 = vlaneseq
    %v2281 = vshrl.u32 %v2280, 7
    %v2282 = vsub.s32 %v2279, %v2281
    %v2283 = vrot.slane %v2267, %v2282
    %v2285 = vunpack.c.l.s4 1966171168
    %v2286 = vunpack.c.0.s8 %v2285
    %v2287 = vlaneseq
    %v2288 = vshrl.u32 %v2287, 7
    %v2289 = vsub.s32 %v2286, %v2288
    %v2290 = vrot.slane %v2268, %v2289
    %v2292 = vunpack.c.l.s4 1966171168
    %v2293 = vunpack.c.0.s8 %v2292
    %v2294 = vlaneseq
    %v2295 = vshrl.u32 %v2294, 7
    %v2296 = vsub.s32 %v2293, %v2295
    %v2297 = vrot.slane %v2269, %v2296
    %v2298 = vcombine.high %v2276, %v2276
    %v2299 = vcombine.high %v2290, %v2290
    %v2300 = vlaneseq
    %v2301 = vshrl.u32 %v2300, 7
    %v2302 = vsub.s32 0, %v2301
    %v2303 = vrot.slane %v2276, %v2302
    %v2304 = vlaneseq
    %v2305 = vshrl.u32 %v2304, 7
    %v2306 = vsub.s32 0, %v2305
    %v2307 = vrot.slane %v2290, %v2306
    %v2308 = vlaneseq
    %v2309 = vshrl.u32 %v2308, 7
    %v2310 = vsub.s32 0, %v2309
    %v2311 = vrot.slane %v2298, %v2310
    %v2312 = vlaneseq
    %v2313 = vshrl.u32 %v2312, 7
    %v2314 = vsub.s32 0, %v2313
    %v2315 = vrot.slane %v2299, %v2314
    %v2316 = vlaneseq
    %v2317 = vshrl.u32 %v2316, 7
    %v2318 = vsub.s32 0, %v2317
    %v2319 = vrot.slane %v2283, %v2318
    %v2320 = vlaneseq
    %v2321 = vshrl.u32 %v2320, 7
    %v2322 = vsub.s32 0, %v2321
    %v2323 = vrot.slane %v2297, %v2322
    %v2330 = vsub.f32 %v2303, %v2161
    %v2331 = vsub.f32 %v2307, %v2161
    %v2332 = vsub.f32 %v2311, %v2161
    %v2333 = vsub.f32 %v2315, %v2161
    %v2334 = vsub.f32 %v2319, %v2161
    %v2335 = vsub.f32 %v2323, %v2161
    %v2336 = vmul.f32 %v2330, %v2330
    %v2337 = vmul.f32 %v2331, %v2331
    %v2338 = vmul.f32 %v2332, %v2332
    %v2339 = vmul.f32 %v2333, %v2333
    %v2340 = vmul.f32 %v2334, %v2334
    %v2341 = vmul.f32 %v2335, %v2335
    %v2342 = vadd.f32 %v2246, %v2336
    %v2343 = vadd.f32 %v2247, %v2337
    %v2344 = vadd.f32 %v2248, %v2338
    %v2345 = vadd.f32 %v2249, %v2339
    %v2346 = vadd.f32 %v2250, %v2340
    %v2347 = vadd.f32 %v2251, %v2341
    %v2348 = vrsqrt.pop %v2342
    %v2349 = vmul.f32 %v2342, %v2348
    %vm2350 = vcmp.eq.f32.partialorder %v2342, inf
    %v2351 = vsel %vm2350, %v2342, %v2349
    %vm2352 = vcmp.eq.f32.partialorder %v2342, 0.0
    %v2353 = vand.u32 %v2342, 2147483648
    %v2354 = vsel %vm2352, %v2353, %v2351
    %v2355 = vrsqrt.pop %v2343
    %v2356 = vmul.f32 %v2343, %v2355
    %vm2357 = vcmp.eq.f32.partialorder %v2343, inf
    %v2358 = vsel %vm2357, %v2343, %v2356
    %vm2359 = vcmp.eq.f32.partialorder %v2343, 0.0
    %v2360 = vand.u32 %v2343, 2147483648
    %v2361 = vsel %vm2359, %v2360, %v2358
    %v2362 = vrsqrt.pop %v2344
    %v2363 = vmul.f32 %v2344, %v2362
    %vm2364 = vcmp.eq.f32.partialorder %v2344, inf
    %v2365 = vsel %vm2364, %v2344, %v2363
    %vm2366 = vcmp.eq.f32.partialorder %v2344, 0.0
    %v2367 = vand.u32 %v2344, 2147483648
    %v2368 = vsel %vm2366, %v2367, %v2365
    %v2369 = vrsqrt.pop %v2345
    %v2370 = vmul.f32 %v2345, %v2369
    %vm2371 = vcmp.eq.f32.partialorder %v2345, inf
    %v2372 = vsel %vm2371, %v2345, %v2370
    %vm2373 = vcmp.eq.f32.partialorder %v2345, 0.0
    %v2374 = vand.u32 %v2345, 2147483648
    %v2375 = vsel %vm2373, %v2374, %v2372
    %v2376 = vrsqrt.pop %v2346
    %v2377 = vmul.f32 %v2346, %v2376
    %vm2378 = vcmp.eq.f32.partialorder %v2346, inf
    %v2379 = vsel %vm2378, %v2346, %v2377
    %vm2380 = vcmp.eq.f32.partialorder %v2346, 0.0
    %v2381 = vand.u32 %v2346, 2147483648
    %v2382 = vsel %vm2380, %v2381, %v2379
    %v2383 = vrsqrt.pop %v2347
    %v2384 = vmul.f32 %v2347, %v2383
    %vm2385 = vcmp.eq.f32.partialorder %v2347, inf
    %v2386 = vsel %vm2385, %v2347, %v2384
    %vm2387 = vcmp.eq.f32.partialorder %v2347, 0.0
    %v2388 = vand.u32 %v2347, 2147483648
    %v2389 = vsel %vm2387, %v2388, %v2386
    %v2390 = vadd.f32 %v2152, %v2354
    %v2391 = vadd.f32 %v2153, %v2361
    %v2392 = vadd.f32 %v2154, %v2368
    %v2393 = vadd.f32 %v2155, %v2375
    %v2394 = vadd.f32 %v2156, %v2382
    %v2395 = vadd.f32 %v2157, %v2389
    %s2396 = scalar_lea.vmem %s0, 80
    %v2397 = vld [vmem:[%s2396] sm:$0x3f]
    %s2398 = scalar_lea.vmem %s0, 208
    %v2399 = vld [vmem:[%s2398] sm:$0x3f]
    %v2401 = vcombine.high %v2397, %v2397
    %v2403 = vunpack.c.l.s4 1966171168
    %v2404 = vunpack.c.0.s8 %v2403
    %v2405 = vlaneseq
    %v2406 = vshrl.u32 %v2405, 7
    %v2407 = vsub.s32 %v2404, %v2406
    %v2408 = vrot.slane %v2397, %v2407
    %v2410 = vunpack.c.l.s4 1966171168
    %v2411 = vunpack.c.0.s8 %v2410
    %v2412 = vlaneseq
    %v2413 = vshrl.u32 %v2412, 7
    %v2414 = vsub.s32 %v2411, %v2413
    %v2415 = vrot.slane %v2401, %v2414
    %v2416 = vcombine.high %v2408, %v2408
    %v2417 = vcombine.high %v2415, %v2415
    %v2419 = vunpack.c.l.s4 1966171168
    %v2420 = vunpack.c.0.s8 %v2419
    %v2421 = vlaneseq
    %v2422 = vshrl.u32 %v2421, 7
    %v2423 = vsub.s32 %v2420, %v2422
    %v2424 = vrot.slane %v2408, %v2423
    %v2426 = vunpack.c.l.s4 1966171168
    %v2427 = vunpack.c.0.s8 %v2426
    %v2428 = vlaneseq
    %v2429 = vshrl.u32 %v2428, 7
    %v2430 = vsub.s32 %v2427, %v2429
    %v2431 = vrot.slane %v2415, %v2430
    %v2433 = vunpack.c.l.s4 1966171168
    %v2434 = vunpack.c.0.s8 %v2433
    %v2435 = vlaneseq
    %v2436 = vshrl.u32 %v2435, 7
    %v2437 = vsub.s32 %v2434, %v2436
    %v2438 = vrot.slane %v2416, %v2437
    %v2440 = vunpack.c.l.s4 1966171168
    %v2441 = vunpack.c.0.s8 %v2440
    %v2442 = vlaneseq
    %v2443 = vshrl.u32 %v2442, 7
    %v2444 = vsub.s32 %v2441, %v2443
    %v2445 = vrot.slane %v2417, %v2444
    %v2446 = vcombine.high %v2424, %v2424
    %v2447 = vcombine.high %v2438, %v2438
    %v2448 = vlaneseq
    %v2449 = vshrl.u32 %v2448, 7
    %v2450 = vsub.s32 0, %v2449
    %v2451 = vrot.slane %v2424, %v2450
    %v2452 = vlaneseq
    %v2453 = vshrl.u32 %v2452, 7
    %v2454 = vsub.s32 0, %v2453
    %v2455 = vrot.slane %v2438, %v2454
    %v2456 = vlaneseq
    %v2457 = vshrl.u32 %v2456, 7
    %v2458 = vsub.s32 0, %v2457
    %v2459 = vrot.slane %v2446, %v2458
    %v2460 = vlaneseq
    %v2461 = vshrl.u32 %v2460, 7
    %v2462 = vsub.s32 0, %v2461
    %v2463 = vrot.slane %v2447, %v2462
    %v2464 = vlaneseq
    %v2465 = vshrl.u32 %v2464, 7
    %v2466 = vsub.s32 0, %v2465
    %v2467 = vrot.slane %v2431, %v2466
    %v2468 = vlaneseq
    %v2469 = vshrl.u32 %v2468, 7
    %v2470 = vsub.s32 0, %v2469
    %v2471 = vrot.slane %v2445, %v2470
    %v2478 = vsub.f32 %v2451, %v2397
    %v2479 = vsub.f32 %v2455, %v2397
    %v2480 = vsub.f32 %v2459, %v2397
    %v2481 = vsub.f32 %v2463, %v2397
    %v2482 = vsub.f32 %v2467, %v2397
    %v2483 = vsub.f32 %v2471, %v2397
    %v2484 = vmul.f32 %v2478, %v2478
    %v2485 = vmul.f32 %v2479, %v2479
    %v2486 = vmul.f32 %v2480, %v2480
    %v2487 = vmul.f32 %v2481, %v2481
    %v2488 = vmul.f32 %v2482, %v2482
    %v2489 = vmul.f32 %v2483, %v2483
    %v2491 = vcombine.high %v2399, %v2399
    %v2493 = vunpack.c.l.s4 1966171168
    %v2494 = vunpack.c.0.s8 %v2493
    %v2495 = vlaneseq
    %v2496 = vshrl.u32 %v2495, 7
    %v2497 = vsub.s32 %v2494, %v2496
    %v2498 = vrot.slane %v2399, %v2497
    %v2500 = vunpack.c.l.s4 1966171168
    %v2501 = vunpack.c.0.s8 %v2500
    %v2502 = vlaneseq
    %v2503 = vshrl.u32 %v2502, 7
    %v2504 = vsub.s32 %v2501, %v2503
    %v2505 = vrot.slane %v2491, %v2504
    %v2506 = vcombine.high %v2498, %v2498
    %v2507 = vcombine.high %v2505, %v2505
    %v2509 = vunpack.c.l.s4 1966171168
    %v2510 = vunpack.c.0.s8 %v2509
    %v2511 = vlaneseq
    %v2512 = vshrl.u32 %v2511, 7
    %v2513 = vsub.s32 %v2510, %v2512
    %v2514 = vrot.slane %v2498, %v2513
    %v2516 = vunpack.c.l.s4 1966171168
    %v2517 = vunpack.c.0.s8 %v2516
    %v2518 = vlaneseq
    %v2519 = vshrl.u32 %v2518, 7
    %v2520 = vsub.s32 %v2517, %v2519
    %v2521 = vrot.slane %v2505, %v2520
    %v2523 = vunpack.c.l.s4 1966171168
    %v2524 = vunpack.c.0.s8 %v2523
    %v2525 = vlaneseq
    %v2526 = vshrl.u32 %v2525, 7
    %v2527 = vsub.s32 %v2524, %v2526
    %v2528 = vrot.slane %v2506, %v2527
    %v2530 = vunpack.c.l.s4 1966171168
    %v2531 = vunpack.c.0.s8 %v2530
    %v2532 = vlaneseq
    %v2533 = vshrl.u32 %v2532, 7
    %v2534 = vsub.s32 %v2531, %v2533
    %v2535 = vrot.slane %v2507, %v2534
    %v2536 = vcombine.high %v2514, %v2514
    %v2537 = vcombine.high %v2528, %v2528
    %v2538 = vlaneseq
    %v2539 = vshrl.u32 %v2538, 7
    %v2540 = vsub.s32 0, %v2539
    %v2541 = vrot.slane %v2514, %v2540
    %v2542 = vlaneseq
    %v2543 = vshrl.u32 %v2542, 7
    %v2544 = vsub.s32 0, %v2543
    %v2545 = vrot.slane %v2528, %v2544
    %v2546 = vlaneseq
    %v2547 = vshrl.u32 %v2546, 7
    %v2548 = vsub.s32 0, %v2547
    %v2549 = vrot.slane %v2536, %v2548
    %v2550 = vlaneseq
    %v2551 = vshrl.u32 %v2550, 7
    %v2552 = vsub.s32 0, %v2551
    %v2553 = vrot.slane %v2537, %v2552
    %v2554 = vlaneseq
    %v2555 = vshrl.u32 %v2554, 7
    %v2556 = vsub.s32 0, %v2555
    %v2557 = vrot.slane %v2521, %v2556
    %v2558 = vlaneseq
    %v2559 = vshrl.u32 %v2558, 7
    %v2560 = vsub.s32 0, %v2559
    %v2561 = vrot.slane %v2535, %v2560
    %v2568 = vsub.f32 %v2541, %v2399
    %v2569 = vsub.f32 %v2545, %v2399
    %v2570 = vsub.f32 %v2549, %v2399
    %v2571 = vsub.f32 %v2553, %v2399
    %v2572 = vsub.f32 %v2557, %v2399
    %v2573 = vsub.f32 %v2561, %v2399
    %v2574 = vmul.f32 %v2568, %v2568
    %v2575 = vmul.f32 %v2569, %v2569
    %v2576 = vmul.f32 %v2570, %v2570
    %v2577 = vmul.f32 %v2571, %v2571
    %v2578 = vmul.f32 %v2572, %v2572
    %v2579 = vmul.f32 %v2573, %v2573
    %v2580 = vadd.f32 %v2484, %v2574
    %v2581 = vadd.f32 %v2485, %v2575
    %v2582 = vadd.f32 %v2486, %v2576
    %v2583 = vadd.f32 %v2487, %v2577
    %v2584 = vadd.f32 %v2488, %v2578
    %v2585 = vadd.f32 %v2489, %v2579
    %v2586 = vrsqrt.pop %v2580
    %v2587 = vmul.f32 %v2580, %v2586
    %vm2588 = vcmp.eq.f32.partialorder %v2580, inf
    %v2589 = vsel %vm2588, %v2580, %v2587
    %vm2590 = vcmp.eq.f32.partialorder %v2580, 0.0
    %v2591 = vand.u32 %v2580, 2147483648
    %v2592 = vsel %vm2590, %v2591, %v2589
    %v2593 = vrsqrt.pop %v2581
    %v2594 = vmul.f32 %v2581, %v2593
    %vm2595 = vcmp.eq.f32.partialorder %v2581, inf
    %v2596 = vsel %vm2595, %v2581, %v2594
    %vm2597 = vcmp.eq.f32.partialorder %v2581, 0.0
    %v2598 = vand.u32 %v2581, 2147483648
    %v2599 = vsel %vm2597, %v2598, %v2596
    %v2600 = vrsqrt.pop %v2582
    %v2601 = vmul.f32 %v2582, %v2600
    %vm2602 = vcmp.eq.f32.partialorder %v2582, inf
    %v2603 = vsel %vm2602, %v2582, %v2601
    %vm2604 = vcmp.eq.f32.partialorder %v2582, 0.0
    %v2605 = vand.u32 %v2582, 2147483648
    %v2606 = vsel %vm2604, %v2605, %v2603
    %v2607 = vrsqrt.pop %v2583
    %v2608 = vmul.f32 %v2583, %v2607
    %vm2609 = vcmp.eq.f32.partialorder %v2583, inf
    %v2610 = vsel %vm2609, %v2583, %v2608
    %vm2611 = vcmp.eq.f32.partialorder %v2583, 0.0
    %v2612 = vand.u32 %v2583, 2147483648
    %v2613 = vsel %vm2611, %v2612, %v2610
    %v2614 = vrsqrt.pop %v2584
    %v2615 = vmul.f32 %v2584, %v2614
    %vm2616 = vcmp.eq.f32.partialorder %v2584, inf
    %v2617 = vsel %vm2616, %v2584, %v2615
    %vm2618 = vcmp.eq.f32.partialorder %v2584, 0.0
    %v2619 = vand.u32 %v2584, 2147483648
    %v2620 = vsel %vm2618, %v2619, %v2617
    %v2621 = vrsqrt.pop %v2585
    %v2622 = vmul.f32 %v2585, %v2621
    %vm2623 = vcmp.eq.f32.partialorder %v2585, inf
    %v2624 = vsel %vm2623, %v2585, %v2622
    %vm2625 = vcmp.eq.f32.partialorder %v2585, 0.0
    %v2626 = vand.u32 %v2585, 2147483648
    %v2627 = vsel %vm2625, %v2626, %v2624
    %v2628 = vadd.f32 %v2390, %v2592
    %v2629 = vadd.f32 %v2391, %v2599
    %v2630 = vadd.f32 %v2392, %v2606
    %v2631 = vadd.f32 %v2393, %v2613
    %v2632 = vadd.f32 %v2394, %v2620
    %v2633 = vadd.f32 %v2395, %v2627
    %s2634 = scalar_lea.vmem %s0, 88
    %v2635 = vld [vmem:[%s2634] sm:$0x3f]
    %s2636 = scalar_lea.vmem %s0, 216
    %v2637 = vld [vmem:[%s2636] sm:$0x3f]
    %v2639 = vcombine.high %v2635, %v2635
    %v2641 = vunpack.c.l.s4 1966171168
    %v2642 = vunpack.c.0.s8 %v2641
    %v2643 = vlaneseq
    %v2644 = vshrl.u32 %v2643, 7
    %v2645 = vsub.s32 %v2642, %v2644
    %v2646 = vrot.slane %v2635, %v2645
    %v2648 = vunpack.c.l.s4 1966171168
    %v2649 = vunpack.c.0.s8 %v2648
    %v2650 = vlaneseq
    %v2651 = vshrl.u32 %v2650, 7
    %v2652 = vsub.s32 %v2649, %v2651
    %v2653 = vrot.slane %v2639, %v2652
    %v2654 = vcombine.high %v2646, %v2646
    %v2655 = vcombine.high %v2653, %v2653
    %v2657 = vunpack.c.l.s4 1966171168
    %v2658 = vunpack.c.0.s8 %v2657
    %v2659 = vlaneseq
    %v2660 = vshrl.u32 %v2659, 7
    %v2661 = vsub.s32 %v2658, %v2660
    %v2662 = vrot.slane %v2646, %v2661
    %v2664 = vunpack.c.l.s4 1966171168
    %v2665 = vunpack.c.0.s8 %v2664
    %v2666 = vlaneseq
    %v2667 = vshrl.u32 %v2666, 7
    %v2668 = vsub.s32 %v2665, %v2667
    %v2669 = vrot.slane %v2653, %v2668
    %v2671 = vunpack.c.l.s4 1966171168
    %v2672 = vunpack.c.0.s8 %v2671
    %v2673 = vlaneseq
    %v2674 = vshrl.u32 %v2673, 7
    %v2675 = vsub.s32 %v2672, %v2674
    %v2676 = vrot.slane %v2654, %v2675
    %v2678 = vunpack.c.l.s4 1966171168
    %v2679 = vunpack.c.0.s8 %v2678
    %v2680 = vlaneseq
    %v2681 = vshrl.u32 %v2680, 7
    %v2682 = vsub.s32 %v2679, %v2681
    %v2683 = vrot.slane %v2655, %v2682
    %v2684 = vcombine.high %v2662, %v2662
    %v2685 = vcombine.high %v2676, %v2676
    %v2686 = vlaneseq
    %v2687 = vshrl.u32 %v2686, 7
    %v2688 = vsub.s32 0, %v2687
    %v2689 = vrot.slane %v2662, %v2688
    %v2690 = vlaneseq
    %v2691 = vshrl.u32 %v2690, 7
    %v2692 = vsub.s32 0, %v2691
    %v2693 = vrot.slane %v2676, %v2692
    %v2694 = vlaneseq
    %v2695 = vshrl.u32 %v2694, 7
    %v2696 = vsub.s32 0, %v2695
    %v2697 = vrot.slane %v2684, %v2696
    %v2698 = vlaneseq
    %v2699 = vshrl.u32 %v2698, 7
    %v2700 = vsub.s32 0, %v2699
    %v2701 = vrot.slane %v2685, %v2700
    %v2702 = vlaneseq
    %v2703 = vshrl.u32 %v2702, 7
    %v2704 = vsub.s32 0, %v2703
    %v2705 = vrot.slane %v2669, %v2704
    %v2706 = vlaneseq
    %v2707 = vshrl.u32 %v2706, 7
    %v2708 = vsub.s32 0, %v2707
    %v2709 = vrot.slane %v2683, %v2708
    %v2716 = vsub.f32 %v2689, %v2635
    %v2717 = vsub.f32 %v2693, %v2635
    %v2718 = vsub.f32 %v2697, %v2635
    %v2719 = vsub.f32 %v2701, %v2635
    %v2720 = vsub.f32 %v2705, %v2635
    %v2721 = vsub.f32 %v2709, %v2635
    %v2722 = vmul.f32 %v2716, %v2716
    %v2723 = vmul.f32 %v2717, %v2717
    %v2724 = vmul.f32 %v2718, %v2718
    %v2725 = vmul.f32 %v2719, %v2719
    %v2726 = vmul.f32 %v2720, %v2720
    %v2727 = vmul.f32 %v2721, %v2721
    %v2729 = vcombine.high %v2637, %v2637
    %v2731 = vunpack.c.l.s4 1966171168
    %v2732 = vunpack.c.0.s8 %v2731
    %v2733 = vlaneseq
    %v2734 = vshrl.u32 %v2733, 7
    %v2735 = vsub.s32 %v2732, %v2734
    %v2736 = vrot.slane %v2637, %v2735
    %v2738 = vunpack.c.l.s4 1966171168
    %v2739 = vunpack.c.0.s8 %v2738
    %v2740 = vlaneseq
    %v2741 = vshrl.u32 %v2740, 7
    %v2742 = vsub.s32 %v2739, %v2741
    %v2743 = vrot.slane %v2729, %v2742
    %v2744 = vcombine.high %v2736, %v2736
    %v2745 = vcombine.high %v2743, %v2743
    %v2747 = vunpack.c.l.s4 1966171168
    %v2748 = vunpack.c.0.s8 %v2747
    %v2749 = vlaneseq
    %v2750 = vshrl.u32 %v2749, 7
    %v2751 = vsub.s32 %v2748, %v2750
    %v2752 = vrot.slane %v2736, %v2751
    %v2754 = vunpack.c.l.s4 1966171168
    %v2755 = vunpack.c.0.s8 %v2754
    %v2756 = vlaneseq
    %v2757 = vshrl.u32 %v2756, 7
    %v2758 = vsub.s32 %v2755, %v2757
    %v2759 = vrot.slane %v2743, %v2758
    %v2761 = vunpack.c.l.s4 1966171168
    %v2762 = vunpack.c.0.s8 %v2761
    %v2763 = vlaneseq
    %v2764 = vshrl.u32 %v2763, 7
    %v2765 = vsub.s32 %v2762, %v2764
    %v2766 = vrot.slane %v2744, %v2765
    %v2768 = vunpack.c.l.s4 1966171168
    %v2769 = vunpack.c.0.s8 %v2768
    %v2770 = vlaneseq
    %v2771 = vshrl.u32 %v2770, 7
    %v2772 = vsub.s32 %v2769, %v2771
    %v2773 = vrot.slane %v2745, %v2772
    %v2774 = vcombine.high %v2752, %v2752
    %v2775 = vcombine.high %v2766, %v2766
    %v2776 = vlaneseq
    %v2777 = vshrl.u32 %v2776, 7
    %v2778 = vsub.s32 0, %v2777
    %v2779 = vrot.slane %v2752, %v2778
    %v2780 = vlaneseq
    %v2781 = vshrl.u32 %v2780, 7
    %v2782 = vsub.s32 0, %v2781
    %v2783 = vrot.slane %v2766, %v2782
    %v2784 = vlaneseq
    %v2785 = vshrl.u32 %v2784, 7
    %v2786 = vsub.s32 0, %v2785
    %v2787 = vrot.slane %v2774, %v2786
    %v2788 = vlaneseq
    %v2789 = vshrl.u32 %v2788, 7
    %v2790 = vsub.s32 0, %v2789
    %v2791 = vrot.slane %v2775, %v2790
    %v2792 = vlaneseq
    %v2793 = vshrl.u32 %v2792, 7
    %v2794 = vsub.s32 0, %v2793
    %v2795 = vrot.slane %v2759, %v2794
    %v2796 = vlaneseq
    %v2797 = vshrl.u32 %v2796, 7
    %v2798 = vsub.s32 0, %v2797
    %v2799 = vrot.slane %v2773, %v2798
    %v2806 = vsub.f32 %v2779, %v2637
    %v2807 = vsub.f32 %v2783, %v2637
    %v2808 = vsub.f32 %v2787, %v2637
    %v2809 = vsub.f32 %v2791, %v2637
    %v2810 = vsub.f32 %v2795, %v2637
    %v2811 = vsub.f32 %v2799, %v2637
    %v2812 = vmul.f32 %v2806, %v2806
    %v2813 = vmul.f32 %v2807, %v2807
    %v2814 = vmul.f32 %v2808, %v2808
    %v2815 = vmul.f32 %v2809, %v2809
    %v2816 = vmul.f32 %v2810, %v2810
    %v2817 = vmul.f32 %v2811, %v2811
    %v2818 = vadd.f32 %v2722, %v2812
    %v2819 = vadd.f32 %v2723, %v2813
    %v2820 = vadd.f32 %v2724, %v2814
    %v2821 = vadd.f32 %v2725, %v2815
    %v2822 = vadd.f32 %v2726, %v2816
    %v2823 = vadd.f32 %v2727, %v2817
    %v2824 = vrsqrt.pop %v2818
    %v2825 = vmul.f32 %v2818, %v2824
    %vm2826 = vcmp.eq.f32.partialorder %v2818, inf
    %v2827 = vsel %vm2826, %v2818, %v2825
    %vm2828 = vcmp.eq.f32.partialorder %v2818, 0.0
    %v2829 = vand.u32 %v2818, 2147483648
    %v2830 = vsel %vm2828, %v2829, %v2827
    %v2831 = vrsqrt.pop %v2819
    %v2832 = vmul.f32 %v2819, %v2831
    %vm2833 = vcmp.eq.f32.partialorder %v2819, inf
    %v2834 = vsel %vm2833, %v2819, %v2832
    %vm2835 = vcmp.eq.f32.partialorder %v2819, 0.0
    %v2836 = vand.u32 %v2819, 2147483648
    %v2837 = vsel %vm2835, %v2836, %v2834
    %v2838 = vrsqrt.pop %v2820
    %v2839 = vmul.f32 %v2820, %v2838
    %vm2840 = vcmp.eq.f32.partialorder %v2820, inf
    %v2841 = vsel %vm2840, %v2820, %v2839
    %vm2842 = vcmp.eq.f32.partialorder %v2820, 0.0
    %v2843 = vand.u32 %v2820, 2147483648
    %v2844 = vsel %vm2842, %v2843, %v2841
    %v2845 = vrsqrt.pop %v2821
    %v2846 = vmul.f32 %v2821, %v2845
    %vm2847 = vcmp.eq.f32.partialorder %v2821, inf
    %v2848 = vsel %vm2847, %v2821, %v2846
    %vm2849 = vcmp.eq.f32.partialorder %v2821, 0.0
    %v2850 = vand.u32 %v2821, 2147483648
    %v2851 = vsel %vm2849, %v2850, %v2848
    %v2852 = vrsqrt.pop %v2822
    %v2853 = vmul.f32 %v2822, %v2852
    %vm2854 = vcmp.eq.f32.partialorder %v2822, inf
    %v2855 = vsel %vm2854, %v2822, %v2853
    %vm2856 = vcmp.eq.f32.partialorder %v2822, 0.0
    %v2857 = vand.u32 %v2822, 2147483648
    %v2858 = vsel %vm2856, %v2857, %v2855
    %v2859 = vrsqrt.pop %v2823
    %v2860 = vmul.f32 %v2823, %v2859
    %vm2861 = vcmp.eq.f32.partialorder %v2823, inf
    %v2862 = vsel %vm2861, %v2823, %v2860
    %vm2863 = vcmp.eq.f32.partialorder %v2823, 0.0
    %v2864 = vand.u32 %v2823, 2147483648
    %v2865 = vsel %vm2863, %v2864, %v2862
    %v2866 = vadd.f32 %v2628, %v2830
    %v2867 = vadd.f32 %v2629, %v2837
    %v2868 = vadd.f32 %v2630, %v2844
    %v2869 = vadd.f32 %v2631, %v2851
    %v2870 = vadd.f32 %v2632, %v2858
    %v2871 = vadd.f32 %v2633, %v2865
    %s2872 = scalar_lea.vmem %s0, 96
    %v2873 = vld [vmem:[%s2872] sm:$0x3f]
    %s2874 = scalar_lea.vmem %s0, 224
    %v2875 = vld [vmem:[%s2874] sm:$0x3f]
    %v2877 = vcombine.high %v2873, %v2873
    %v2879 = vunpack.c.l.s4 1966171168
    %v2880 = vunpack.c.0.s8 %v2879
    %v2881 = vlaneseq
    %v2882 = vshrl.u32 %v2881, 7
    %v2883 = vsub.s32 %v2880, %v2882
    %v2884 = vrot.slane %v2873, %v2883
    %v2886 = vunpack.c.l.s4 1966171168
    %v2887 = vunpack.c.0.s8 %v2886
    %v2888 = vlaneseq
    %v2889 = vshrl.u32 %v2888, 7
    %v2890 = vsub.s32 %v2887, %v2889
    %v2891 = vrot.slane %v2877, %v2890
    %v2892 = vcombine.high %v2884, %v2884
    %v2893 = vcombine.high %v2891, %v2891
    %v2895 = vunpack.c.l.s4 1966171168
    %v2896 = vunpack.c.0.s8 %v2895
    %v2897 = vlaneseq
    %v2898 = vshrl.u32 %v2897, 7
    %v2899 = vsub.s32 %v2896, %v2898
    %v2900 = vrot.slane %v2884, %v2899
    %v2902 = vunpack.c.l.s4 1966171168
    %v2903 = vunpack.c.0.s8 %v2902
    %v2904 = vlaneseq
    %v2905 = vshrl.u32 %v2904, 7
    %v2906 = vsub.s32 %v2903, %v2905
    %v2907 = vrot.slane %v2891, %v2906
    %v2909 = vunpack.c.l.s4 1966171168
    %v2910 = vunpack.c.0.s8 %v2909
    %v2911 = vlaneseq
    %v2912 = vshrl.u32 %v2911, 7
    %v2913 = vsub.s32 %v2910, %v2912
    %v2914 = vrot.slane %v2892, %v2913
    %v2916 = vunpack.c.l.s4 1966171168
    %v2917 = vunpack.c.0.s8 %v2916
    %v2918 = vlaneseq
    %v2919 = vshrl.u32 %v2918, 7
    %v2920 = vsub.s32 %v2917, %v2919
    %v2921 = vrot.slane %v2893, %v2920
    %v2922 = vcombine.high %v2900, %v2900
    %v2923 = vcombine.high %v2914, %v2914
    %v2924 = vlaneseq
    %v2925 = vshrl.u32 %v2924, 7
    %v2926 = vsub.s32 0, %v2925
    %v2927 = vrot.slane %v2900, %v2926
    %v2928 = vlaneseq
    %v2929 = vshrl.u32 %v2928, 7
    %v2930 = vsub.s32 0, %v2929
    %v2931 = vrot.slane %v2914, %v2930
    %v2932 = vlaneseq
    %v2933 = vshrl.u32 %v2932, 7
    %v2934 = vsub.s32 0, %v2933
    %v2935 = vrot.slane %v2922, %v2934
    %v2936 = vlaneseq
    %v2937 = vshrl.u32 %v2936, 7
    %v2938 = vsub.s32 0, %v2937
    %v2939 = vrot.slane %v2923, %v2938
    %v2940 = vlaneseq
    %v2941 = vshrl.u32 %v2940, 7
    %v2942 = vsub.s32 0, %v2941
    %v2943 = vrot.slane %v2907, %v2942
    %v2944 = vlaneseq
    %v2945 = vshrl.u32 %v2944, 7
    %v2946 = vsub.s32 0, %v2945
    %v2947 = vrot.slane %v2921, %v2946
    %v2954 = vsub.f32 %v2927, %v2873
    %v2955 = vsub.f32 %v2931, %v2873
    %v2956 = vsub.f32 %v2935, %v2873
    %v2957 = vsub.f32 %v2939, %v2873
    %v2958 = vsub.f32 %v2943, %v2873
    %v2959 = vsub.f32 %v2947, %v2873
    %v2960 = vmul.f32 %v2954, %v2954
    %v2961 = vmul.f32 %v2955, %v2955
    %v2962 = vmul.f32 %v2956, %v2956
    %v2963 = vmul.f32 %v2957, %v2957
    %v2964 = vmul.f32 %v2958, %v2958
    %v2965 = vmul.f32 %v2959, %v2959
    %v2967 = vcombine.high %v2875, %v2875
    %v2969 = vunpack.c.l.s4 1966171168
    %v2970 = vunpack.c.0.s8 %v2969
    %v2971 = vlaneseq
    %v2972 = vshrl.u32 %v2971, 7
    %v2973 = vsub.s32 %v2970, %v2972
    %v2974 = vrot.slane %v2875, %v2973
    %v2976 = vunpack.c.l.s4 1966171168
    %v2977 = vunpack.c.0.s8 %v2976
    %v2978 = vlaneseq
    %v2979 = vshrl.u32 %v2978, 7
    %v2980 = vsub.s32 %v2977, %v2979
    %v2981 = vrot.slane %v2967, %v2980
    %v2982 = vcombine.high %v2974, %v2974
    %v2983 = vcombine.high %v2981, %v2981
    %v2985 = vunpack.c.l.s4 1966171168
    %v2986 = vunpack.c.0.s8 %v2985
    %v2987 = vlaneseq
    %v2988 = vshrl.u32 %v2987, 7
    %v2989 = vsub.s32 %v2986, %v2988
    %v2990 = vrot.slane %v2974, %v2989
    %v2992 = vunpack.c.l.s4 1966171168
    %v2993 = vunpack.c.0.s8 %v2992
    %v2994 = vlaneseq
    %v2995 = vshrl.u32 %v2994, 7
    %v2996 = vsub.s32 %v2993, %v2995
    %v2997 = vrot.slane %v2981, %v2996
    %v2999 = vunpack.c.l.s4 1966171168
    %v3000 = vunpack.c.0.s8 %v2999
    %v3001 = vlaneseq
    %v3002 = vshrl.u32 %v3001, 7
    %v3003 = vsub.s32 %v3000, %v3002
    %v3004 = vrot.slane %v2982, %v3003
    %v3006 = vunpack.c.l.s4 1966171168
    %v3007 = vunpack.c.0.s8 %v3006
    %v3008 = vlaneseq
    %v3009 = vshrl.u32 %v3008, 7
    %v3010 = vsub.s32 %v3007, %v3009
    %v3011 = vrot.slane %v2983, %v3010
    %v3012 = vcombine.high %v2990, %v2990
    %v3013 = vcombine.high %v3004, %v3004
    %v3014 = vlaneseq
    %v3015 = vshrl.u32 %v3014, 7
    %v3016 = vsub.s32 0, %v3015
    %v3017 = vrot.slane %v2990, %v3016
    %v3018 = vlaneseq
    %v3019 = vshrl.u32 %v3018, 7
    %v3020 = vsub.s32 0, %v3019
    %v3021 = vrot.slane %v3004, %v3020
    %v3022 = vlaneseq
    %v3023 = vshrl.u32 %v3022, 7
    %v3024 = vsub.s32 0, %v3023
    %v3025 = vrot.slane %v3012, %v3024
    %v3026 = vlaneseq
    %v3027 = vshrl.u32 %v3026, 7
    %v3028 = vsub.s32 0, %v3027
    %v3029 = vrot.slane %v3013, %v3028
    %v3030 = vlaneseq
    %v3031 = vshrl.u32 %v3030, 7
    %v3032 = vsub.s32 0, %v3031
    %v3033 = vrot.slane %v2997, %v3032
    %v3034 = vlaneseq
    %v3035 = vshrl.u32 %v3034, 7
    %v3036 = vsub.s32 0, %v3035
    %v3037 = vrot.slane %v3011, %v3036
    %v3044 = vsub.f32 %v3017, %v2875
    %v3045 = vsub.f32 %v3021, %v2875
    %v3046 = vsub.f32 %v3025, %v2875
    %v3047 = vsub.f32 %v3029, %v2875
    %v3048 = vsub.f32 %v3033, %v2875
    %v3049 = vsub.f32 %v3037, %v2875
    %v3050 = vmul.f32 %v3044, %v3044
    %v3051 = vmul.f32 %v3045, %v3045
    %v3052 = vmul.f32 %v3046, %v3046
    %v3053 = vmul.f32 %v3047, %v3047
    %v3054 = vmul.f32 %v3048, %v3048
    %v3055 = vmul.f32 %v3049, %v3049
    %v3056 = vadd.f32 %v2960, %v3050
    %v3057 = vadd.f32 %v2961, %v3051
    %v3058 = vadd.f32 %v2962, %v3052
    %v3059 = vadd.f32 %v2963, %v3053
    %v3060 = vadd.f32 %v2964, %v3054
    %v3061 = vadd.f32 %v2965, %v3055
    %v3062 = vrsqrt.pop %v3056
    %v3063 = vmul.f32 %v3056, %v3062
    %vm3064 = vcmp.eq.f32.partialorder %v3056, inf
    %v3065 = vsel %vm3064, %v3056, %v3063
    %vm3066 = vcmp.eq.f32.partialorder %v3056, 0.0
    %v3067 = vand.u32 %v3056, 2147483648
    %v3068 = vsel %vm3066, %v3067, %v3065
    %v3069 = vrsqrt.pop %v3057
    %v3070 = vmul.f32 %v3057, %v3069
    %vm3071 = vcmp.eq.f32.partialorder %v3057, inf
    %v3072 = vsel %vm3071, %v3057, %v3070
    %vm3073 = vcmp.eq.f32.partialorder %v3057, 0.0
    %v3074 = vand.u32 %v3057, 2147483648
    %v3075 = vsel %vm3073, %v3074, %v3072
    %v3076 = vrsqrt.pop %v3058
    %v3077 = vmul.f32 %v3058, %v3076
    %vm3078 = vcmp.eq.f32.partialorder %v3058, inf
    %v3079 = vsel %vm3078, %v3058, %v3077
    %vm3080 = vcmp.eq.f32.partialorder %v3058, 0.0
    %v3081 = vand.u32 %v3058, 2147483648
    %v3082 = vsel %vm3080, %v3081, %v3079
    %v3083 = vrsqrt.pop %v3059
    %v3084 = vmul.f32 %v3059, %v3083
    %vm3085 = vcmp.eq.f32.partialorder %v3059, inf
    %v3086 = vsel %vm3085, %v3059, %v3084
    %vm3087 = vcmp.eq.f32.partialorder %v3059, 0.0
    %v3088 = vand.u32 %v3059, 2147483648
    %v3089 = vsel %vm3087, %v3088, %v3086
    %v3090 = vrsqrt.pop %v3060
    %v3091 = vmul.f32 %v3060, %v3090
    %vm3092 = vcmp.eq.f32.partialorder %v3060, inf
    %v3093 = vsel %vm3092, %v3060, %v3091
    %vm3094 = vcmp.eq.f32.partialorder %v3060, 0.0
    %v3095 = vand.u32 %v3060, 2147483648
    %v3096 = vsel %vm3094, %v3095, %v3093
    %v3097 = vrsqrt.pop %v3061
    %v3098 = vmul.f32 %v3061, %v3097
    %vm3099 = vcmp.eq.f32.partialorder %v3061, inf
    %v3100 = vsel %vm3099, %v3061, %v3098
    %vm3101 = vcmp.eq.f32.partialorder %v3061, 0.0
    %v3102 = vand.u32 %v3061, 2147483648
    %v3103 = vsel %vm3101, %v3102, %v3100
    %v3104 = vadd.f32 %v2866, %v3068
    %v3105 = vadd.f32 %v2867, %v3075
    %v3106 = vadd.f32 %v2868, %v3082
    %v3107 = vadd.f32 %v2869, %v3089
    %v3108 = vadd.f32 %v2870, %v3096
    %v3109 = vadd.f32 %v2871, %v3103
    %s3110 = scalar_lea.vmem %s0, 104
    %v3111 = vld [vmem:[%s3110] sm:$0x3f]
    %s3112 = scalar_lea.vmem %s0, 232
    %v3113 = vld [vmem:[%s3112] sm:$0x3f]
    %v3115 = vcombine.high %v3111, %v3111
    %v3117 = vunpack.c.l.s4 1966171168
    %v3118 = vunpack.c.0.s8 %v3117
    %v3119 = vlaneseq
    %v3120 = vshrl.u32 %v3119, 7
    %v3121 = vsub.s32 %v3118, %v3120
    %v3122 = vrot.slane %v3111, %v3121
    %v3124 = vunpack.c.l.s4 1966171168
    %v3125 = vunpack.c.0.s8 %v3124
    %v3126 = vlaneseq
    %v3127 = vshrl.u32 %v3126, 7
    %v3128 = vsub.s32 %v3125, %v3127
    %v3129 = vrot.slane %v3115, %v3128
    %v3130 = vcombine.high %v3122, %v3122
    %v3131 = vcombine.high %v3129, %v3129
    %v3133 = vunpack.c.l.s4 1966171168
    %v3134 = vunpack.c.0.s8 %v3133
    %v3135 = vlaneseq
    %v3136 = vshrl.u32 %v3135, 7
    %v3137 = vsub.s32 %v3134, %v3136
    %v3138 = vrot.slane %v3122, %v3137
    %v3140 = vunpack.c.l.s4 1966171168
    %v3141 = vunpack.c.0.s8 %v3140
    %v3142 = vlaneseq
    %v3143 = vshrl.u32 %v3142, 7
    %v3144 = vsub.s32 %v3141, %v3143
    %v3145 = vrot.slane %v3129, %v3144
    %v3147 = vunpack.c.l.s4 1966171168
    %v3148 = vunpack.c.0.s8 %v3147
    %v3149 = vlaneseq
    %v3150 = vshrl.u32 %v3149, 7
    %v3151 = vsub.s32 %v3148, %v3150
    %v3152 = vrot.slane %v3130, %v3151
    %v3154 = vunpack.c.l.s4 1966171168
    %v3155 = vunpack.c.0.s8 %v3154
    %v3156 = vlaneseq
    %v3157 = vshrl.u32 %v3156, 7
    %v3158 = vsub.s32 %v3155, %v3157
    %v3159 = vrot.slane %v3131, %v3158
    %v3160 = vcombine.high %v3138, %v3138
    %v3161 = vcombine.high %v3152, %v3152
    %v3162 = vlaneseq
    %v3163 = vshrl.u32 %v3162, 7
    %v3164 = vsub.s32 0, %v3163
    %v3165 = vrot.slane %v3138, %v3164
    %v3166 = vlaneseq
    %v3167 = vshrl.u32 %v3166, 7
    %v3168 = vsub.s32 0, %v3167
    %v3169 = vrot.slane %v3152, %v3168
    %v3170 = vlaneseq
    %v3171 = vshrl.u32 %v3170, 7
    %v3172 = vsub.s32 0, %v3171
    %v3173 = vrot.slane %v3160, %v3172
    %v3174 = vlaneseq
    %v3175 = vshrl.u32 %v3174, 7
    %v3176 = vsub.s32 0, %v3175
    %v3177 = vrot.slane %v3161, %v3176
    %v3178 = vlaneseq
    %v3179 = vshrl.u32 %v3178, 7
    %v3180 = vsub.s32 0, %v3179
    %v3181 = vrot.slane %v3145, %v3180
    %v3182 = vlaneseq
    %v3183 = vshrl.u32 %v3182, 7
    %v3184 = vsub.s32 0, %v3183
    %v3185 = vrot.slane %v3159, %v3184
    %v3192 = vsub.f32 %v3165, %v3111
    %v3193 = vsub.f32 %v3169, %v3111
    %v3194 = vsub.f32 %v3173, %v3111
    %v3195 = vsub.f32 %v3177, %v3111
    %v3196 = vsub.f32 %v3181, %v3111
    %v3197 = vsub.f32 %v3185, %v3111
    %v3198 = vmul.f32 %v3192, %v3192
    %v3199 = vmul.f32 %v3193, %v3193
    %v3200 = vmul.f32 %v3194, %v3194
    %v3201 = vmul.f32 %v3195, %v3195
    %v3202 = vmul.f32 %v3196, %v3196
    %v3203 = vmul.f32 %v3197, %v3197
    %v3205 = vcombine.high %v3113, %v3113
    %v3207 = vunpack.c.l.s4 1966171168
    %v3208 = vunpack.c.0.s8 %v3207
    %v3209 = vlaneseq
    %v3210 = vshrl.u32 %v3209, 7
    %v3211 = vsub.s32 %v3208, %v3210
    %v3212 = vrot.slane %v3113, %v3211
    %v3214 = vunpack.c.l.s4 1966171168
    %v3215 = vunpack.c.0.s8 %v3214
    %v3216 = vlaneseq
    %v3217 = vshrl.u32 %v3216, 7
    %v3218 = vsub.s32 %v3215, %v3217
    %v3219 = vrot.slane %v3205, %v3218
    %v3220 = vcombine.high %v3212, %v3212
    %v3221 = vcombine.high %v3219, %v3219
    %v3223 = vunpack.c.l.s4 1966171168
    %v3224 = vunpack.c.0.s8 %v3223
    %v3225 = vlaneseq
    %v3226 = vshrl.u32 %v3225, 7
    %v3227 = vsub.s32 %v3224, %v3226
    %v3228 = vrot.slane %v3212, %v3227
    %v3230 = vunpack.c.l.s4 1966171168
    %v3231 = vunpack.c.0.s8 %v3230
    %v3232 = vlaneseq
    %v3233 = vshrl.u32 %v3232, 7
    %v3234 = vsub.s32 %v3231, %v3233
    %v3235 = vrot.slane %v3219, %v3234
    %v3237 = vunpack.c.l.s4 1966171168
    %v3238 = vunpack.c.0.s8 %v3237
    %v3239 = vlaneseq
    %v3240 = vshrl.u32 %v3239, 7
    %v3241 = vsub.s32 %v3238, %v3240
    %v3242 = vrot.slane %v3220, %v3241
    %v3244 = vunpack.c.l.s4 1966171168
    %v3245 = vunpack.c.0.s8 %v3244
    %v3246 = vlaneseq
    %v3247 = vshrl.u32 %v3246, 7
    %v3248 = vsub.s32 %v3245, %v3247
    %v3249 = vrot.slane %v3221, %v3248
    %v3250 = vcombine.high %v3228, %v3228
    %v3251 = vcombine.high %v3242, %v3242
    %v3252 = vlaneseq
    %v3253 = vshrl.u32 %v3252, 7
    %v3254 = vsub.s32 0, %v3253
    %v3255 = vrot.slane %v3228, %v3254
    %v3256 = vlaneseq
    %v3257 = vshrl.u32 %v3256, 7
    %v3258 = vsub.s32 0, %v3257
    %v3259 = vrot.slane %v3242, %v3258
    %v3260 = vlaneseq
    %v3261 = vshrl.u32 %v3260, 7
    %v3262 = vsub.s32 0, %v3261
    %v3263 = vrot.slane %v3250, %v3262
    %v3264 = vlaneseq
    %v3265 = vshrl.u32 %v3264, 7
    %v3266 = vsub.s32 0, %v3265
    %v3267 = vrot.slane %v3251, %v3266
    %v3268 = vlaneseq
    %v3269 = vshrl.u32 %v3268, 7
    %v3270 = vsub.s32 0, %v3269
    %v3271 = vrot.slane %v3235, %v3270
    %v3272 = vlaneseq
    %v3273 = vshrl.u32 %v3272, 7
    %v3274 = vsub.s32 0, %v3273
    %v3275 = vrot.slane %v3249, %v3274
    %v3282 = vsub.f32 %v3255, %v3113
    %v3283 = vsub.f32 %v3259, %v3113
    %v3284 = vsub.f32 %v3263, %v3113
    %v3285 = vsub.f32 %v3267, %v3113
    %v3286 = vsub.f32 %v3271, %v3113
    %v3287 = vsub.f32 %v3275, %v3113
    %v3288 = vmul.f32 %v3282, %v3282
    %v3289 = vmul.f32 %v3283, %v3283
    %v3290 = vmul.f32 %v3284, %v3284
    %v3291 = vmul.f32 %v3285, %v3285
    %v3292 = vmul.f32 %v3286, %v3286
    %v3293 = vmul.f32 %v3287, %v3287
    %v3294 = vadd.f32 %v3198, %v3288
    %v3295 = vadd.f32 %v3199, %v3289
    %v3296 = vadd.f32 %v3200, %v3290
    %v3297 = vadd.f32 %v3201, %v3291
    %v3298 = vadd.f32 %v3202, %v3292
    %v3299 = vadd.f32 %v3203, %v3293
    %v3300 = vrsqrt.pop %v3294
    %v3301 = vmul.f32 %v3294, %v3300
    %vm3302 = vcmp.eq.f32.partialorder %v3294, inf
    %v3303 = vsel %vm3302, %v3294, %v3301
    %vm3304 = vcmp.eq.f32.partialorder %v3294, 0.0
    %v3305 = vand.u32 %v3294, 2147483648
    %v3306 = vsel %vm3304, %v3305, %v3303
    %v3307 = vrsqrt.pop %v3295
    %v3308 = vmul.f32 %v3295, %v3307
    %vm3309 = vcmp.eq.f32.partialorder %v3295, inf
    %v3310 = vsel %vm3309, %v3295, %v3308
    %vm3311 = vcmp.eq.f32.partialorder %v3295, 0.0
    %v3312 = vand.u32 %v3295, 2147483648
    %v3313 = vsel %vm3311, %v3312, %v3310
    %v3314 = vrsqrt.pop %v3296
    %v3315 = vmul.f32 %v3296, %v3314
    %vm3316 = vcmp.eq.f32.partialorder %v3296, inf
    %v3317 = vsel %vm3316, %v3296, %v3315
    %vm3318 = vcmp.eq.f32.partialorder %v3296, 0.0
    %v3319 = vand.u32 %v3296, 2147483648
    %v3320 = vsel %vm3318, %v3319, %v3317
    %v3321 = vrsqrt.pop %v3297
    %v3322 = vmul.f32 %v3297, %v3321
    %vm3323 = vcmp.eq.f32.partialorder %v3297, inf
    %v3324 = vsel %vm3323, %v3297, %v3322
    %vm3325 = vcmp.eq.f32.partialorder %v3297, 0.0
    %v3326 = vand.u32 %v3297, 2147483648
    %v3327 = vsel %vm3325, %v3326, %v3324
    %v3328 = vrsqrt.pop %v3298
    %v3329 = vmul.f32 %v3298, %v3328
    %vm3330 = vcmp.eq.f32.partialorder %v3298, inf
    %v3331 = vsel %vm3330, %v3298, %v3329
    %vm3332 = vcmp.eq.f32.partialorder %v3298, 0.0
    %v3333 = vand.u32 %v3298, 2147483648
    %v3334 = vsel %vm3332, %v3333, %v3331
    %v3335 = vrsqrt.pop %v3299
    %v3336 = vmul.f32 %v3299, %v3335
    %vm3337 = vcmp.eq.f32.partialorder %v3299, inf
    %v3338 = vsel %vm3337, %v3299, %v3336
    %vm3339 = vcmp.eq.f32.partialorder %v3299, 0.0
    %v3340 = vand.u32 %v3299, 2147483648
    %v3341 = vsel %vm3339, %v3340, %v3338
    %v3342 = vadd.f32 %v3104, %v3306
    %v3343 = vadd.f32 %v3105, %v3313
    %v3344 = vadd.f32 %v3106, %v3320
    %v3345 = vadd.f32 %v3107, %v3327
    %v3346 = vadd.f32 %v3108, %v3334
    %v3347 = vadd.f32 %v3109, %v3341
    %s3348 = scalar_lea.vmem %s0, 112
    %v3349 = vld [vmem:[%s3348] sm:$0x3f]
    %s3350 = scalar_lea.vmem %s0, 240
    %v3351 = vld [vmem:[%s3350] sm:$0x3f]
    %v3353 = vcombine.high %v3349, %v3349
    %v3355 = vunpack.c.l.s4 1966171168
    %v3356 = vunpack.c.0.s8 %v3355
    %v3357 = vlaneseq
    %v3358 = vshrl.u32 %v3357, 7
    %v3359 = vsub.s32 %v3356, %v3358
    %v3360 = vrot.slane %v3349, %v3359
    %v3362 = vunpack.c.l.s4 1966171168
    %v3363 = vunpack.c.0.s8 %v3362
    %v3364 = vlaneseq
    %v3365 = vshrl.u32 %v3364, 7
    %v3366 = vsub.s32 %v3363, %v3365
    %v3367 = vrot.slane %v3353, %v3366
    %v3368 = vcombine.high %v3360, %v3360
    %v3369 = vcombine.high %v3367, %v3367
    %v3371 = vunpack.c.l.s4 1966171168
    %v3372 = vunpack.c.0.s8 %v3371
    %v3373 = vlaneseq
    %v3374 = vshrl.u32 %v3373, 7
    %v3375 = vsub.s32 %v3372, %v3374
    %v3376 = vrot.slane %v3360, %v3375
    %v3378 = vunpack.c.l.s4 1966171168
    %v3379 = vunpack.c.0.s8 %v3378
    %v3380 = vlaneseq
    %v3381 = vshrl.u32 %v3380, 7
    %v3382 = vsub.s32 %v3379, %v3381
    %v3383 = vrot.slane %v3367, %v3382
    %v3385 = vunpack.c.l.s4 1966171168
    %v3386 = vunpack.c.0.s8 %v3385
    %v3387 = vlaneseq
    %v3388 = vshrl.u32 %v3387, 7
    %v3389 = vsub.s32 %v3386, %v3388
    %v3390 = vrot.slane %v3368, %v3389
    %v3392 = vunpack.c.l.s4 1966171168
    %v3393 = vunpack.c.0.s8 %v3392
    %v3394 = vlaneseq
    %v3395 = vshrl.u32 %v3394, 7
    %v3396 = vsub.s32 %v3393, %v3395
    %v3397 = vrot.slane %v3369, %v3396
    %v3398 = vcombine.high %v3376, %v3376
    %v3399 = vcombine.high %v3390, %v3390
    %v3400 = vlaneseq
    %v3401 = vshrl.u32 %v3400, 7
    %v3402 = vsub.s32 0, %v3401
    %v3403 = vrot.slane %v3376, %v3402
    %v3404 = vlaneseq
    %v3405 = vshrl.u32 %v3404, 7
    %v3406 = vsub.s32 0, %v3405
    %v3407 = vrot.slane %v3390, %v3406
    %v3408 = vlaneseq
    %v3409 = vshrl.u32 %v3408, 7
    %v3410 = vsub.s32 0, %v3409
    %v3411 = vrot.slane %v3398, %v3410
    %v3412 = vlaneseq
    %v3413 = vshrl.u32 %v3412, 7
    %v3414 = vsub.s32 0, %v3413
    %v3415 = vrot.slane %v3399, %v3414
    %v3416 = vlaneseq
    %v3417 = vshrl.u32 %v3416, 7
    %v3418 = vsub.s32 0, %v3417
    %v3419 = vrot.slane %v3383, %v3418
    %v3420 = vlaneseq
    %v3421 = vshrl.u32 %v3420, 7
    %v3422 = vsub.s32 0, %v3421
    %v3423 = vrot.slane %v3397, %v3422
    %v3430 = vsub.f32 %v3403, %v3349
    %v3431 = vsub.f32 %v3407, %v3349
    %v3432 = vsub.f32 %v3411, %v3349
    %v3433 = vsub.f32 %v3415, %v3349
    %v3434 = vsub.f32 %v3419, %v3349
    %v3435 = vsub.f32 %v3423, %v3349
    %v3436 = vmul.f32 %v3430, %v3430
    %v3437 = vmul.f32 %v3431, %v3431
    %v3438 = vmul.f32 %v3432, %v3432
    %v3439 = vmul.f32 %v3433, %v3433
    %v3440 = vmul.f32 %v3434, %v3434
    %v3441 = vmul.f32 %v3435, %v3435
    %v3443 = vcombine.high %v3351, %v3351
    %v3445 = vunpack.c.l.s4 1966171168
    %v3446 = vunpack.c.0.s8 %v3445
    %v3447 = vlaneseq
    %v3448 = vshrl.u32 %v3447, 7
    %v3449 = vsub.s32 %v3446, %v3448
    %v3450 = vrot.slane %v3351, %v3449
    %v3452 = vunpack.c.l.s4 1966171168
    %v3453 = vunpack.c.0.s8 %v3452
    %v3454 = vlaneseq
    %v3455 = vshrl.u32 %v3454, 7
    %v3456 = vsub.s32 %v3453, %v3455
    %v3457 = vrot.slane %v3443, %v3456
    %v3458 = vcombine.high %v3450, %v3450
    %v3459 = vcombine.high %v3457, %v3457
    %v3461 = vunpack.c.l.s4 1966171168
    %v3462 = vunpack.c.0.s8 %v3461
    %v3463 = vlaneseq
    %v3464 = vshrl.u32 %v3463, 7
    %v3465 = vsub.s32 %v3462, %v3464
    %v3466 = vrot.slane %v3450, %v3465
    %v3468 = vunpack.c.l.s4 1966171168
    %v3469 = vunpack.c.0.s8 %v3468
    %v3470 = vlaneseq
    %v3471 = vshrl.u32 %v3470, 7
    %v3472 = vsub.s32 %v3469, %v3471
    %v3473 = vrot.slane %v3457, %v3472
    %v3475 = vunpack.c.l.s4 1966171168
    %v3476 = vunpack.c.0.s8 %v3475
    %v3477 = vlaneseq
    %v3478 = vshrl.u32 %v3477, 7
    %v3479 = vsub.s32 %v3476, %v3478
    %v3480 = vrot.slane %v3458, %v3479
    %v3482 = vunpack.c.l.s4 1966171168
    %v3483 = vunpack.c.0.s8 %v3482
    %v3484 = vlaneseq
    %v3485 = vshrl.u32 %v3484, 7
    %v3486 = vsub.s32 %v3483, %v3485
    %v3487 = vrot.slane %v3459, %v3486
    %v3488 = vcombine.high %v3466, %v3466
    %v3489 = vcombine.high %v3480, %v3480
    %v3490 = vlaneseq
    %v3491 = vshrl.u32 %v3490, 7
    %v3492 = vsub.s32 0, %v3491
    %v3493 = vrot.slane %v3466, %v3492
    %v3494 = vlaneseq
    %v3495 = vshrl.u32 %v3494, 7
    %v3496 = vsub.s32 0, %v3495
    %v3497 = vrot.slane %v3480, %v3496
    %v3498 = vlaneseq
    %v3499 = vshrl.u32 %v3498, 7
    %v3500 = vsub.s32 0, %v3499
    %v3501 = vrot.slane %v3488, %v3500
    %v3502 = vlaneseq
    %v3503 = vshrl.u32 %v3502, 7
    %v3504 = vsub.s32 0, %v3503
    %v3505 = vrot.slane %v3489, %v3504
    %v3506 = vlaneseq
    %v3507 = vshrl.u32 %v3506, 7
    %v3508 = vsub.s32 0, %v3507
    %v3509 = vrot.slane %v3473, %v3508
    %v3510 = vlaneseq
    %v3511 = vshrl.u32 %v3510, 7
    %v3512 = vsub.s32 0, %v3511
    %v3513 = vrot.slane %v3487, %v3512
    %v3520 = vsub.f32 %v3493, %v3351
    %v3521 = vsub.f32 %v3497, %v3351
    %v3522 = vsub.f32 %v3501, %v3351
    %v3523 = vsub.f32 %v3505, %v3351
    %v3524 = vsub.f32 %v3509, %v3351
    %v3525 = vsub.f32 %v3513, %v3351
    %v3526 = vmul.f32 %v3520, %v3520
    %v3527 = vmul.f32 %v3521, %v3521
    %v3528 = vmul.f32 %v3522, %v3522
    %v3529 = vmul.f32 %v3523, %v3523
    %v3530 = vmul.f32 %v3524, %v3524
    %v3531 = vmul.f32 %v3525, %v3525
    %v3532 = vadd.f32 %v3436, %v3526
    %v3533 = vadd.f32 %v3437, %v3527
    %v3534 = vadd.f32 %v3438, %v3528
    %v3535 = vadd.f32 %v3439, %v3529
    %v3536 = vadd.f32 %v3440, %v3530
    %v3537 = vadd.f32 %v3441, %v3531
    %v3538 = vrsqrt.pop %v3532
    %v3539 = vmul.f32 %v3532, %v3538
    %vm3540 = vcmp.eq.f32.partialorder %v3532, inf
    %v3541 = vsel %vm3540, %v3532, %v3539
    %vm3542 = vcmp.eq.f32.partialorder %v3532, 0.0
    %v3543 = vand.u32 %v3532, 2147483648
    %v3544 = vsel %vm3542, %v3543, %v3541
    %v3545 = vrsqrt.pop %v3533
    %v3546 = vmul.f32 %v3533, %v3545
    %vm3547 = vcmp.eq.f32.partialorder %v3533, inf
    %v3548 = vsel %vm3547, %v3533, %v3546
    %vm3549 = vcmp.eq.f32.partialorder %v3533, 0.0
    %v3550 = vand.u32 %v3533, 2147483648
    %v3551 = vsel %vm3549, %v3550, %v3548
    %v3552 = vrsqrt.pop %v3534
    %v3553 = vmul.f32 %v3534, %v3552
    %vm3554 = vcmp.eq.f32.partialorder %v3534, inf
    %v3555 = vsel %vm3554, %v3534, %v3553
    %vm3556 = vcmp.eq.f32.partialorder %v3534, 0.0
    %v3557 = vand.u32 %v3534, 2147483648
    %v3558 = vsel %vm3556, %v3557, %v3555
    %v3559 = vrsqrt.pop %v3535
    %v3560 = vmul.f32 %v3535, %v3559
    %vm3561 = vcmp.eq.f32.partialorder %v3535, inf
    %v3562 = vsel %vm3561, %v3535, %v3560
    %vm3563 = vcmp.eq.f32.partialorder %v3535, 0.0
    %v3564 = vand.u32 %v3535, 2147483648
    %v3565 = vsel %vm3563, %v3564, %v3562
    %v3566 = vrsqrt.pop %v3536
    %v3567 = vmul.f32 %v3536, %v3566
    %vm3568 = vcmp.eq.f32.partialorder %v3536, inf
    %v3569 = vsel %vm3568, %v3536, %v3567
    %vm3570 = vcmp.eq.f32.partialorder %v3536, 0.0
    %v3571 = vand.u32 %v3536, 2147483648
    %v3572 = vsel %vm3570, %v3571, %v3569
    %v3573 = vrsqrt.pop %v3537
    %v3574 = vmul.f32 %v3537, %v3573
    %vm3575 = vcmp.eq.f32.partialorder %v3537, inf
    %v3576 = vsel %vm3575, %v3537, %v3574
    %vm3577 = vcmp.eq.f32.partialorder %v3537, 0.0
    %v3578 = vand.u32 %v3537, 2147483648
    %v3579 = vsel %vm3577, %v3578, %v3576
    %v3580 = vadd.f32 %v3342, %v3544
    %v3581 = vadd.f32 %v3343, %v3551
    %v3582 = vadd.f32 %v3344, %v3558
    %v3583 = vadd.f32 %v3345, %v3565
    %v3584 = vadd.f32 %v3346, %v3572
    %v3585 = vadd.f32 %v3347, %v3579
    %s3586 = scalar_lea.vmem %s0, 120
    %v3587 = vld [vmem:[%s3586] sm:$0x3f]
    %s3588 = scalar_lea.vmem %s0, 248
    %v3589 = vld [vmem:[%s3588] sm:$0x3f]
    %v3591 = vcombine.high %v3587, %v3587
    %v3593 = vunpack.c.l.s4 1966171168
    %v3594 = vunpack.c.0.s8 %v3593
    %v3595 = vlaneseq
    %v3596 = vshrl.u32 %v3595, 7
    %v3597 = vsub.s32 %v3594, %v3596
    %v3598 = vrot.slane %v3587, %v3597
    %v3600 = vunpack.c.l.s4 1966171168
    %v3601 = vunpack.c.0.s8 %v3600
    %v3602 = vlaneseq
    %v3603 = vshrl.u32 %v3602, 7
    %v3604 = vsub.s32 %v3601, %v3603
    %v3605 = vrot.slane %v3591, %v3604
    %v3606 = vcombine.high %v3598, %v3598
    %v3607 = vcombine.high %v3605, %v3605
    %v3609 = vunpack.c.l.s4 1966171168
    %v3610 = vunpack.c.0.s8 %v3609
    %v3611 = vlaneseq
    %v3612 = vshrl.u32 %v3611, 7
    %v3613 = vsub.s32 %v3610, %v3612
    %v3614 = vrot.slane %v3598, %v3613
    %v3616 = vunpack.c.l.s4 1966171168
    %v3617 = vunpack.c.0.s8 %v3616
    %v3618 = vlaneseq
    %v3619 = vshrl.u32 %v3618, 7
    %v3620 = vsub.s32 %v3617, %v3619
    %v3621 = vrot.slane %v3605, %v3620
    %v3623 = vunpack.c.l.s4 1966171168
    %v3624 = vunpack.c.0.s8 %v3623
    %v3625 = vlaneseq
    %v3626 = vshrl.u32 %v3625, 7
    %v3627 = vsub.s32 %v3624, %v3626
    %v3628 = vrot.slane %v3606, %v3627
    %v3630 = vunpack.c.l.s4 1966171168
    %v3631 = vunpack.c.0.s8 %v3630
    %v3632 = vlaneseq
    %v3633 = vshrl.u32 %v3632, 7
    %v3634 = vsub.s32 %v3631, %v3633
    %v3635 = vrot.slane %v3607, %v3634
    %v3636 = vcombine.high %v3614, %v3614
    %v3637 = vcombine.high %v3628, %v3628
    %v3638 = vlaneseq
    %v3639 = vshrl.u32 %v3638, 7
    %v3640 = vsub.s32 0, %v3639
    %v3641 = vrot.slane %v3614, %v3640
    %v3642 = vlaneseq
    %v3643 = vshrl.u32 %v3642, 7
    %v3644 = vsub.s32 0, %v3643
    %v3645 = vrot.slane %v3628, %v3644
    %v3646 = vlaneseq
    %v3647 = vshrl.u32 %v3646, 7
    %v3648 = vsub.s32 0, %v3647
    %v3649 = vrot.slane %v3636, %v3648
    %v3650 = vlaneseq
    %v3651 = vshrl.u32 %v3650, 7
    %v3652 = vsub.s32 0, %v3651
    %v3653 = vrot.slane %v3637, %v3652
    %v3654 = vlaneseq
    %v3655 = vshrl.u32 %v3654, 7
    %v3656 = vsub.s32 0, %v3655
    %v3657 = vrot.slane %v3621, %v3656
    %v3658 = vlaneseq
    %v3659 = vshrl.u32 %v3658, 7
    %v3660 = vsub.s32 0, %v3659
    %v3661 = vrot.slane %v3635, %v3660
    %v3668 = vsub.f32 %v3641, %v3587
    %v3669 = vsub.f32 %v3645, %v3587
    %v3670 = vsub.f32 %v3649, %v3587
    %v3671 = vsub.f32 %v3653, %v3587
    %v3672 = vsub.f32 %v3657, %v3587
    %v3673 = vsub.f32 %v3661, %v3587
    %v3674 = vmul.f32 %v3668, %v3668
    %v3675 = vmul.f32 %v3669, %v3669
    %v3676 = vmul.f32 %v3670, %v3670
    %v3677 = vmul.f32 %v3671, %v3671
    %v3678 = vmul.f32 %v3672, %v3672
    %v3679 = vmul.f32 %v3673, %v3673
    %v3681 = vcombine.high %v3589, %v3589
    %v3683 = vunpack.c.l.s4 1966171168
    %v3684 = vunpack.c.0.s8 %v3683
    %v3685 = vlaneseq
    %v3686 = vshrl.u32 %v3685, 7
    %v3687 = vsub.s32 %v3684, %v3686
    %v3688 = vrot.slane %v3589, %v3687
    %v3690 = vunpack.c.l.s4 1966171168
    %v3691 = vunpack.c.0.s8 %v3690
    %v3692 = vlaneseq
    %v3693 = vshrl.u32 %v3692, 7
    %v3694 = vsub.s32 %v3691, %v3693
    %v3695 = vrot.slane %v3681, %v3694
    %v3696 = vcombine.high %v3688, %v3688
    %v3697 = vcombine.high %v3695, %v3695
    %v3699 = vunpack.c.l.s4 1966171168
    %v3700 = vunpack.c.0.s8 %v3699
    %v3701 = vlaneseq
    %v3702 = vshrl.u32 %v3701, 7
    %v3703 = vsub.s32 %v3700, %v3702
    %v3704 = vrot.slane %v3688, %v3703
    %v3706 = vunpack.c.l.s4 1966171168
    %v3707 = vunpack.c.0.s8 %v3706
    %v3708 = vlaneseq
    %v3709 = vshrl.u32 %v3708, 7
    %v3710 = vsub.s32 %v3707, %v3709
    %v3711 = vrot.slane %v3695, %v3710
    %v3713 = vunpack.c.l.s4 1966171168
    %v3714 = vunpack.c.0.s8 %v3713
    %v3715 = vlaneseq
    %v3716 = vshrl.u32 %v3715, 7
    %v3717 = vsub.s32 %v3714, %v3716
    %v3718 = vrot.slane %v3696, %v3717
    %v3720 = vunpack.c.l.s4 1966171168
    %v3721 = vunpack.c.0.s8 %v3720
    %v3722 = vlaneseq
    %v3723 = vshrl.u32 %v3722, 7
    %v3724 = vsub.s32 %v3721, %v3723
    %v3725 = vrot.slane %v3697, %v3724
    %v3726 = vcombine.high %v3704, %v3704
    %v3727 = vcombine.high %v3718, %v3718
    %v3728 = vlaneseq
    %v3729 = vshrl.u32 %v3728, 7
    %v3730 = vsub.s32 0, %v3729
    %v3731 = vrot.slane %v3704, %v3730
    %v3732 = vlaneseq
    %v3733 = vshrl.u32 %v3732, 7
    %v3734 = vsub.s32 0, %v3733
    %v3735 = vrot.slane %v3718, %v3734
    %v3736 = vlaneseq
    %v3737 = vshrl.u32 %v3736, 7
    %v3738 = vsub.s32 0, %v3737
    %v3739 = vrot.slane %v3726, %v3738
    %v3740 = vlaneseq
    %v3741 = vshrl.u32 %v3740, 7
    %v3742 = vsub.s32 0, %v3741
    %v3743 = vrot.slane %v3727, %v3742
    %v3744 = vlaneseq
    %v3745 = vshrl.u32 %v3744, 7
    %v3746 = vsub.s32 0, %v3745
    %v3747 = vrot.slane %v3711, %v3746
    %v3748 = vlaneseq
    %v3749 = vshrl.u32 %v3748, 7
    %v3750 = vsub.s32 0, %v3749
    %v3751 = vrot.slane %v3725, %v3750
    %v3758 = vsub.f32 %v3731, %v3589
    %v3759 = vsub.f32 %v3735, %v3589
    %v3760 = vsub.f32 %v3739, %v3589
    %v3761 = vsub.f32 %v3743, %v3589
    %v3762 = vsub.f32 %v3747, %v3589
    %v3763 = vsub.f32 %v3751, %v3589
    %v3764 = vmul.f32 %v3758, %v3758
    %v3765 = vmul.f32 %v3759, %v3759
    %v3766 = vmul.f32 %v3760, %v3760
    %v3767 = vmul.f32 %v3761, %v3761
    %v3768 = vmul.f32 %v3762, %v3762
    %v3769 = vmul.f32 %v3763, %v3763
    %v3770 = vadd.f32 %v3674, %v3764
    %v3771 = vadd.f32 %v3675, %v3765
    %v3772 = vadd.f32 %v3676, %v3766
    %v3773 = vadd.f32 %v3677, %v3767
    %v3774 = vadd.f32 %v3678, %v3768
    %v3775 = vadd.f32 %v3679, %v3769
    %v3776 = vrsqrt.pop %v3770
    %v3777 = vmul.f32 %v3770, %v3776
    %vm3778 = vcmp.eq.f32.partialorder %v3770, inf
    %v3779 = vsel %vm3778, %v3770, %v3777
    %vm3780 = vcmp.eq.f32.partialorder %v3770, 0.0
    %v3781 = vand.u32 %v3770, 2147483648
    %v3782 = vsel %vm3780, %v3781, %v3779
    %v3783 = vrsqrt.pop %v3771
    %v3784 = vmul.f32 %v3771, %v3783
    %vm3785 = vcmp.eq.f32.partialorder %v3771, inf
    %v3786 = vsel %vm3785, %v3771, %v3784
    %vm3787 = vcmp.eq.f32.partialorder %v3771, 0.0
    %v3788 = vand.u32 %v3771, 2147483648
    %v3789 = vsel %vm3787, %v3788, %v3786
    %v3790 = vrsqrt.pop %v3772
    %v3791 = vmul.f32 %v3772, %v3790
    %vm3792 = vcmp.eq.f32.partialorder %v3772, inf
    %v3793 = vsel %vm3792, %v3772, %v3791
    %vm3794 = vcmp.eq.f32.partialorder %v3772, 0.0
    %v3795 = vand.u32 %v3772, 2147483648
    %v3796 = vsel %vm3794, %v3795, %v3793
    %v3797 = vrsqrt.pop %v3773
    %v3798 = vmul.f32 %v3773, %v3797
    %vm3799 = vcmp.eq.f32.partialorder %v3773, inf
    %v3800 = vsel %vm3799, %v3773, %v3798
    %vm3801 = vcmp.eq.f32.partialorder %v3773, 0.0
    %v3802 = vand.u32 %v3773, 2147483648
    %v3803 = vsel %vm3801, %v3802, %v3800
    %v3804 = vrsqrt.pop %v3774
    %v3805 = vmul.f32 %v3774, %v3804
    %vm3806 = vcmp.eq.f32.partialorder %v3774, inf
    %v3807 = vsel %vm3806, %v3774, %v3805
    %vm3808 = vcmp.eq.f32.partialorder %v3774, 0.0
    %v3809 = vand.u32 %v3774, 2147483648
    %v3810 = vsel %vm3808, %v3809, %v3807
    %v3811 = vrsqrt.pop %v3775
    %v3812 = vmul.f32 %v3775, %v3811
    %vm3813 = vcmp.eq.f32.partialorder %v3775, inf
    %v3814 = vsel %vm3813, %v3775, %v3812
    %vm3815 = vcmp.eq.f32.partialorder %v3775, 0.0
    %v3816 = vand.u32 %v3775, 2147483648
    %v3817 = vsel %vm3815, %v3816, %v3814
    %v3818 = vadd.f32 %v3580, %v3782
    %v3819 = vadd.f32 %v3581, %v3789
    %v3820 = vadd.f32 %v3582, %v3796
    %v3821 = vadd.f32 %v3583, %v3803
    %v3822 = vadd.f32 %v3584, %v3810
    %v3823 = vadd.f32 %v3585, %v3817
    %v3825 = vlaneseq
    %v3826 = vshrl.u32 %v3825, 7
    %v3827 = vsub.s32 0, %v3826
    %v3828 = vrot.slane %v15, %v3827
    %vm3830 = vcmp.lt.f32.partialorder %v3818, %v3828
    %vm3831 = vcmp.lt.f32.partialorder %v3819, %v3828
    %vm3832 = vcmp.lt.f32.partialorder %v3820, %v3828
    %vm3833 = vcmp.lt.f32.partialorder %v3821, %v3828
    %vm3834 = vcmp.lt.f32.partialorder %v3822, %v3828
    %vm3835 = vcmp.lt.f32.partialorder %v3823, %v3828
    %v3836 = vlaneseq
    %v3837 = vshrl.u32 %v3836, 7
    %v3839 = vcombine.high %v16, %v16
    %v3841 = vunpack.c.l.s4 1966171168
    %v3842 = vunpack.c.0.s8 %v3841
    %v3843 = vlaneseq
    %v3844 = vshrl.u32 %v3843, 7
    %v3845 = vsub.s32 %v3842, %v3844
    %v3846 = vrot.slane %v16, %v3845
    %v3848 = vunpack.c.l.s4 1966171168
    %v3849 = vunpack.c.0.s8 %v3848
    %v3850 = vlaneseq
    %v3851 = vshrl.u32 %v3850, 7
    %v3852 = vsub.s32 %v3849, %v3851
    %v3853 = vrot.slane %v3839, %v3852
    %v3854 = vcombine.high %v3846, %v3846
    %v3855 = vcombine.high %v3853, %v3853
    %v3857 = vunpack.c.l.s4 1966171168
    %v3858 = vunpack.c.0.s8 %v3857
    %v3859 = vlaneseq
    %v3860 = vshrl.u32 %v3859, 7
    %v3861 = vsub.s32 %v3858, %v3860
    %v3862 = vrot.slane %v3846, %v3861
    %v3864 = vunpack.c.l.s4 1966171168
    %v3865 = vunpack.c.0.s8 %v3864
    %v3866 = vlaneseq
    %v3867 = vshrl.u32 %v3866, 7
    %v3868 = vsub.s32 %v3865, %v3867
    %v3869 = vrot.slane %v3853, %v3868
    %v3871 = vunpack.c.l.s4 1966171168
    %v3872 = vunpack.c.0.s8 %v3871
    %v3873 = vlaneseq
    %v3874 = vshrl.u32 %v3873, 7
    %v3875 = vsub.s32 %v3872, %v3874
    %v3876 = vrot.slane %v3854, %v3875
    %v3878 = vunpack.c.l.s4 1966171168
    %v3879 = vunpack.c.0.s8 %v3878
    %v3880 = vlaneseq
    %v3881 = vshrl.u32 %v3880, 7
    %v3882 = vsub.s32 %v3879, %v3881
    %v3883 = vrot.slane %v3855, %v3882
    %v3884 = vcombine.high %v3862, %v3862
    %v3885 = vcombine.high %v3876, %v3876
    %v3886 = vlaneseq
    %v3887 = vshrl.u32 %v3886, 7
    %v3888 = vsub.s32 0, %v3887
    %v3889 = vrot.slane %v3862, %v3888
    %v3890 = vlaneseq
    %v3891 = vshrl.u32 %v3890, 7
    %v3892 = vsub.s32 0, %v3891
    %v3893 = vrot.slane %v3876, %v3892
    %v3894 = vlaneseq
    %v3895 = vshrl.u32 %v3894, 7
    %v3896 = vsub.s32 0, %v3895
    %v3897 = vrot.slane %v3884, %v3896
    %v3898 = vlaneseq
    %v3899 = vshrl.u32 %v3898, 7
    %v3900 = vsub.s32 0, %v3899
    %v3901 = vrot.slane %v3885, %v3900
    %v3902 = vlaneseq
    %v3903 = vshrl.u32 %v3902, 7
    %v3904 = vsub.s32 0, %v3903
    %v3905 = vrot.slane %v3869, %v3904
    %v3906 = vlaneseq
    %v3907 = vshrl.u32 %v3906, 7
    %v3908 = vsub.s32 0, %v3907
    %v3909 = vrot.slane %v3883, %v3908
    %vm3916 = vcmp.gt.f32.partialorder %v3889, %v16
    %vm3917 = vcmp.gt.f32.partialorder %v3893, %v16
    %vm3918 = vcmp.gt.f32.partialorder %v3897, %v16
    %vm3919 = vcmp.gt.f32.partialorder %v3901, %v16
    %vm3920 = vcmp.gt.f32.partialorder %v3905, %v16
    %vm3921 = vcmp.gt.f32.partialorder %v3909, %v16
    %vm3922 = vcmp.eq.f32.partialorder %v3889, %v16
    %vm3923 = vcmp.eq.f32.partialorder %v3893, %v16
    %vm3924 = vcmp.eq.f32.partialorder %v3897, %v16
    %vm3925 = vcmp.eq.f32.partialorder %v3901, %v16
    %vm3926 = vcmp.eq.f32.partialorder %v3905, %v16
    %vm3927 = vcmp.eq.f32.partialorder %v3909, %v16
    %vm3928 = vcmp.gt.s32.totalorder %v3837, 0
    %vm3929 = vcmp.gt.s32.totalorder %v3837, 1
    %vm3930 = vcmp.gt.s32.totalorder %v3837, 2
    %vm3931 = vcmp.gt.s32.totalorder %v3837, 3
    %vm3932 = vcmp.gt.s32.totalorder %v3837, 4
    %vm3933 = vcmp.gt.s32.totalorder %v3837, 5
    %vm3934 = vmand %vm3922, %vm3928
    %vm3935 = vmand %vm3923, %vm3929
    %vm3936 = vmand %vm3924, %vm3930
    %vm3937 = vmand %vm3925, %vm3931
    %vm3938 = vmand %vm3926, %vm3932
    %vm3939 = vmand %vm3927, %vm3933
    %vm3940 = vmor %vm3916, %vm3934
    %vm3941 = vmor %vm3917, %vm3935
    %vm3942 = vmor %vm3918, %vm3936
    %vm3943 = vmor %vm3919, %vm3937
    %vm3944 = vmor %vm3920, %vm3938
    %vm3945 = vmor %vm3921, %vm3939
    %v3946 = vsel %vm3940, 1, 0
    %v3947 = vsel %vm3941, 1, 0
    %v3948 = vsel %vm3942, 1, 0
    %v3949 = vsel %vm3943, 1, 0
    %v3950 = vsel %vm3944, 1, 0
    %v3951 = vsel %vm3945, 1, 0
    %vm3952 = vcmask 1045504
    %v3953 = vsel %vm3952, %v3946, 0
    %v3954 = vsel %vm3952, %v3947, 0
    %v3955 = vsel %vm3952, %v3948, 0
    %v3956 = vsel %vm3952, %v3949, 0
    %v3957 = vsel %vm3952, %v3950, 0
    %v3958 = vadd.s32 %v3953, %v3957
    %v3959 = vsel %vm3952, %v3951, 0
    %v3960 = vadd.s32 %v3954, %v3959
    %v3961 = vadd.s32 %v3958, %v3960
    %v3962 = vadd.s32 %v3955, %v3956
    %v3963 = vadd.s32 %v3961, %v3962
    %vm3964 = vcmp.eq.s32.totalorder %v3963, 0
    %v3965 = vsel %vm3964, %v16, 0.0
    %v3966 = vsel %vm3952, %v3965, 0.0
    %v3967 = vrot.slane %v3966, 4
    %v3968 = vadd.f32 %v3966, %v3967
    %v3969 = vrot.slane %v3968, 2
    %v3970 = vadd.f32 %v3968, %v3969
    %v3971 = vrot.slane %v3970, 1
    %v3972 = vadd.f32 %v3970, %v3971
    %v3973 = vsel %vm3964, 1, 0
    %v3974 = vcombine.high %v3973, %v3973
    %v3976 = vunpack.c.l.s4 1966171168
    %v3977 = vunpack.c.0.s8 %v3976
    %v3978 = vlaneseq
    %v3979 = vshrl.u32 %v3978, 7
    %v3980 = vsub.s32 %v3977, %v3979
    %v3981 = vrot.slane %v3973, %v3980
    %v3983 = vunpack.c.l.s4 1966171168
    %v3984 = vunpack.c.0.s8 %v3983
    %v3985 = vlaneseq
    %v3986 = vshrl.u32 %v3985, 7
    %v3987 = vsub.s32 %v3984, %v3986
    %v3988 = vrot.slane %v3974, %v3987
    %v3989 = vcombine.high %v3981, %v3981
    %v3990 = vcombine.high %v3988, %v3988
    %v3992 = vunpack.c.l.s4 1966171168
    %v3993 = vunpack.c.0.s8 %v3992
    %v3994 = vlaneseq
    %v3995 = vshrl.u32 %v3994, 7
    %v3996 = vsub.s32 %v3993, %v3995
    %v3997 = vrot.slane %v3981, %v3996
    %v3999 = vunpack.c.l.s4 1966171168
    %v4000 = vunpack.c.0.s8 %v3999
    %v4001 = vlaneseq
    %v4002 = vshrl.u32 %v4001, 7
    %v4003 = vsub.s32 %v4000, %v4002
    %v4004 = vrot.slane %v3988, %v4003
    %v4006 = vunpack.c.l.s4 1966171168
    %v4007 = vunpack.c.0.s8 %v4006
    %v4008 = vlaneseq
    %v4009 = vshrl.u32 %v4008, 7
    %v4010 = vsub.s32 %v4007, %v4009
    %v4011 = vrot.slane %v3989, %v4010
    %v4013 = vunpack.c.l.s4 1966171168
    %v4014 = vunpack.c.0.s8 %v4013
    %v4015 = vlaneseq
    %v4016 = vshrl.u32 %v4015, 7
    %v4017 = vsub.s32 %v4014, %v4016
    %v4018 = vrot.slane %v3990, %v4017
    %v4019 = vcombine.high %v3997, %v3997
    %v4020 = vcombine.high %v4011, %v4011
    %vm4021 = vcmp.ne.s32.totalorder %v3997, 0
    %vm4022 = vcmp.ne.s32.totalorder %v4011, 0
    %vm4023 = vcmp.ne.s32.totalorder %v4019, 0
    %vm4024 = vcmp.ne.s32.totalorder %v4020, 0
    %vm4025 = vcmp.ne.s32.totalorder %v4004, 0
    %vm4026 = vcmp.ne.s32.totalorder %v4018, 0
    %v4027 = vsel %vm4021, 1, 0
    %v4028 = vsel %vm4022, 1, 0
    %v4029 = vsel %vm4023, 1, 0
    %v4030 = vsel %vm4024, 1, 0
    %v4031 = vsel %vm4025, 1, 0
    %v4032 = vsel %vm4026, 1, 0
    %v4033 = vlaneseq
    %v4034 = vshrl.u32 %v4033, 7
    %v4035 = vsub.s32 0, %v4034
    %v4036 = vrot.slane %v4027, %v4035
    %v4037 = vlaneseq
    %v4038 = vshrl.u32 %v4037, 7
    %v4039 = vsub.s32 0, %v4038
    %v4040 = vrot.slane %v4028, %v4039
    %v4041 = vlaneseq
    %v4042 = vshrl.u32 %v4041, 7
    %v4043 = vsub.s32 0, %v4042
    %v4044 = vrot.slane %v4029, %v4043
    %v4045 = vlaneseq
    %v4046 = vshrl.u32 %v4045, 7
    %v4047 = vsub.s32 0, %v4046
    %v4048 = vrot.slane %v4030, %v4047
    %v4049 = vlaneseq
    %v4050 = vshrl.u32 %v4049, 7
    %v4051 = vsub.s32 0, %v4050
    %v4052 = vrot.slane %v4031, %v4051
    %v4053 = vlaneseq
    %v4054 = vshrl.u32 %v4053, 7
    %v4055 = vsub.s32 0, %v4054
    %v4056 = vrot.slane %v4032, %v4055
    %vm4057 = vcmp.eq.s32.totalorder %v4036, 1
    %vm4058 = vcmp.eq.s32.totalorder %v4040, 1
    %vm4059 = vcmp.eq.s32.totalorder %v4044, 1
    %vm4060 = vcmp.eq.s32.totalorder %v4048, 1
    %vm4061 = vcmp.eq.s32.totalorder %v4052, 1
    %vm4062 = vcmp.eq.s32.totalorder %v4056, 1
    %vm4063 = vmand %vm3830, %vm4057
    %vm4064 = vmand %vm3831, %vm4058
    %vm4065 = vmand %vm3832, %vm4059
    %vm4066 = vmand %vm3833, %vm4060
    %vm4067 = vmand %vm3834, %vm4061
    %vm4068 = vmand %vm3835, %vm4062
    %vm4069 = vmor %vm4063, %vm4064
    %vm4070 = vmor %vm4069, %vm4065
    %vm4071 = vmor %vm4070, %vm4066
    %vm4072 = vmor %vm4071, %vm4067
    %vm4073 = vmor %vm4072, %vm4068
    %vm4074 = vcmp.gt.f32.partialorder %v16, %v3972
    %vm4075 = vmand %vm4073, %vm4074
    %v4076 = vsel %vm4075, 1, 0
    %v4077 = vcvt.s32.f32 %v4076
    %v4078 = vsel %vm3952, %v4077, -inf
    %v4079 = vrot.slane %v4078, 4
    %v4080 = vmax.f32 %v4078, %v4079
    %v4081 = vrot.slane %v4080, 2
    %v4082 = vmax.f32 %v4080, %v4081
    %v4083 = vrot.slane %v4082, 1
    %v4084 = vmax.f32 %v4082, %v4083
    %vm4085 = vcmp.gt.f32.partialorder %v4084, 0.5
    %v4086 = vsel %vm4085, 1, 0
    %vm4087 = vcmp.eq.s32.totalorder %v4086, 1
    %vm4088 = vmand %vm3964, %vm4087
    %v4089 = vsel %vm4088, 0.001, %v16
    %vm4090 = vcmp.eq.s32.totalorder %v3963, 1
    %v4091 = vsel %vm4090, %v4089, 0.0
    %v4092 = vsel %vm3952, %v4091, 0.0
    %v4093 = vrot.slane %v4092, 4
    %v4094 = vadd.f32 %v4092, %v4093
    %v4095 = vrot.slane %v4094, 2
    %v4096 = vadd.f32 %v4094, %v4095
    %v4097 = vrot.slane %v4096, 1
    %v4098 = vadd.f32 %v4096, %v4097
    %v4099 = vsel %vm4090, 1, 0
    %v4100 = vcombine.high %v4099, %v4099
    %v4102 = vunpack.c.l.s4 1966171168
    %v4103 = vunpack.c.0.s8 %v4102
    %v4104 = vlaneseq
    %v4105 = vshrl.u32 %v4104, 7
    %v4106 = vsub.s32 %v4103, %v4105
    %v4107 = vrot.slane %v4099, %v4106
    %v4109 = vunpack.c.l.s4 1966171168
    %v4110 = vunpack.c.0.s8 %v4109
    %v4111 = vlaneseq
    %v4112 = vshrl.u32 %v4111, 7
    %v4113 = vsub.s32 %v4110, %v4112
    %v4114 = vrot.slane %v4100, %v4113
    %v4115 = vcombine.high %v4107, %v4107
    %v4116 = vcombine.high %v4114, %v4114
    %v4118 = vunpack.c.l.s4 1966171168
    %v4119 = vunpack.c.0.s8 %v4118
    %v4120 = vlaneseq
    %v4121 = vshrl.u32 %v4120, 7
    %v4122 = vsub.s32 %v4119, %v4121
    %v4123 = vrot.slane %v4107, %v4122
    %v4125 = vunpack.c.l.s4 1966171168
    %v4126 = vunpack.c.0.s8 %v4125
    %v4127 = vlaneseq
    %v4128 = vshrl.u32 %v4127, 7
    %v4129 = vsub.s32 %v4126, %v4128
    %v4130 = vrot.slane %v4114, %v4129
    %v4132 = vunpack.c.l.s4 1966171168
    %v4133 = vunpack.c.0.s8 %v4132
    %v4134 = vlaneseq
    %v4135 = vshrl.u32 %v4134, 7
    %v4136 = vsub.s32 %v4133, %v4135
    %v4137 = vrot.slane %v4115, %v4136
    %v4139 = vunpack.c.l.s4 1966171168
    %v4140 = vunpack.c.0.s8 %v4139
    %v4141 = vlaneseq
    %v4142 = vshrl.u32 %v4141, 7
    %v4143 = vsub.s32 %v4140, %v4142
    %v4144 = vrot.slane %v4116, %v4143
    %v4145 = vcombine.high %v4123, %v4123
    %v4146 = vcombine.high %v4137, %v4137
    %vm4147 = vcmp.ne.s32.totalorder %v4123, 0
    %vm4148 = vcmp.ne.s32.totalorder %v4137, 0
    %vm4149 = vcmp.ne.s32.totalorder %v4145, 0
    %vm4150 = vcmp.ne.s32.totalorder %v4146, 0
    %vm4151 = vcmp.ne.s32.totalorder %v4130, 0
    %vm4152 = vcmp.ne.s32.totalorder %v4144, 0
    %v4153 = vsel %vm4147, 1, 0
    %v4154 = vsel %vm4148, 1, 0
    %v4155 = vsel %vm4149, 1, 0
    %v4156 = vsel %vm4150, 1, 0
    %v4157 = vsel %vm4151, 1, 0
    %v4158 = vsel %vm4152, 1, 0
    %v4159 = vlaneseq
    %v4160 = vshrl.u32 %v4159, 7
    %v4161 = vsub.s32 0, %v4160
    %v4162 = vrot.slane %v4153, %v4161
    %v4163 = vlaneseq
    %v4164 = vshrl.u32 %v4163, 7
    %v4165 = vsub.s32 0, %v4164
    %v4166 = vrot.slane %v4154, %v4165
    %v4167 = vlaneseq
    %v4168 = vshrl.u32 %v4167, 7
    %v4169 = vsub.s32 0, %v4168
    %v4170 = vrot.slane %v4155, %v4169
    %v4171 = vlaneseq
    %v4172 = vshrl.u32 %v4171, 7
    %v4173 = vsub.s32 0, %v4172
    %v4174 = vrot.slane %v4156, %v4173
    %v4175 = vlaneseq
    %v4176 = vshrl.u32 %v4175, 7
    %v4177 = vsub.s32 0, %v4176
    %v4178 = vrot.slane %v4157, %v4177
    %v4179 = vlaneseq
    %v4180 = vshrl.u32 %v4179, 7
    %v4181 = vsub.s32 0, %v4180
    %v4182 = vrot.slane %v4158, %v4181
    %vm4183 = vcmp.eq.s32.totalorder %v4162, 1
    %vm4184 = vcmp.eq.s32.totalorder %v4166, 1
    %vm4185 = vcmp.eq.s32.totalorder %v4170, 1
    %vm4186 = vcmp.eq.s32.totalorder %v4174, 1
    %vm4187 = vcmp.eq.s32.totalorder %v4178, 1
    %vm4188 = vcmp.eq.s32.totalorder %v4182, 1
    %vm4189 = vmand %vm3830, %vm4183
    %vm4190 = vmand %vm3831, %vm4184
    %vm4191 = vmand %vm3832, %vm4185
    %vm4192 = vmand %vm3833, %vm4186
    %vm4193 = vmand %vm3834, %vm4187
    %vm4194 = vmand %vm3835, %vm4188
    %vm4195 = vmor %vm4189, %vm4190
    %vm4196 = vmor %vm4195, %vm4191
    %vm4197 = vmor %vm4196, %vm4192
    %vm4198 = vmor %vm4197, %vm4193
    %vm4199 = vmor %vm4198, %vm4194
    %vm4200 = vcmp.gt.f32.partialorder %v4089, %v4098
    %vm4201 = vmand %vm4199, %vm4200
    %v4202 = vsel %vm4201, 1, 0
    %v4203 = vcvt.s32.f32 %v4202
    %v4204 = vsel %vm3952, %v4203, -inf
    %v4205 = vrot.slane %v4204, 4
    %v4206 = vmax.f32 %v4204, %v4205
    %v4207 = vrot.slane %v4206, 2
    %v4208 = vmax.f32 %v4206, %v4207
    %v4209 = vrot.slane %v4208, 1
    %v4210 = vmax.f32 %v4208, %v4209
    %vm4211 = vcmp.gt.f32.partialorder %v4210, 0.5
    %v4212 = vsel %vm4211, 1, 0
    %vm4213 = vcmp.eq.s32.totalorder %v4212, 1
    %vm4214 = vmand %vm4090, %vm4213
    %v4215 = vsel %vm4214, 0.001, %v4089
    %vm4216 = vcmp.eq.s32.totalorder %v3963, 2
    %v4217 = vsel %vm4216, %v4215, 0.0
    %v4218 = vsel %vm3952, %v4217, 0.0
    %v4219 = vrot.slane %v4218, 4
    %v4220 = vadd.f32 %v4218, %v4219
    %v4221 = vrot.slane %v4220, 2
    %v4222 = vadd.f32 %v4220, %v4221
    %v4223 = vrot.slane %v4222, 1
    %v4224 = vadd.f32 %v4222, %v4223
    %v4225 = vsel %vm4216, 1, 0
    %v4226 = vcombine.high %v4225, %v4225
    %v4228 = vunpack.c.l.s4 1966171168
    %v4229 = vunpack.c.0.s8 %v4228
    %v4230 = vlaneseq
    %v4231 = vshrl.u32 %v4230, 7
    %v4232 = vsub.s32 %v4229, %v4231
    %v4233 = vrot.slane %v4225, %v4232
    %v4235 = vunpack.c.l.s4 1966171168
    %v4236 = vunpack.c.0.s8 %v4235
    %v4237 = vlaneseq
    %v4238 = vshrl.u32 %v4237, 7
    %v4239 = vsub.s32 %v4236, %v4238
    %v4240 = vrot.slane %v4226, %v4239
    %v4241 = vcombine.high %v4233, %v4233
    %v4242 = vcombine.high %v4240, %v4240
    %v4244 = vunpack.c.l.s4 1966171168
    %v4245 = vunpack.c.0.s8 %v4244
    %v4246 = vlaneseq
    %v4247 = vshrl.u32 %v4246, 7
    %v4248 = vsub.s32 %v4245, %v4247
    %v4249 = vrot.slane %v4233, %v4248
    %v4251 = vunpack.c.l.s4 1966171168
    %v4252 = vunpack.c.0.s8 %v4251
    %v4253 = vlaneseq
    %v4254 = vshrl.u32 %v4253, 7
    %v4255 = vsub.s32 %v4252, %v4254
    %v4256 = vrot.slane %v4240, %v4255
    %v4258 = vunpack.c.l.s4 1966171168
    %v4259 = vunpack.c.0.s8 %v4258
    %v4260 = vlaneseq
    %v4261 = vshrl.u32 %v4260, 7
    %v4262 = vsub.s32 %v4259, %v4261
    %v4263 = vrot.slane %v4241, %v4262
    %v4265 = vunpack.c.l.s4 1966171168
    %v4266 = vunpack.c.0.s8 %v4265
    %v4267 = vlaneseq
    %v4268 = vshrl.u32 %v4267, 7
    %v4269 = vsub.s32 %v4266, %v4268
    %v4270 = vrot.slane %v4242, %v4269
    %v4271 = vcombine.high %v4249, %v4249
    %v4272 = vcombine.high %v4263, %v4263
    %vm4273 = vcmp.ne.s32.totalorder %v4249, 0
    %vm4274 = vcmp.ne.s32.totalorder %v4263, 0
    %vm4275 = vcmp.ne.s32.totalorder %v4271, 0
    %vm4276 = vcmp.ne.s32.totalorder %v4272, 0
    %vm4277 = vcmp.ne.s32.totalorder %v4256, 0
    %vm4278 = vcmp.ne.s32.totalorder %v4270, 0
    %v4279 = vsel %vm4273, 1, 0
    %v4280 = vsel %vm4274, 1, 0
    %v4281 = vsel %vm4275, 1, 0
    %v4282 = vsel %vm4276, 1, 0
    %v4283 = vsel %vm4277, 1, 0
    %v4284 = vsel %vm4278, 1, 0
    %v4285 = vlaneseq
    %v4286 = vshrl.u32 %v4285, 7
    %v4287 = vsub.s32 0, %v4286
    %v4288 = vrot.slane %v4279, %v4287
    %v4289 = vlaneseq
    %v4290 = vshrl.u32 %v4289, 7
    %v4291 = vsub.s32 0, %v4290
    %v4292 = vrot.slane %v4280, %v4291
    %v4293 = vlaneseq
    %v4294 = vshrl.u32 %v4293, 7
    %v4295 = vsub.s32 0, %v4294
    %v4296 = vrot.slane %v4281, %v4295
    %v4297 = vlaneseq
    %v4298 = vshrl.u32 %v4297, 7
    %v4299 = vsub.s32 0, %v4298
    %v4300 = vrot.slane %v4282, %v4299
    %v4301 = vlaneseq
    %v4302 = vshrl.u32 %v4301, 7
    %v4303 = vsub.s32 0, %v4302
    %v4304 = vrot.slane %v4283, %v4303
    %v4305 = vlaneseq
    %v4306 = vshrl.u32 %v4305, 7
    %v4307 = vsub.s32 0, %v4306
    %v4308 = vrot.slane %v4284, %v4307
    %vm4309 = vcmp.eq.s32.totalorder %v4288, 1
    %vm4310 = vcmp.eq.s32.totalorder %v4292, 1
    %vm4311 = vcmp.eq.s32.totalorder %v4296, 1
    %vm4312 = vcmp.eq.s32.totalorder %v4300, 1
    %vm4313 = vcmp.eq.s32.totalorder %v4304, 1
    %vm4314 = vcmp.eq.s32.totalorder %v4308, 1
    %vm4315 = vmand %vm3830, %vm4309
    %vm4316 = vmand %vm3831, %vm4310
    %vm4317 = vmand %vm3832, %vm4311
    %vm4318 = vmand %vm3833, %vm4312
    %vm4319 = vmand %vm3834, %vm4313
    %vm4320 = vmand %vm3835, %vm4314
    %vm4321 = vmor %vm4315, %vm4316
    %vm4322 = vmor %vm4321, %vm4317
    %vm4323 = vmor %vm4322, %vm4318
    %vm4324 = vmor %vm4323, %vm4319
    %vm4325 = vmor %vm4324, %vm4320
    %vm4326 = vcmp.gt.f32.partialorder %v4215, %v4224
    %vm4327 = vmand %vm4325, %vm4326
    %v4328 = vsel %vm4327, 1, 0
    %v4329 = vcvt.s32.f32 %v4328
    %v4330 = vsel %vm3952, %v4329, -inf
    %v4331 = vrot.slane %v4330, 4
    %v4332 = vmax.f32 %v4330, %v4331
    %v4333 = vrot.slane %v4332, 2
    %v4334 = vmax.f32 %v4332, %v4333
    %v4335 = vrot.slane %v4334, 1
    %v4336 = vmax.f32 %v4334, %v4335
    %vm4337 = vcmp.gt.f32.partialorder %v4336, 0.5
    %v4338 = vsel %vm4337, 1, 0
    %vm4339 = vcmp.eq.s32.totalorder %v4338, 1
    %vm4340 = vmand %vm4216, %vm4339
    %v4341 = vsel %vm4340, 0.001, %v4215
    %vm4342 = vcmp.eq.s32.totalorder %v3963, 3
    %v4343 = vsel %vm4342, %v4341, 0.0
    %v4344 = vsel %vm3952, %v4343, 0.0
    %v4345 = vrot.slane %v4344, 4
    %v4346 = vadd.f32 %v4344, %v4345
    %v4347 = vrot.slane %v4346, 2
    %v4348 = vadd.f32 %v4346, %v4347
    %v4349 = vrot.slane %v4348, 1
    %v4350 = vadd.f32 %v4348, %v4349
    %v4351 = vsel %vm4342, 1, 0
    %v4352 = vcombine.high %v4351, %v4351
    %v4354 = vunpack.c.l.s4 1966171168
    %v4355 = vunpack.c.0.s8 %v4354
    %v4356 = vlaneseq
    %v4357 = vshrl.u32 %v4356, 7
    %v4358 = vsub.s32 %v4355, %v4357
    %v4359 = vrot.slane %v4351, %v4358
    %v4361 = vunpack.c.l.s4 1966171168
    %v4362 = vunpack.c.0.s8 %v4361
    %v4363 = vlaneseq
    %v4364 = vshrl.u32 %v4363, 7
    %v4365 = vsub.s32 %v4362, %v4364
    %v4366 = vrot.slane %v4352, %v4365
    %v4367 = vcombine.high %v4359, %v4359
    %v4368 = vcombine.high %v4366, %v4366
    %v4370 = vunpack.c.l.s4 1966171168
    %v4371 = vunpack.c.0.s8 %v4370
    %v4372 = vlaneseq
    %v4373 = vshrl.u32 %v4372, 7
    %v4374 = vsub.s32 %v4371, %v4373
    %v4375 = vrot.slane %v4359, %v4374
    %v4377 = vunpack.c.l.s4 1966171168
    %v4378 = vunpack.c.0.s8 %v4377
    %v4379 = vlaneseq
    %v4380 = vshrl.u32 %v4379, 7
    %v4381 = vsub.s32 %v4378, %v4380
    %v4382 = vrot.slane %v4366, %v4381
    %v4384 = vunpack.c.l.s4 1966171168
    %v4385 = vunpack.c.0.s8 %v4384
    %v4386 = vlaneseq
    %v4387 = vshrl.u32 %v4386, 7
    %v4388 = vsub.s32 %v4385, %v4387
    %v4389 = vrot.slane %v4367, %v4388
    %v4391 = vunpack.c.l.s4 1966171168
    %v4392 = vunpack.c.0.s8 %v4391
    %v4393 = vlaneseq
    %v4394 = vshrl.u32 %v4393, 7
    %v4395 = vsub.s32 %v4392, %v4394
    %v4396 = vrot.slane %v4368, %v4395
    %v4397 = vcombine.high %v4375, %v4375
    %v4398 = vcombine.high %v4389, %v4389
    %vm4399 = vcmp.ne.s32.totalorder %v4375, 0
    %vm4400 = vcmp.ne.s32.totalorder %v4389, 0
    %vm4401 = vcmp.ne.s32.totalorder %v4397, 0
    %vm4402 = vcmp.ne.s32.totalorder %v4398, 0
    %vm4403 = vcmp.ne.s32.totalorder %v4382, 0
    %vm4404 = vcmp.ne.s32.totalorder %v4396, 0
    %v4405 = vsel %vm4399, 1, 0
    %v4406 = vsel %vm4400, 1, 0
    %v4407 = vsel %vm4401, 1, 0
    %v4408 = vsel %vm4402, 1, 0
    %v4409 = vsel %vm4403, 1, 0
    %v4410 = vsel %vm4404, 1, 0
    %v4411 = vlaneseq
    %v4412 = vshrl.u32 %v4411, 7
    %v4413 = vsub.s32 0, %v4412
    %v4414 = vrot.slane %v4405, %v4413
    %v4415 = vlaneseq
    %v4416 = vshrl.u32 %v4415, 7
    %v4417 = vsub.s32 0, %v4416
    %v4418 = vrot.slane %v4406, %v4417
    %v4419 = vlaneseq
    %v4420 = vshrl.u32 %v4419, 7
    %v4421 = vsub.s32 0, %v4420
    %v4422 = vrot.slane %v4407, %v4421
    %v4423 = vlaneseq
    %v4424 = vshrl.u32 %v4423, 7
    %v4425 = vsub.s32 0, %v4424
    %v4426 = vrot.slane %v4408, %v4425
    %v4427 = vlaneseq
    %v4428 = vshrl.u32 %v4427, 7
    %v4429 = vsub.s32 0, %v4428
    %v4430 = vrot.slane %v4409, %v4429
    %v4431 = vlaneseq
    %v4432 = vshrl.u32 %v4431, 7
    %v4433 = vsub.s32 0, %v4432
    %v4434 = vrot.slane %v4410, %v4433
    %vm4435 = vcmp.eq.s32.totalorder %v4414, 1
    %vm4436 = vcmp.eq.s32.totalorder %v4418, 1
    %vm4437 = vcmp.eq.s32.totalorder %v4422, 1
    %vm4438 = vcmp.eq.s32.totalorder %v4426, 1
    %vm4439 = vcmp.eq.s32.totalorder %v4430, 1
    %vm4440 = vcmp.eq.s32.totalorder %v4434, 1
    %vm4441 = vmand %vm3830, %vm4435
    %vm4442 = vmand %vm3831, %vm4436
    %vm4443 = vmand %vm3832, %vm4437
    %vm4444 = vmand %vm3833, %vm4438
    %vm4445 = vmand %vm3834, %vm4439
    %vm4446 = vmand %vm3835, %vm4440
    %vm4447 = vmor %vm4441, %vm4442
    %vm4448 = vmor %vm4447, %vm4443
    %vm4449 = vmor %vm4448, %vm4444
    %vm4450 = vmor %vm4449, %vm4445
    %vm4451 = vmor %vm4450, %vm4446
    %vm4452 = vcmp.gt.f32.partialorder %v4341, %v4350
    %vm4453 = vmand %vm4451, %vm4452
    %v4454 = vsel %vm4453, 1, 0
    %v4455 = vcvt.s32.f32 %v4454
    %v4456 = vsel %vm3952, %v4455, -inf
    %v4457 = vrot.slane %v4456, 4
    %v4458 = vmax.f32 %v4456, %v4457
    %v4459 = vrot.slane %v4458, 2
    %v4460 = vmax.f32 %v4458, %v4459
    %v4461 = vrot.slane %v4460, 1
    %v4462 = vmax.f32 %v4460, %v4461
    %vm4463 = vcmp.gt.f32.partialorder %v4462, 0.5
    %v4464 = vsel %vm4463, 1, 0
    %vm4465 = vcmp.eq.s32.totalorder %v4464, 1
    %vm4466 = vmand %vm4342, %vm4465
    %v4467 = vsel %vm4466, 0.001, %v4341
    %vm4468 = vcmp.eq.s32.totalorder %v3963, 4
    %v4469 = vsel %vm4468, %v4467, 0.0
    %v4470 = vsel %vm3952, %v4469, 0.0
    %v4471 = vrot.slane %v4470, 4
    %v4472 = vadd.f32 %v4470, %v4471
    %v4473 = vrot.slane %v4472, 2
    %v4474 = vadd.f32 %v4472, %v4473
    %v4475 = vrot.slane %v4474, 1
    %v4476 = vadd.f32 %v4474, %v4475
    %v4477 = vsel %vm4468, 1, 0
    %v4478 = vcombine.high %v4477, %v4477
    %v4480 = vunpack.c.l.s4 1966171168
    %v4481 = vunpack.c.0.s8 %v4480
    %v4482 = vlaneseq
    %v4483 = vshrl.u32 %v4482, 7
    %v4484 = vsub.s32 %v4481, %v4483
    %v4485 = vrot.slane %v4477, %v4484
    %v4487 = vunpack.c.l.s4 1966171168
    %v4488 = vunpack.c.0.s8 %v4487
    %v4489 = vlaneseq
    %v4490 = vshrl.u32 %v4489, 7
    %v4491 = vsub.s32 %v4488, %v4490
    %v4492 = vrot.slane %v4478, %v4491
    %v4493 = vcombine.high %v4485, %v4485
    %v4494 = vcombine.high %v4492, %v4492
    %v4496 = vunpack.c.l.s4 1966171168
    %v4497 = vunpack.c.0.s8 %v4496
    %v4498 = vlaneseq
    %v4499 = vshrl.u32 %v4498, 7
    %v4500 = vsub.s32 %v4497, %v4499
    %v4501 = vrot.slane %v4485, %v4500
    %v4503 = vunpack.c.l.s4 1966171168
    %v4504 = vunpack.c.0.s8 %v4503
    %v4505 = vlaneseq
    %v4506 = vshrl.u32 %v4505, 7
    %v4507 = vsub.s32 %v4504, %v4506
    %v4508 = vrot.slane %v4492, %v4507
    %v4510 = vunpack.c.l.s4 1966171168
    %v4511 = vunpack.c.0.s8 %v4510
    %v4512 = vlaneseq
    %v4513 = vshrl.u32 %v4512, 7
    %v4514 = vsub.s32 %v4511, %v4513
    %v4515 = vrot.slane %v4493, %v4514
    %v4517 = vunpack.c.l.s4 1966171168
    %v4518 = vunpack.c.0.s8 %v4517
    %v4519 = vlaneseq
    %v4520 = vshrl.u32 %v4519, 7
    %v4521 = vsub.s32 %v4518, %v4520
    %v4522 = vrot.slane %v4494, %v4521
    %v4523 = vcombine.high %v4501, %v4501
    %v4524 = vcombine.high %v4515, %v4515
    %vm4525 = vcmp.ne.s32.totalorder %v4501, 0
    %vm4526 = vcmp.ne.s32.totalorder %v4515, 0
    %vm4527 = vcmp.ne.s32.totalorder %v4523, 0
    %vm4528 = vcmp.ne.s32.totalorder %v4524, 0
    %vm4529 = vcmp.ne.s32.totalorder %v4508, 0
    %vm4530 = vcmp.ne.s32.totalorder %v4522, 0
    %v4531 = vsel %vm4525, 1, 0
    %v4532 = vsel %vm4526, 1, 0
    %v4533 = vsel %vm4527, 1, 0
    %v4534 = vsel %vm4528, 1, 0
    %v4535 = vsel %vm4529, 1, 0
    %v4536 = vsel %vm4530, 1, 0
    %v4537 = vlaneseq
    %v4538 = vshrl.u32 %v4537, 7
    %v4539 = vsub.s32 0, %v4538
    %v4540 = vrot.slane %v4531, %v4539
    %v4541 = vlaneseq
    %v4542 = vshrl.u32 %v4541, 7
    %v4543 = vsub.s32 0, %v4542
    %v4544 = vrot.slane %v4532, %v4543
    %v4545 = vlaneseq
    %v4546 = vshrl.u32 %v4545, 7
    %v4547 = vsub.s32 0, %v4546
    %v4548 = vrot.slane %v4533, %v4547
    %v4549 = vlaneseq
    %v4550 = vshrl.u32 %v4549, 7
    %v4551 = vsub.s32 0, %v4550
    %v4552 = vrot.slane %v4534, %v4551
    %v4553 = vlaneseq
    %v4554 = vshrl.u32 %v4553, 7
    %v4555 = vsub.s32 0, %v4554
    %v4556 = vrot.slane %v4535, %v4555
    %v4557 = vlaneseq
    %v4558 = vshrl.u32 %v4557, 7
    %v4559 = vsub.s32 0, %v4558
    %v4560 = vrot.slane %v4536, %v4559
    %vm4561 = vcmp.eq.s32.totalorder %v4540, 1
    %vm4562 = vcmp.eq.s32.totalorder %v4544, 1
    %vm4563 = vcmp.eq.s32.totalorder %v4548, 1
    %vm4564 = vcmp.eq.s32.totalorder %v4552, 1
    %vm4565 = vcmp.eq.s32.totalorder %v4556, 1
    %vm4566 = vcmp.eq.s32.totalorder %v4560, 1
    %vm4567 = vmand %vm3830, %vm4561
    %vm4568 = vmand %vm3831, %vm4562
    %vm4569 = vmand %vm3832, %vm4563
    %vm4570 = vmand %vm3833, %vm4564
    %vm4571 = vmand %vm3834, %vm4565
    %vm4572 = vmand %vm3835, %vm4566
    %vm4573 = vmor %vm4567, %vm4568
    %vm4574 = vmor %vm4573, %vm4569
    %vm4575 = vmor %vm4574, %vm4570
    %vm4576 = vmor %vm4575, %vm4571
    %vm4577 = vmor %vm4576, %vm4572
    %vm4578 = vcmp.gt.f32.partialorder %v4467, %v4476
    %vm4579 = vmand %vm4577, %vm4578
    %v4580 = vsel %vm4579, 1, 0
    %v4581 = vcvt.s32.f32 %v4580
    %v4582 = vsel %vm3952, %v4581, -inf
    %v4583 = vrot.slane %v4582, 4
    %v4584 = vmax.f32 %v4582, %v4583
    %v4585 = vrot.slane %v4584, 2
    %v4586 = vmax.f32 %v4584, %v4585
    %v4587 = vrot.slane %v4586, 1
    %v4588 = vmax.f32 %v4586, %v4587
    %vm4589 = vcmp.gt.f32.partialorder %v4588, 0.5
    %v4590 = vsel %vm4589, 1, 0
    %vm4591 = vcmp.eq.s32.totalorder %v4590, 1
    %vm4592 = vmand %vm4468, %vm4591
    %v4593 = vsel %vm4592, 0.001, %v4467
    %vm4594 = vcmp.eq.s32.totalorder %v3963, 5
    %v4595 = vsel %vm4594, %v4593, 0.0
    %v4596 = vsel %vm3952, %v4595, 0.0
    %v4597 = vrot.slane %v4596, 4
    %v4598 = vadd.f32 %v4596, %v4597
    %v4599 = vrot.slane %v4598, 2
    %v4600 = vadd.f32 %v4598, %v4599
    %v4601 = vrot.slane %v4600, 1
    %v4602 = vadd.f32 %v4600, %v4601
    %v4603 = vsel %vm4594, 1, 0
    %v4604 = vcombine.high %v4603, %v4603
    %v4606 = vunpack.c.l.s4 1966171168
    %v4607 = vunpack.c.0.s8 %v4606
    %v4608 = vlaneseq
    %v4609 = vshrl.u32 %v4608, 7
    %v4610 = vsub.s32 %v4607, %v4609
    %v4611 = vrot.slane %v4603, %v4610
    %v4613 = vunpack.c.l.s4 1966171168
    %v4614 = vunpack.c.0.s8 %v4613
    %v4615 = vlaneseq
    %v4616 = vshrl.u32 %v4615, 7
    %v4617 = vsub.s32 %v4614, %v4616
    %v4618 = vrot.slane %v4604, %v4617
    %v4619 = vcombine.high %v4611, %v4611
    %v4620 = vcombine.high %v4618, %v4618
    %v4622 = vunpack.c.l.s4 1966171168
    %v4623 = vunpack.c.0.s8 %v4622
    %v4624 = vlaneseq
    %v4625 = vshrl.u32 %v4624, 7
    %v4626 = vsub.s32 %v4623, %v4625
    %v4627 = vrot.slane %v4611, %v4626
    %v4629 = vunpack.c.l.s4 1966171168
    %v4630 = vunpack.c.0.s8 %v4629
    %v4631 = vlaneseq
    %v4632 = vshrl.u32 %v4631, 7
    %v4633 = vsub.s32 %v4630, %v4632
    %v4634 = vrot.slane %v4618, %v4633
    %v4636 = vunpack.c.l.s4 1966171168
    %v4637 = vunpack.c.0.s8 %v4636
    %v4638 = vlaneseq
    %v4639 = vshrl.u32 %v4638, 7
    %v4640 = vsub.s32 %v4637, %v4639
    %v4641 = vrot.slane %v4619, %v4640
    %v4643 = vunpack.c.l.s4 1966171168
    %v4644 = vunpack.c.0.s8 %v4643
    %v4645 = vlaneseq
    %v4646 = vshrl.u32 %v4645, 7
    %v4647 = vsub.s32 %v4644, %v4646
    %v4648 = vrot.slane %v4620, %v4647
    %v4649 = vcombine.high %v4627, %v4627
    %v4650 = vcombine.high %v4641, %v4641
    %vm4651 = vcmp.ne.s32.totalorder %v4627, 0
    %vm4652 = vcmp.ne.s32.totalorder %v4641, 0
    %vm4653 = vcmp.ne.s32.totalorder %v4649, 0
    %vm4654 = vcmp.ne.s32.totalorder %v4650, 0
    %vm4655 = vcmp.ne.s32.totalorder %v4634, 0
    %vm4656 = vcmp.ne.s32.totalorder %v4648, 0
    %v4657 = vsel %vm4651, 1, 0
    %v4658 = vsel %vm4652, 1, 0
    %v4659 = vsel %vm4653, 1, 0
    %v4660 = vsel %vm4654, 1, 0
    %v4661 = vsel %vm4655, 1, 0
    %v4662 = vsel %vm4656, 1, 0
    %v4663 = vlaneseq
    %v4664 = vshrl.u32 %v4663, 7
    %v4665 = vsub.s32 0, %v4664
    %v4666 = vrot.slane %v4657, %v4665
    %v4667 = vlaneseq
    %v4668 = vshrl.u32 %v4667, 7
    %v4669 = vsub.s32 0, %v4668
    %v4670 = vrot.slane %v4658, %v4669
    %v4671 = vlaneseq
    %v4672 = vshrl.u32 %v4671, 7
    %v4673 = vsub.s32 0, %v4672
    %v4674 = vrot.slane %v4659, %v4673
    %v4675 = vlaneseq
    %v4676 = vshrl.u32 %v4675, 7
    %v4677 = vsub.s32 0, %v4676
    %v4678 = vrot.slane %v4660, %v4677
    %v4679 = vlaneseq
    %v4680 = vshrl.u32 %v4679, 7
    %v4681 = vsub.s32 0, %v4680
    %v4682 = vrot.slane %v4661, %v4681
    %v4683 = vlaneseq
    %v4684 = vshrl.u32 %v4683, 7
    %v4685 = vsub.s32 0, %v4684
    %v4686 = vrot.slane %v4662, %v4685
    %vm4687 = vcmp.eq.s32.totalorder %v4666, 1
    %vm4688 = vcmp.eq.s32.totalorder %v4670, 1
    %vm4689 = vcmp.eq.s32.totalorder %v4674, 1
    %vm4690 = vcmp.eq.s32.totalorder %v4678, 1
    %vm4691 = vcmp.eq.s32.totalorder %v4682, 1
    %vm4692 = vcmp.eq.s32.totalorder %v4686, 1
    %vm4693 = vmand %vm3830, %vm4687
    %vm4694 = vmand %vm3831, %vm4688
    %vm4695 = vmand %vm3832, %vm4689
    %vm4696 = vmand %vm3833, %vm4690
    %vm4697 = vmand %vm3834, %vm4691
    %vm4698 = vmand %vm3835, %vm4692
    %vm4699 = vmor %vm4693, %vm4694
    %vm4700 = vmor %vm4699, %vm4695
    %vm4701 = vmor %vm4700, %vm4696
    %vm4702 = vmor %vm4701, %vm4697
    %vm4703 = vmor %vm4702, %vm4698
    %vm4704 = vcmp.gt.f32.partialorder %v4593, %v4602
    %vm4705 = vmand %vm4703, %vm4704
    %v4706 = vsel %vm4705, 1, 0
    %v4707 = vcvt.s32.f32 %v4706
    %v4708 = vsel %vm3952, %v4707, -inf
    %v4709 = vrot.slane %v4708, 4
    %v4710 = vmax.f32 %v4708, %v4709
    %v4711 = vrot.slane %v4710, 2
    %v4712 = vmax.f32 %v4710, %v4711
    %v4713 = vrot.slane %v4712, 1
    %v4714 = vmax.f32 %v4712, %v4713
    %vm4715 = vcmp.gt.f32.partialorder %v4714, 0.5
    %v4716 = vsel %vm4715, 1, 0
    %vm4717 = vcmp.eq.s32.totalorder %v4716, 1
    %vm4718 = vmand %vm4594, %vm4717
    %v4719 = vsel %vm4718, 0.001, %v4593
    %v4720 = vsel %vm3952, %v4719, 0.0
    %v4721 = vrot.slane %v4720, 4
    %v4722 = vadd.f32 %v4720, %v4721
    %v4723 = vrot.slane %v4722, 2
    %v4724 = vadd.f32 %v4722, %v4723
    %v4725 = vrot.slane %v4724, 1
    %v4726 = vadd.f32 %v4724, %v4725
    %v4727 = vrcp.pop %v4726
    %v4728 = vmul.f32 %v4719, %v4727
    %v4729 = vlog2.pop %v4728
    %v4730 = vmul.f32 %v4729, 0.6931472
    %v4731 = vmul.f32 %v4730, 2.0
    %v4732 = vsel %vm3952, %v4731, -inf
    %v4733 = vrot.slane %v4732, 4
    %v4734 = vmax.f32 %v4732, %v4733
    %v4735 = vrot.slane %v4734, 2
    %v4736 = vmax.f32 %v4734, %v4735
    %v4737 = vrot.slane %v4736, 1
    %v4738 = vmax.f32 %v4736, %v4737
    %v4739 = vsub.f32 %v4731, %v4738
    %v4740 = vmul.f32 %v4739, 1.442695
    %v4741 = vpow.pop %v4740
    %v4742 = vsel %vm3952, %v4741, 0.0
    %v4743 = vrot.slane %v4742, 4
    %v4744 = vadd.f32 %v4742, %v4743
    %v4745 = vrot.slane %v4744, 2
    %v4746 = vadd.f32 %v4744, %v4745
    %v4747 = vrot.slane %v4746, 1
    %v4748 = vadd.f32 %v4746, %v4747
    %v4749 = vrcp.pop %v4748
    %v4750 = vmul.f32 %v4741, %v4749
    %4751 = vst [vmem:[#allocation2] sm:$0x3f] %v4750
    // Predicated region
    $region14: #{tpu_custom_call.1} parent=1 // pred_check
      _
    $region15: #{tpu_custom_call.1} parent=1 // pred_check_branch
      %4753 = sbr.rel (0) target = $region17
    $region16: #{tpu_custom_call.1} parent=1 // pred_region
      %s4755 = ssub.s32 128, 128
      %4756 = vsyncadd [#allocation3], %s4755
      %s4758 = sshll.u32 [#allocation2], 4
      %s4759 = int_to_ptr.vmem [resolvable:$true] %s4758
      %4761 = dma.vmem_to_hbm [thread:$0]  %s4759, 128, %s3, [#allocation3]
    $region17: #{tpu_custom_call.1} parent=1 // pred_fallthru
      _
    // Predicated region
    $region18: #{tpu_custom_call.1} parent=1 // pred_check
      _
    $region19: #{tpu_custom_call.1} parent=1 // pred_check_branch
      %4763 = sbr.rel (0) target = $region21
    $region20: #{tpu_custom_call.1} parent=1 // pred_region
      %4764 = dma.done [#allocation3], 128
    $region21: #{tpu_custom_call.1} parent=1 // pred_fallthru
      _
    %4765 = vsyncpa [#allocation3], 1

</llo_original>
